<compile_context>
chip_gen: v6e
topology: v6e:2x2x1
jax: 0.10.0
libtpu: 0.0.40
codegen_flags: <defaults>
</compile_context>

<pallas_src>
import functools
import math

import jax
import jax.numpy as jnp
from jax import lax
from jax.experimental import pallas as pl
from jax.experimental.pallas import tpu as pltpu


# ---------------------------------------------------------------------------
# numerics helpers
# ---------------------------------------------------------------------------
def _softplus(x):
    # numerically safe softplus from exp/log/where only (used in kernel + ref)
    return jnp.where(x > 20.0, x, jnp.log(1.0 + jnp.exp(jnp.minimum(x, 20.0))))


def _sigmoid_ref(x):
    return 1.0 / (1.0 + jnp.exp(-x))


def _silu_ref(x):
    return x * _sigmoid_ref(x)


def _sigmoid_k(x):
    # EUP exp + EUP approximate reciprocal (keeps the divide off the VALU)
    return pl.reciprocal(1.0 + jnp.exp(-x), approx=True)


def _silu_k(x):
    return x * _sigmoid_k(x)


# ---------------------------------------------------------------------------
# Pallas kernel: LayerNorm + Mamba block for one batch element
# ---------------------------------------------------------------------------
def _mamba_layer_kernel(
    x_ref,          # (1, L, D)                     tokens of one batch element (f32)
    gamma_ref,      # (1, D)                        LayerNorm weight (f32)
    beta_ref,       # (1, D)                        LayerNorm bias (f32)
    w_in_ref,       # (D, 2*d_inner)                fused in_proj [x | z], pre-transposed (bf16)
    w_conv_ref,     # (d_conv, d_inner)             depthwise causal conv weights (f32)
    b_conv_ref,     # (1, d_inner)                  conv bias (f32)
    w_ssm_ref,      # (d_inner, d_inner+2*d_state)  fused [dt | B | C] projection (bf16)
    b_dt_ref,       # (1, d_inner)                  dt_proj bias (f32)
    a_t_ref,        # (d_state, d_inner)            A = -exp(A_log), transposed (f32)
    d_ref,          # (1, d_inner)                  D skip parameter (f32)
    w_out_t_ref,    # (D, d_inner)                  out_proj, transposed (bf16)
    o_ref,          # (1, D, L)                     channel-major output (lane-dense)
    dt_ref,         # scratch (L, d_inner) f32
    dtu_ref,        # scratch (L, d_inner) f32
    b_ref,          # scratch (L, d_state) f32
    c_ref,          # scratch (L, d_state) f32
    y_ref,          # scratch (L, d_inner) f32
    *,
    L, d_inner, d_state, d_conv, eps, T,
):
    x = x_ref[0]  # (L, D) float32

    # ---- LayerNorm over the feature dim ------------------------------------
    mu = jnp.mean(x, axis=-1, keepdims=True)
    xc0 = x - mu
    var = jnp.mean(xc0 * xc0, axis=-1, keepdims=True)
    x_n = xc0 * lax.rsqrt(var + eps) * gamma_ref[...] + beta_ref[...]

    # ---- fused in_proj (no bias): one GEMM for [x | z] ------------------------
    x_n_bf = x_n.astype(jnp.bfloat16)
    xz = jnp.dot(x_n_bf, w_in_ref[...], preferred_element_type=jnp.float32)  # (L, 2*d_inner)
    x_in = xz[:, :d_inner]
    z = xz[:, d_inner:]

    # ---- depthwise causal conv1d along L + SiLU (register resident) ----------
    conv = jnp.zeros((L, d_inner), jnp.float32) + b_conv_ref[...]
    for k in range(d_conv):  # static, d_conv is tiny
        s = d_conv - 1 - k
        if s == 0:
            shifted = x_in
        else:
            shifted = jnp.concatenate(
                [jnp.zeros((s, d_inner), jnp.float32), x_in[: L - s, :]], axis=0
            )
        conv = conv + shifted * w_conv_ref[k:k + 1, :]
    x_c = _silu_k(conv)  # (L, d_inner)

    # ---- fused SSM parameter projection: one GEMM -> [dt | B | C] -------------
    x_c_bf = x_c.astype(jnp.bfloat16)
    ssm = jnp.dot(x_c_bf, w_ssm_ref[...], preferred_element_type=jnp.float32)  # (L, d_inner+2*d_state)
    dt = _softplus(ssm[:, :d_inner] + b_dt_ref[...])                           # (L, d_inner)
    B_s = ssm[:, d_inner:d_inner + d_state]                                    # (L, d_state)
    C_s = ssm[:, d_inner + d_state:]                                           # (L, d_state)

    A_T = a_t_ref[...]   # (d_state, d_inner), already -exp(A_log)

    # stage per-token scan inputs in VMEM scratch so the chunk loop does aligned loads
    dt_ref[...] = dt
    dtu_ref[...] = dt * x_c
    b_ref[...] = B_s
    c_ref[...] = C_s

    n_chunks = L // T

    # ---- selective scan, T tokens per sequential step ------------------------
    def chunk_body(ci, h):
        off = pl.multiple_of(ci * T, T)
        dt_c = dt_ref[pl.ds(off, T), :]     # (T, d_inner)
        dtu_c = dtu_ref[pl.ds(off, T), :]   # (T, d_inner)
        b_c = b_ref[pl.ds(off, T), :]       # (T, d_state)
        c_c = c_ref[pl.ds(off, T), :]       # (T, d_state)
        bT_c = b_c.T                        # (d_state, T): B tokens as columns

        # h-independent work for the whole chunk, issued before the serial chain:
        #   decay factors exp(dt*A) (EUP) and the rank-1 inputs B[t] (x) (dt*u)[t] (VPU)
        dA = [jnp.exp(dt_c[i:i + 1, :] * A_T) for i in range(T)]        # (d_state, d_inner) each
        dBu = [bT_c[:, i:i + 1] * dtu_c[i:i + 1, :] for i in range(T)]  # (d_state, d_inner) each

        rows = []
        for i in range(T):  # statically unrolled recurrence (the only serial chain)
            h = dA[i] * h + dBu[i]
            rows.append(jnp.dot(c_c[i:i + 1, :], h,
                                preferred_element_type=jnp.float32))    # (1, d_inner)
        # one aligned T-row store per chunk (no masked single-row stores)
        y_ref[pl.ds(off, T), :] = jnp.concatenate(rows, axis=0)
        return h

    lax.fori_loop(0, n_chunks, chunk_body,
                  jnp.zeros((d_state, d_inner), jnp.float32))

    # ---- D skip, gate with SiLU(z), out_proj (channel-major, lane-dense) -----
    y = (y_ref[...] + d_ref[...] * x_c) * _silu_k(z)                    # (L, d_inner)
    out_t = lax.dot_general(
        w_out_t_ref[...], y.astype(jnp.bfloat16),
        dimension_numbers=(((1,), (1,)), ((), ())),
        preferred_element_type=jnp.float32,
    )                                                                   # (D, L)
    o_ref[0] = out_t


# ---------------------------------------------------------------------------
# wrapper: NCHW <-> tokens, weight fusion, BlockSpecs, pallas_call
# ---------------------------------------------------------------------------
def mamba_layer_forward(x_nchw, params, *, d_state=16, d_conv=4, expand=2,
                        eps=1e-5, chunk=8):
    B, dim, H, W = x_nchw.shape
    L = H * W
    d_inner = expand * dim
    assert L % chunk == 0, "token count must be a multiple of the scan chunk size"

    # like the PyTorch module: force float32, tokens = (B, L, D)
    x_tok = jnp.transpose(x_nchw.reshape(B, dim, L), (0, 2, 1)).astype(jnp.float32)

    # fused matmul weights in bf16 (f32 accumulation in-kernel); elementwise params f32
    w_in = jnp.concatenate([params["w_in_x"], params["w_in_z"]],
                           axis=1).astype(jnp.bfloat16)                       # (dim, 2*d_inner)
    w_dt_full = params["w_x_dt"] @ params["w_dt"]                             # (d_inner, d_inner)
    w_ssm = jnp.concatenate([w_dt_full, params["w_x_b"], params["w_x_c"]],
                            axis=1).astype(jnp.bfloat16)                      # (d_inner, d_inner+2*d_state)
    w_out_t = params["w_out"].T.astype(jnp.bfloat16)                          # (dim, d_inner)
    a_neg_t = -jnp.exp(params["a_log_t"]).astype(jnp.float32)                 # (d_state, d_inner)

    kern = functools.partial(
        _mamba_layer_kernel,
        L=L, d_inner=d_inner, d_state=d_state, d_conv=d_conv, eps=eps, T=chunk,
    )

    def const_spec(shape):
        # constant index_map -> Pallas fetches the block once, no re-DMA per batch step
        zeros = (0,) * len(shape)
        return pl.BlockSpec(shape, lambda b, _z=zeros: _z)

    grid_spec = pltpu.PrefetchScalarGridSpec(
        num_scalar_prefetch=0,
        grid=(B,),
        in_specs=[
            pl.BlockSpec((1, L, dim), lambda b: (b, 0, 0)),     # x tokens
            const_spec((1, dim)),                               # gamma
            const_spec((1, dim)),                               # beta
            const_spec((dim, 2 * d_inner)),                     # fused in_proj (bf16)
            const_spec((d_conv, d_inner)),                      # w_conv
            const_spec((1, d_inner)),                           # b_conv
            const_spec((d_inner, d_inner + 2 * d_state)),       # fused [dt|B|C] weight (bf16)
            const_spec((1, d_inner)),                           # b_dt
            const_spec((d_state, d_inner)),                     # A = -exp(A_log), transposed
            const_spec((1, d_inner)),                           # D skip
            const_spec((dim, d_inner)),                         # w_out^T (bf16)
        ],
        # channel-major output block -> last dim L is lane-dense (unmasked stores)
        out_specs=pl.BlockSpec((1, dim, L), lambda b: (b, 0, 0)),
        scratch_shapes=[
            pltpu.VMEM((L, d_inner), jnp.float32),   # dt
            pltpu.VMEM((L, d_inner), jnp.float32),   # dt * u
            pltpu.VMEM((L, d_state), jnp.float32),   # B
            pltpu.VMEM((L, d_state), jnp.float32),   # C
            pltpu.VMEM((L, d_inner), jnp.float32),   # scan output y
        ],
    )

    out_cl = pl.pallas_call(
        kern,
        out_shape=jax.ShapeDtypeStruct((B, dim, L), jnp.float32),
        grid_spec=grid_spec,
        compiler_params=pltpu.CompilerParams(
            dimension_semantics=("parallel",),       # batch elements are independent
            vmem_limit_bytes=32 * 1024 * 1024,
        ),
    )(
        x_tok,
        params["gamma"], params["beta"],
        w_in,
        params["w_conv"], params["b_conv"],
        w_ssm, params["b_dt"],
        a_neg_t, params["d_skip"],
        w_out_t,
    )
    # (B, dim, L) -> NCHW with a plain reshape (no transpose needed)
    return out_cl.reshape(B, dim, H, W)


# ---------------------------------------------------------------------------
# deterministic parameter construction (shapes follow Mamba(d_model=dim, ...))
# ---------------------------------------------------------------------------
def init_params(key, dim, *, d_state=16, d_conv=4, expand=2):
    d_inner = expand * dim
    dt_rank = max(1, math.ceil(dim / 16))
    ks = jax.random.split(key, 8)

    def nrm(k, shape, scale):
        return (scale * jax.random.normal(k, shape)).astype(jnp.float32)

    inv_softplus_001 = math.log(math.expm1(0.01))  # Mamba-style small initial dt

    a_log_t = jnp.log(
        jnp.broadcast_to(
            jnp.arange(1, d_state + 1, dtype=jnp.float32)[:, None], (d_state, d_inner)
        )
    )

    return {
        "gamma": jnp.ones((1, dim), jnp.float32),
        "beta": jnp.zeros((1, dim), jnp.float32),
        "w_in_x": nrm(ks[0], (dim, d_inner), dim ** -0.5),
        "w_in_z": nrm(ks[1], (dim, d_inner), dim ** -0.5),
        "w_conv": nrm(ks[2], (d_conv, d_inner), 0.5 / d_conv ** 0.5),
        "b_conv": jnp.zeros((1, d_inner), jnp.float32),
        "w_x_dt": nrm(ks[3], (d_inner, dt_rank), d_inner ** -0.5),
        "w_dt": nrm(ks[4], (dt_rank, d_inner), dt_rank ** -0.5),
        "b_dt": jnp.full((1, d_inner), inv_softplus_001, jnp.float32),
        "w_x_b": nrm(ks[5], (d_inner, d_state), d_inner ** -0.5),
        "w_x_c": nrm(ks[6], (d_inner, d_state), d_inner ** -0.5),
        "a_log_t": a_log_t,
        "d_skip": jnp.ones((1, d_inner), jnp.float32),
        "w_out": nrm(ks[7], (d_inner, dim), d_inner ** -0.5),
    }


# ---------------------------------------------------------------------------
# pure-JAX reference (mirrors MambaLayer.forward_patch_token + Mamba forward, f32)
# ---------------------------------------------------------------------------
def mamba_layer_ref(x_nchw, params, *, d_state=16, d_conv=4, expand=2, eps=1e-5):
    B, dim, H, W = x_nchw.shape
    L = H * W
    d_inner = expand * dim

    x = jnp.transpose(x_nchw.reshape(B, dim, L), (0, 2, 1)).astype(jnp.float32)
    mu = x.mean(-1, keepdims=True)
    var = ((x - mu) ** 2).mean(-1, keepdims=True)
    xn = (x - mu) / jnp.sqrt(var + eps) * params["gamma"][0] + params["beta"][0]

    xi = xn @ params["w_in_x"]
    z = xn @ params["w_in_z"]

    xp = jnp.pad(xi, ((0, 0), (d_conv - 1, 0), (0, 0)))
    conv = params["b_conv"][0]
    for k in range(d_conv):
        conv = conv + xp[:, k:k + L, :] * params["w_conv"][k]
    xc = _silu_ref(conv)

    dt = _softplus(xc @ (params["w_x_dt"] @ params["w_dt"]) + params["b_dt"][0])
    Bs = xc @ params["w_x_b"]
    Cs = xc @ params["w_x_c"]
    A = -jnp.exp(params["a_log_t"]).T  # (d_inner, d_state)
    Dp = params["d_skip"][0]

    def step(h, inp):
        dt_t, b_t, c_t, u_t = inp
        h = jnp.exp(dt_t[:, None] * A) * h + (dt_t * u_t)[:, None] * b_t[None, :]
        y = h @ c_t + Dp * u_t
        return h, y

    def per_batch(dt_b, b_b, c_b, u_b):
        h0 = jnp.zeros((d_inner, d_state), jnp.float32)
        _, ys = lax.scan(step, h0, (dt_b, b_b, c_b, u_b))
        return ys

    ys = jax.vmap(per_batch)(dt, Bs, Cs, xc)
    y = ys * _silu_ref(z)
    out = y @ params["w_out"]
    return jnp.transpose(out, (0, 2, 1)).reshape(B, dim, H, W)


# ---------------------------------------------------------------------------
if __name__ == "__main__":
    # dim == d_model of MambaLayer; tokens L = H*W = 256 (multiple of 128 -> lane-dense out)
    B, dim, H, W = 2, 16, 16, 16
    key = jax.random.PRNGKey(0)
    kx, kp = jax.random.split(key)

    x = jax.random.normal(kx, (B, dim, H, W), dtype=jnp.float32)
    params = init_params(kp, dim)

    out = jax.block_until_ready(mamba_layer_forward(x, params))
    ref = mamba_layer_ref(x, params)

    assert out.shape == (B, dim, H, W) and out.dtype == jnp.float32
    assert bool(jnp.all(jnp.isfinite(out)))
    max_ref = float(jnp.max(jnp.abs(ref)))
    max_err = float(jnp.max(jnp.abs(out - ref)))
    # kernel runs its GEMMs in bf16 (f32 accum) + uses the EUP approx reciprocal,
    # so allow a slightly wider tolerance vs the pure-f32 reference
    assert max_err <= 4e-2 * (1.0 + max_ref), f"mismatch: max_err={max_err}, scale={max_ref}"

    print("KERNEL_OK")
</pallas_src>

<mosaic_0001>
module attributes {stable_mosaic.version = 11 : i64} {
  func.func @_mamba_layer_kernel(%arg0: i32, %arg1: memref<1x256x16xf32, #tpu.memory_space<vmem>>, %arg2: memref<1x16xf32, #tpu.memory_space<vmem>>, %arg3: memref<1x16xf32, #tpu.memory_space<vmem>>, %arg4: memref<16x64xbf16, #tpu.memory_space<vmem>>, %arg5: memref<4x32xf32, #tpu.memory_space<vmem>>, %arg6: memref<1x32xf32, #tpu.memory_space<vmem>>, %arg7: memref<32x64xbf16, #tpu.memory_space<vmem>>, %arg8: memref<1x32xf32, #tpu.memory_space<vmem>>, %arg9: memref<16x32xf32, #tpu.memory_space<vmem>>, %arg10: memref<1x32xf32, #tpu.memory_space<vmem>>, %arg11: memref<16x32xbf16, #tpu.memory_space<vmem>>, %arg12: memref<1x16x256xf32, #tpu.memory_space<vmem>>, %arg13: memref<256x32xf32, #tpu.memory_space<vmem>>, %arg14: memref<256x32xf32, #tpu.memory_space<vmem>>, %arg15: memref<256x16xf32, #tpu.memory_space<vmem>>, %arg16: memref<256x16xf32, #tpu.memory_space<vmem>>, %arg17: memref<256x32xf32, #tpu.memory_space<vmem>>) attributes {dimension_semantics = [#tpu.dimension_semantics<parallel>], iteration_bounds = array<i64: 2>, scalar_prefetch = 0 : i64, scratch_operands = 5 : i64, tpu.core_type = #tpu.core_type<tc>, window_params = [{transform_indices = @transform_0, window_bounds = array<i64: 1, 256, 16>}, {pipeline_mode = #tpu.pipeline_mode<synchronous>, transform_indices = @transform_1, window_bounds = array<i64: 1, 16>}, {pipeline_mode = #tpu.pipeline_mode<synchronous>, transform_indices = @transform_2, window_bounds = array<i64: 1, 16>}, {pipeline_mode = #tpu.pipeline_mode<synchronous>, transform_indices = @transform_3, window_bounds = array<i64: 16, 64>}, {pipeline_mode = #tpu.pipeline_mode<synchronous>, transform_indices = @transform_4, window_bounds = array<i64: 4, 32>}, {pipeline_mode = #tpu.pipeline_mode<synchronous>, transform_indices = @transform_5, window_bounds = array<i64: 1, 32>}, {pipeline_mode = #tpu.pipeline_mode<synchronous>, transform_indices = @transform_6, window_bounds = array<i64: 32, 64>}, {pipeline_mode = #tpu.pipeline_mode<synchronous>, transform_indices = @transform_7, window_bounds = array<i64: 1, 32>}, {pipeline_mode = #tpu.pipeline_mode<synchronous>, transform_indices = @transform_8, window_bounds = array<i64: 16, 32>}, {pipeline_mode = #tpu.pipeline_mode<synchronous>, transform_indices = @transform_9, window_bounds = array<i64: 1, 32>}, {pipeline_mode = #tpu.pipeline_mode<synchronous>, transform_indices = @transform_10, window_bounds = array<i64: 16, 32>}, {transform_indices = @transform_11, window_bounds = array<i64: 1, 16, 256>}]} {
    %c0 = arith.constant 0 : index
    %c0_0 = arith.constant 0 : index
    %c0_1 = arith.constant 0 : index
    %0 = vector.load %arg1[%c0, %c0_0, %c0_1] : memref<1x256x16xf32, #tpu.memory_space<vmem>>, vector<1x256x16xf32>
    %1 = vector.shape_cast %0 : vector<1x256x16xf32> to vector<256x16xf32>
    %cst = arith.constant dense<0.000000e+00> : vector<256xf32>
    %2 = vector.multi_reduction <add>, %1, %cst [1] : vector<256x16xf32> to vector<256xf32>
    %3 = vector.shape_cast %2 : vector<256xf32> to vector<256x1xf32>
    %cst_2 = arith.constant 1.600000e+01 : f32
    %4 = vector.broadcast %cst_2 : f32 to vector<256x1xf32>
    %5 = arith.divf %3, %4 : vector<256x1xf32>
    %6 = vector.broadcast %5 : vector<256x1xf32> to vector<256x16xf32>
    %7 = arith.subf %1, %6 : vector<256x16xf32>
    %8 = arith.mulf %7, %7 : vector<256x16xf32>
    %cst_3 = arith.constant dense<0.000000e+00> : vector<256xf32>
    %9 = vector.multi_reduction <add>, %8, %cst_3 [1] : vector<256x16xf32> to vector<256xf32>
    %10 = vector.shape_cast %9 : vector<256xf32> to vector<256x1xf32>
    %cst_4 = arith.constant 1.600000e+01 : f32
    %11 = vector.broadcast %cst_4 : f32 to vector<256x1xf32>
    %12 = arith.divf %10, %11 : vector<256x1xf32>
    %cst_5 = arith.constant 9.99999974E-6 : f32
    %13 = vector.broadcast %cst_5 : f32 to vector<256x1xf32>
    %14 = arith.addf %12, %13 : vector<256x1xf32>
    %15 = math.rsqrt %14 : vector<256x1xf32>
    %16 = vector.broadcast %15 : vector<256x1xf32> to vector<256x16xf32>
    %17 = arith.mulf %7, %16 : vector<256x16xf32>
    %c0_6 = arith.constant 0 : index
    %c0_7 = arith.constant 0 : index
    %18 = vector.load %arg2[%c0_6, %c0_7] : memref<1x16xf32, #tpu.memory_space<vmem>>, vector<1x16xf32>
    %19 = vector.broadcast %18 : vector<1x16xf32> to vector<256x16xf32>
    %20 = arith.mulf %17, %19 : vector<256x16xf32>
    %c0_8 = arith.constant 0 : index
    %c0_9 = arith.constant 0 : index
    %21 = vector.load %arg3[%c0_8, %c0_9] : memref<1x16xf32, #tpu.memory_space<vmem>>, vector<1x16xf32>
    %22 = vector.broadcast %21 : vector<1x16xf32> to vector<256x16xf32>
    %23 = arith.addf %20, %22 : vector<256x16xf32>
    %24 = arith.truncf %23 : vector<256x16xf32> to vector<256x16xbf16>
    %c0_10 = arith.constant 0 : index
    %c0_11 = arith.constant 0 : index
    %25 = vector.load %arg4[%c0_10, %c0_11] : memref<16x64xbf16, #tpu.memory_space<vmem>>, vector<16x64xbf16>
    %cst_12 = arith.constant dense<0.000000e+00> : vector<256x64xf32>
    %26 = tpu.matmul %24, %25, %cst_12 {dimension_numbers = #tpu.dot_dimension_numbers<[1], [0], [0], [1], [0, 0, 1, 1], [], []>} : vector<256x16xbf16>, vector<16x64xbf16>, vector<256x64xf32> -> vector<256x64xf32>
    %27 = vector.extract_strided_slice %26 {offsets = [0, 0], sizes = [256, 32], strides = [1, 1]} : vector<256x64xf32> to vector<256x32xf32>
    %28 = vector.extract_strided_slice %26 {offsets = [0, 32], sizes = [256, 32], strides = [1, 1]} : vector<256x64xf32> to vector<256x32xf32>
    %cst_13 = arith.constant 0.000000e+00 : f32
    %29 = vector.broadcast %cst_13 : f32 to vector<256x32xf32>
    %c0_14 = arith.constant 0 : index
    %c0_15 = arith.constant 0 : index
    %30 = vector.load %arg6[%c0_14, %c0_15] : memref<1x32xf32, #tpu.memory_space<vmem>>, vector<1x32xf32>
    %31 = vector.broadcast %30 : vector<1x32xf32> to vector<256x32xf32>
    %32 = arith.addf %29, %31 : vector<256x32xf32>
    %cst_16 = arith.constant 0.000000e+00 : f32
    %33 = vector.broadcast %cst_16 : f32 to vector<3x32xf32>
    %34 = vector.extract_strided_slice %27 {offsets = [0, 0], sizes = [253, 32], strides = [1, 1]} : vector<256x32xf32> to vector<253x32xf32>
    %35 = tpu.concatenate %33, %34 in 0 : vector<3x32xf32>, vector<253x32xf32> -> vector<256x32xf32>
    %c0_17 = arith.constant 0 : index
    %c0_18 = arith.constant 0 : index
    %36 = vector.load %arg5[%c0_17, %c0_18] : memref<4x32xf32, #tpu.memory_space<vmem>>, vector<1x32xf32>
    %37 = vector.broadcast %36 : vector<1x32xf32> to vector<256x32xf32>
    %38 = arith.mulf %35, %37 : vector<256x32xf32>
    %39 = arith.addf %32, %38 : vector<256x32xf32>
    %cst_19 = arith.constant 0.000000e+00 : f32
    %40 = vector.broadcast %cst_19 : f32 to vector<2x32xf32>
    %41 = vector.extract_strided_slice %27 {offsets = [0, 0], sizes = [254, 32], strides = [1, 1]} : vector<256x32xf32> to vector<254x32xf32>
    %42 = tpu.concatenate %40, %41 in 0 : vector<2x32xf32>, vector<254x32xf32> -> vector<256x32xf32>
    %c1 = arith.constant 1 : index
    %c0_20 = arith.constant 0 : index
    %43 = vector.load %arg5[%c1, %c0_20] : memref<4x32xf32, #tpu.memory_space<vmem>>, vector<1x32xf32>
    %44 = vector.broadcast %43 : vector<1x32xf32> to vector<256x32xf32>
    %45 = arith.mulf %42, %44 : vector<256x32xf32>
    %46 = arith.addf %39, %45 : vector<256x32xf32>
    %cst_21 = arith.constant 0.000000e+00 : f32
    %47 = vector.broadcast %cst_21 : f32 to vector<1x32xf32>
    %48 = vector.extract_strided_slice %27 {offsets = [0, 0], sizes = [255, 32], strides = [1, 1]} : vector<256x32xf32> to vector<255x32xf32>
    %49 = tpu.concatenate %47, %48 in 0 : vector<1x32xf32>, vector<255x32xf32> -> vector<256x32xf32>
    %c2 = arith.constant 2 : index
    %c0_22 = arith.constant 0 : index
    %50 = vector.load %arg5[%c2, %c0_22] : memref<4x32xf32, #tpu.memory_space<vmem>>, vector<1x32xf32>
    %51 = vector.broadcast %50 : vector<1x32xf32> to vector<256x32xf32>
    %52 = arith.mulf %49, %51 : vector<256x32xf32>
    %53 = arith.addf %46, %52 : vector<256x32xf32>
    %c3 = arith.constant 3 : index
    %c0_23 = arith.constant 0 : index
    %54 = vector.load %arg5[%c3, %c0_23] : memref<4x32xf32, #tpu.memory_space<vmem>>, vector<1x32xf32>
    %55 = vector.broadcast %54 : vector<1x32xf32> to vector<256x32xf32>
    %56 = arith.mulf %27, %55 : vector<256x32xf32>
    %57 = arith.addf %53, %56 : vector<256x32xf32>
    %cst_24 = arith.constant 0.000000e+00 : f32
    %58 = vector.broadcast %cst_24 : f32 to vector<256x32xf32>
    %59 = arith.subf %58, %57 : vector<256x32xf32>
    %60 = math.exp %59 : vector<256x32xf32>
    %cst_25 = arith.constant 1.000000e+00 : f32
    %61 = vector.broadcast %cst_25 : f32 to vector<256x32xf32>
    %62 = arith.addf %61, %60 : vector<256x32xf32>
    %63 = tpu.reciprocal %62 {approx = true} : vector<256x32xf32> -> vector<256x32xf32>
    %64 = arith.mulf %57, %63 : vector<256x32xf32>
    %65 = arith.truncf %64 : vector<256x32xf32> to vector<256x32xbf16>
    %c0_26 = arith.constant 0 : index
    %c0_27 = arith.constant 0 : index
    %66 = vector.load %arg7[%c0_26, %c0_27] : memref<32x64xbf16, #tpu.memory_space<vmem>>, vector<32x64xbf16>
    %cst_28 = arith.constant dense<0.000000e+00> : vector<256x64xf32>
    %67 = tpu.matmul %65, %66, %cst_28 {dimension_numbers = #tpu.dot_dimension_numbers<[1], [0], [0], [1], [0, 0, 1, 1], [], []>} : vector<256x32xbf16>, vector<32x64xbf16>, vector<256x64xf32> -> vector<256x64xf32>
    %68 = vector.extract_strided_slice %67 {offsets = [0, 0], sizes = [256, 32], strides = [1, 1]} : vector<256x64xf32> to vector<256x32xf32>
    %c0_29 = arith.constant 0 : index
    %c0_30 = arith.constant 0 : index
    %69 = vector.load %arg8[%c0_29, %c0_30] : memref<1x32xf32, #tpu.memory_space<vmem>>, vector<1x32xf32>
    %70 = vector.broadcast %69 : vector<1x32xf32> to vector<256x32xf32>
    %71 = arith.addf %68, %70 : vector<256x32xf32>
    %cst_31 = arith.constant 2.000000e+01 : f32
    %72 = vector.broadcast %cst_31 : f32 to vector<256x32xf32>
    %73 = arith.cmpf ogt, %71, %72 : vector<256x32xf32>
    %cst_32 = arith.constant 2.000000e+01 : f32
    %74 = vector.broadcast %cst_32 : f32 to vector<256x32xf32>
    %75 = arith.minimumf %71, %74 : vector<256x32xf32>
    %76 = math.exp %75 : vector<256x32xf32>
    %cst_33 = arith.constant 1.000000e+00 : f32
    %77 = vector.broadcast %cst_33 : f32 to vector<256x32xf32>
    %78 = arith.addf %77, %76 : vector<256x32xf32>
    %79 = math.log %78 : vector<256x32xf32>
    %80 = arith.select %73, %71, %79 : vector<256x32xi1>, vector<256x32xf32>
    %81 = vector.extract_strided_slice %67 {offsets = [0, 32], sizes = [256, 16], strides = [1, 1]} : vector<256x64xf32> to vector<256x16xf32>
    %82 = vector.extract_strided_slice %67 {offsets = [0, 48], sizes = [256, 16], strides = [1, 1]} : vector<256x64xf32> to vector<256x16xf32>
    %c0_34 = arith.constant 0 : index
    %c0_35 = arith.constant 0 : index
    %83 = vector.load %arg9[%c0_34, %c0_35] : memref<16x32xf32, #tpu.memory_space<vmem>>, vector<16x32xf32>
    %c0_36 = arith.constant 0 : index
    %c0_37 = arith.constant 0 : index
    %84 = vector.load %arg13[%c0_36, %c0_37] : memref<256x32xf32, #tpu.memory_space<vmem>>, vector<256x32xf32>
    tpu.vector_store %arg13[%c0_36, %c0_37], %80 {strides = array<i32>} : memref<256x32xf32, #tpu.memory_space<vmem>>, vector<256x32xf32>,
    %85 = arith.mulf %80, %64 : vector<256x32xf32>
    %c0_38 = arith.constant 0 : index
    %c0_39 = arith.constant 0 : index
    %86 = vector.load %arg14[%c0_38, %c0_39] : memref<256x32xf32, #tpu.memory_space<vmem>>, vector<256x32xf32>
    tpu.vector_store %arg14[%c0_38, %c0_39], %85 {strides = array<i32>} : memref<256x32xf32, #tpu.memory_space<vmem>>, vector<256x32xf32>,
    %c0_40 = arith.constant 0 : index
    %c0_41 = arith.constant 0 : index
    %87 = vector.load %arg15[%c0_40, %c0_41] : memref<256x16xf32, #tpu.memory_space<vmem>>, vector<256x16xf32>
    tpu.vector_store %arg15[%c0_40, %c0_41], %81 {strides = array<i32>} : memref<256x16xf32, #tpu.memory_space<vmem>>, vector<256x16xf32>,
    %c0_42 = arith.constant 0 : index
    %c0_43 = arith.constant 0 : index
    %88 = vector.load %arg16[%c0_42, %c0_43] : memref<256x16xf32, #tpu.memory_space<vmem>>, vector<256x16xf32>
    tpu.vector_store %arg16[%c0_42, %c0_43], %82 {strides = array<i32>} : memref<256x16xf32, #tpu.memory_space<vmem>>, vector<256x16xf32>,
    %cst_44 = arith.constant 0.000000e+00 : f32
    %89 = vector.broadcast %cst_44 : f32 to vector<16x32xf32>
    %c0_i32 = arith.constant 0 : i32
    %c32_i32 = arith.constant 32 : i32
    %90 = arith.addi %c0_i32, %c32_i32 : i32
    %c1_i32 = arith.constant 1 : i32
    %91 = scf.for %arg18 = %c0_i32 to %90 step %c1_i32 iter_args(%arg19 = %89) -> (vector<16x32xf32>)  : i32 {
      %c8_i32 = arith.constant 8 : i32
      %111 = arith.muli %arg18, %c8_i32 : i32
      %112 = tpu.assume_multiple %111, 8 : i32
      %113 = arith.index_cast %112 : i32 to index
      %c0_58 = arith.constant 0 : index
      %114 = vector.load %arg13[%113, %c0_58] : memref<256x32xf32, #tpu.memory_space<vmem>>, vector<8x32xf32>
      %115 = arith.index_cast %112 : i32 to index
      %c0_59 = arith.constant 0 : index
      %116 = vector.load %arg14[%115, %c0_59] : memref<256x32xf32, #tpu.memory_space<vmem>>, vector<8x32xf32>
      %117 = arith.index_cast %112 : i32 to index
      %c0_60 = arith.constant 0 : index
      %118 = vector.load %arg15[%117, %c0_60] : memref<256x16xf32, #tpu.memory_space<vmem>>, vector<8x16xf32>
      %119 = arith.index_cast %112 : i32 to index
      %c0_61 = arith.constant 0 : index
      %120 = vector.load %arg16[%119, %c0_61] : memref<256x16xf32, #tpu.memory_space<vmem>>, vector<8x16xf32>
      %121 = tpu.transpose %118, [1, 0] : vector<8x16xf32> -> vector<16x8xf32>
      %122 = vector.extract_strided_slice %114 {offsets = [0, 0], sizes = [1, 32], strides = [1, 1]} : vector<8x32xf32> to vector<1x32xf32>
      %123 = vector.broadcast %122 : vector<1x32xf32> to vector<16x32xf32>
      %124 = arith.mulf %123, %83 : vector<16x32xf32>
      %125 = math.exp %124 : vector<16x32xf32>
      %126 = vector.extract_strided_slice %114 {offsets = [1, 0], sizes = [1, 32], strides = [1, 1]} : vector<8x32xf32> to vector<1x32xf32>
      %127 = vector.broadcast %126 : vector<1x32xf32> to vector<16x32xf32>
      %128 = arith.mulf %127, %83 : vector<16x32xf32>
      %129 = math.exp %128 : vector<16x32xf32>
      %130 = vector.extract_strided_slice %114 {offsets = [2, 0], sizes = [1, 32], strides = [1, 1]} : vector<8x32xf32> to vector<1x32xf32>
      %131 = vector.broadcast %130 : vector<1x32xf32> to vector<16x32xf32>
      %132 = arith.mulf %131, %83 : vector<16x32xf32>
      %133 = math.exp %132 : vector<16x32xf32>
      %134 = vector.extract_strided_slice %114 {offsets = [3, 0], sizes = [1, 32], strides = [1, 1]} : vector<8x32xf32> to vector<1x32xf32>
      %135 = vector.broadcast %134 : vector<1x32xf32> to vector<16x32xf32>
      %136 = arith.mulf %135, %83 : vector<16x32xf32>
      %137 = math.exp %136 : vector<16x32xf32>
      %138 = vector.extract_strided_slice %114 {offsets = [4, 0], sizes = [1, 32], strides = [1, 1]} : vector<8x32xf32> to vector<1x32xf32>
      %139 = vector.broadcast %138 : vector<1x32xf32> to vector<16x32xf32>
      %140 = arith.mulf %139, %83 : vector<16x32xf32>
      %141 = math.exp %140 : vector<16x32xf32>
      %142 = vector.extract_strided_slice %114 {offsets = [5, 0], sizes = [1, 32], strides = [1, 1]} : vector<8x32xf32> to vector<1x32xf32>
      %143 = vector.broadcast %142 : vector<1x32xf32> to vector<16x32xf32>
      %144 = arith.mulf %143, %83 : vector<16x32xf32>
      %145 = math.exp %144 : vector<16x32xf32>
      %146 = vector.extract_strided_slice %114 {offsets = [6, 0], sizes = [1, 32], strides = [1, 1]} : vector<8x32xf32> to vector<1x32xf32>
      %147 = vector.broadcast %146 : vector<1x32xf32> to vector<16x32xf32>
      %148 = arith.mulf %147, %83 : vector<16x32xf32>
      %149 = math.exp %148 : vector<16x32xf32>
      %150 = vector.extract_strided_slice %114 {offsets = [7, 0], sizes = [1, 32], strides = [1, 1]} : vector<8x32xf32> to vector<1x32xf32>
      %151 = vector.broadcast %150 : vector<1x32xf32> to vector<16x32xf32>
      %152 = arith.mulf %151, %83 : vector<16x32xf32>
      %153 = math.exp %152 : vector<16x32xf32>
      %154 = vector.extract_strided_slice %121 {offsets = [0, 0], sizes = [16, 1], strides = [1, 1]} : vector<16x8xf32> to vector<16x1xf32>
      %155 = vector.extract_strided_slice %116 {offsets = [0, 0], sizes = [1, 32], strides = [1, 1]} : vector<8x32xf32> to vector<1x32xf32>
      %156 = vector.broadcast %154 : vector<16x1xf32> to vector<16x32xf32>
      %157 = vector.broadcast %155 : vector<1x32xf32> to vector<16x32xf32>
      %158 = arith.mulf %156, %157 : vector<16x32xf32>
      %159 = vector.extract_strided_slice %121 {offsets = [0, 1], sizes = [16, 1], strides = [1, 1]} : vector<16x8xf32> to vector<16x1xf32>
      %160 = vector.extract_strided_slice %116 {offsets = [1, 0], sizes = [1, 32], strides = [1, 1]} : vector<8x32xf32> to vector<1x32xf32>
      %161 = vector.broadcast %159 : vector<16x1xf32> to vector<16x32xf32>
      %162 = vector.broadcast %160 : vector<1x32xf32> to vector<16x32xf32>
      %163 = arith.mulf %161, %162 : vector<16x32xf32>
      %164 = vector.extract_strided_slice %121 {offsets = [0, 2], sizes = [16, 1], strides = [1, 1]} : vector<16x8xf32> to vector<16x1xf32>
      %165 = vector.extract_strided_slice %116 {offsets = [2, 0], sizes = [1, 32], strides = [1, 1]} : vector<8x32xf32> to vector<1x32xf32>
      %166 = vector.broadcast %164 : vector<16x1xf32> to vector<16x32xf32>
      %167 = vector.broadcast %165 : vector<1x32xf32> to vector<16x32xf32>
      %168 = arith.mulf %166, %167 : vector<16x32xf32>
      %169 = vector.extract_strided_slice %121 {offsets = [0, 3], sizes = [16, 1], strides = [1, 1]} : vector<16x8xf32> to vector<16x1xf32>
      %170 = vector.extract_strided_slice %116 {offsets = [3, 0], sizes = [1, 32], strides = [1, 1]} : vector<8x32xf32> to vector<1x32xf32>
      %171 = vector.broadcast %169 : vector<16x1xf32> to vector<16x32xf32>
      %172 = vector.broadcast %170 : vector<1x32xf32> to vector<16x32xf32>
      %173 = arith.mulf %171, %172 : vector<16x32xf32>
      %174 = vector.extract_strided_slice %121 {offsets = [0, 4], sizes = [16, 1], strides = [1, 1]} : vector<16x8xf32> to vector<16x1xf32>
      %175 = vector.extract_strided_slice %116 {offsets = [4, 0], sizes = [1, 32], strides = [1, 1]} : vector<8x32xf32> to vector<1x32xf32>
      %176 = vector.broadcast %174 : vector<16x1xf32> to vector<16x32xf32>
      %177 = vector.broadcast %175 : vector<1x32xf32> to vector<16x32xf32>
      %178 = arith.mulf %176, %177 : vector<16x32xf32>
      %179 = vector.extract_strided_slice %121 {offsets = [0, 5], sizes = [16, 1], strides = [1, 1]} : vector<16x8xf32> to vector<16x1xf32>
      %180 = vector.extract_strided_slice %116 {offsets = [5, 0], sizes = [1, 32], strides = [1, 1]} : vector<8x32xf32> to vector<1x32xf32>
      %181 = vector.broadcast %179 : vector<16x1xf32> to vector<16x32xf32>
      %182 = vector.broadcast %180 : vector<1x32xf32> to vector<16x32xf32>
      %183 = arith.mulf %181, %182 : vector<16x32xf32>
      %184 = vector.extract_strided_slice %121 {offsets = [0, 6], sizes = [16, 1], strides = [1, 1]} : vector<16x8xf32> to vector<16x1xf32>
      %185 = vector.extract_strided_slice %116 {offsets = [6, 0], sizes = [1, 32], strides = [1, 1]} : vector<8x32xf32> to vector<1x32xf32>
      %186 = vector.broadcast %184 : vector<16x1xf32> to vector<16x32xf32>
      %187 = vector.broadcast %185 : vector<1x32xf32> to vector<16x32xf32>
      %188 = arith.mulf %186, %187 : vector<16x32xf32>
      %189 = vector.extract_strided_slice %121 {offsets = [0, 7], sizes = [16, 1], strides = [1, 1]} : vector<16x8xf32> to vector<16x1xf32>
      %190 = vector.extract_strided_slice %116 {offsets = [7, 0], sizes = [1, 32], strides = [1, 1]} : vector<8x32xf32> to vector<1x32xf32>
      %191 = vector.broadcast %189 : vector<16x1xf32> to vector<16x32xf32>
      %192 = vector.broadcast %190 : vector<1x32xf32> to vector<16x32xf32>
      %193 = arith.mulf %191, %192 : vector<16x32xf32>
      %194 = arith.mulf %125, %arg19 : vector<16x32xf32>
      %195 = arith.addf %194, %158 : vector<16x32xf32>
      %196 = vector.extract_strided_slice %120 {offsets = [0, 0], sizes = [1, 16], strides = [1, 1]} : vector<8x16xf32> to vector<1x16xf32>
      %cst_62 = arith.constant dense<0.000000e+00> : vector<1x32xf32>
      %197 = tpu.matmul %196, %195, %cst_62 {dimension_numbers = #tpu.dot_dimension_numbers<[1], [0], [0], [1], [0, 0, 1, 1], [], []>} : vector<1x16xf32>, vector<16x32xf32>, vector<1x32xf32> -> vector<1x32xf32>
      %198 = arith.mulf %129, %195 : vector<16x32xf32>
      %199 = arith.addf %198, %163 : vector<16x32xf32>
      %200 = vector.extract_strided_slice %120 {offsets = [1, 0], sizes = [1, 16], strides = [1, 1]} : vector<8x16xf32> to vector<1x16xf32>
      %cst_63 = arith.constant dense<0.000000e+00> : vector<1x32xf32>
      %201 = tpu.matmul %200, %199, %cst_63 {dimension_numbers = #tpu.dot_dimension_numbers<[1], [0], [0], [1], [0, 0, 1, 1], [], []>} : vector<1x16xf32>, vector<16x32xf32>, vector<1x32xf32> -> vector<1x32xf32>
      %202 = arith.mulf %133, %199 : vector<16x32xf32>
      %203 = arith.addf %202, %168 : vector<16x32xf32>
      %204 = vector.extract_strided_slice %120 {offsets = [2, 0], sizes = [1, 16], strides = [1, 1]} : vector<8x16xf32> to vector<1x16xf32>
      %cst_64 = arith.constant dense<0.000000e+00> : vector<1x32xf32>
      %205 = tpu.matmul %204, %203, %cst_64 {dimension_numbers = #tpu.dot_dimension_numbers<[1], [0], [0], [1], [0, 0, 1, 1], [], []>} : vector<1x16xf32>, vector<16x32xf32>, vector<1x32xf32> -> vector<1x32xf32>
      %206 = arith.mulf %137, %203 : vector<16x32xf32>
      %207 = arith.addf %206, %173 : vector<16x32xf32>
      %208 = vector.extract_strided_slice %120 {offsets = [3, 0], sizes = [1, 16], strides = [1, 1]} : vector<8x16xf32> to vector<1x16xf32>
      %cst_65 = arith.constant dense<0.000000e+00> : vector<1x32xf32>
      %209 = tpu.matmul %208, %207, %cst_65 {dimension_numbers = #tpu.dot_dimension_numbers<[1], [0], [0], [1], [0, 0, 1, 1], [], []>} : vector<1x16xf32>, vector<16x32xf32>, vector<1x32xf32> -> vector<1x32xf32>
      %210 = arith.mulf %141, %207 : vector<16x32xf32>
      %211 = arith.addf %210, %178 : vector<16x32xf32>
      %212 = vector.extract_strided_slice %120 {offsets = [4, 0], sizes = [1, 16], strides = [1, 1]} : vector<8x16xf32> to vector<1x16xf32>
      %cst_66 = arith.constant dense<0.000000e+00> : vector<1x32xf32>
      %213 = tpu.matmul %212, %211, %cst_66 {dimension_numbers = #tpu.dot_dimension_numbers<[1], [0], [0], [1], [0, 0, 1, 1], [], []>} : vector<1x16xf32>, vector<16x32xf32>, vector<1x32xf32> -> vector<1x32xf32>
      %214 = arith.mulf %145, %211 : vector<16x32xf32>
      %215 = arith.addf %214, %183 : vector<16x32xf32>
      %216 = vector.extract_strided_slice %120 {offsets = [5, 0], sizes = [1, 16], strides = [1, 1]} : vector<8x16xf32> to vector<1x16xf32>
      %cst_67 = arith.constant dense<0.000000e+00> : vector<1x32xf32>
      %217 = tpu.matmul %216, %215, %cst_67 {dimension_numbers = #tpu.dot_dimension_numbers<[1], [0], [0], [1], [0, 0, 1, 1], [], []>} : vector<1x16xf32>, vector<16x32xf32>, vector<1x32xf32> -> vector<1x32xf32>
      %218 = arith.mulf %149, %215 : vector<16x32xf32>
      %219 = arith.addf %218, %188 : vector<16x32xf32>
      %220 = vector.extract_strided_slice %120 {offsets = [6, 0], sizes = [1, 16], strides = [1, 1]} : vector<8x16xf32> to vector<1x16xf32>
      %cst_68 = arith.constant dense<0.000000e+00> : vector<1x32xf32>
      %221 = tpu.matmul %220, %219, %cst_68 {dimension_numbers = #tpu.dot_dimension_numbers<[1], [0], [0], [1], [0, 0, 1, 1], [], []>} : vector<1x16xf32>, vector<16x32xf32>, vector<1x32xf32> -> vector<1x32xf32>
      %222 = arith.mulf %153, %219 : vector<16x32xf32>
      %223 = arith.addf %222, %193 : vector<16x32xf32>
      %224 = vector.extract_strided_slice %120 {offsets = [7, 0], sizes = [1, 16], strides = [1, 1]} : vector<8x16xf32> to vector<1x16xf32>
      %cst_69 = arith.constant dense<0.000000e+00> : vector<1x32xf32>
      %225 = tpu.matmul %224, %223, %cst_69 {dimension_numbers = #tpu.dot_dimension_numbers<[1], [0], [0], [1], [0, 0, 1, 1], [], []>} : vector<1x16xf32>, vector<16x32xf32>, vector<1x32xf32> -> vector<1x32xf32>
      %226 = tpu.concatenate %197, %201, %205, %209, %213, %217, %221, %225 in 0 : vector<1x32xf32>, vector<1x32xf32>, vector<1x32xf32>, vector<1x32xf32>, vector<1x32xf32>, vector<1x32xf32>, vector<1x32xf32>, vector<1x32xf32> -> vector<8x32xf32>
      %227 = arith.index_cast %112 : i32 to index
      %c0_70 = arith.constant 0 : index
      %228 = vector.load %arg17[%227, %c0_70] : memref<256x32xf32, #tpu.memory_space<vmem>>, vector<8x32xf32>
      tpu.vector_store %arg17[%227, %c0_70], %226 {strides = array<i32>} : memref<256x32xf32, #tpu.memory_space<vmem>>, vector<8x32xf32>,
      scf.yield %223 : vector<16x32xf32>
    }
    %c32_i32_45 = arith.constant 32 : i32
    %c0_46 = arith.constant 0 : index
    %c0_47 = arith.constant 0 : index
    %92 = vector.load %arg17[%c0_46, %c0_47] : memref<256x32xf32, #tpu.memory_space<vmem>>, vector<256x32xf32>
    %c0_48 = arith.constant 0 : index
    %c0_49 = arith.constant 0 : index
    %93 = vector.load %arg10[%c0_48, %c0_49] : memref<1x32xf32, #tpu.memory_space<vmem>>, vector<1x32xf32>
    %94 = vector.broadcast %93 : vector<1x32xf32> to vector<256x32xf32>
    %95 = arith.mulf %94, %64 : vector<256x32xf32>
    %96 = arith.addf %92, %95 : vector<256x32xf32>
    %cst_50 = arith.constant 0.000000e+00 : f32
    %97 = vector.broadcast %cst_50 : f32 to vector<256x32xf32>
    %98 = arith.subf %97, %28 : vector<256x32xf32>
    %99 = math.exp %98 : vector<256x32xf32>
    %cst_51 = arith.constant 1.000000e+00 : f32
    %100 = vector.broadcast %cst_51 : f32 to vector<256x32xf32>
    %101 = arith.addf %100, %99 : vector<256x32xf32>
    %102 = tpu.reciprocal %101 {approx = true} : vector<256x32xf32> -> vector<256x32xf32>
    %103 = arith.mulf %28, %102 : vector<256x32xf32>
    %104 = arith.mulf %96, %103 : vector<256x32xf32>
    %c0_52 = arith.constant 0 : index
    %c0_53 = arith.constant 0 : index
    %105 = vector.load %arg11[%c0_52, %c0_53] : memref<16x32xbf16, #tpu.memory_space<vmem>>, vector<16x32xbf16>
    %106 = arith.truncf %104 : vector<256x32xf32> to vector<256x32xbf16>
    %cst_54 = arith.constant dense<0.000000e+00> : vector<16x256xf32>
    %107 = tpu.matmul %105, %106, %cst_54 {dimension_numbers = #tpu.dot_dimension_numbers<[1], [1], [0], [0], [0, 0, 1, 0], [], []>} : vector<16x32xbf16>, vector<256x32xbf16>, vector<16x256xf32> -> vector<16x256xf32>
    %c0_55 = arith.constant 0 : index
    %c0_56 = arith.constant 0 : index
    %c0_57 = arith.constant 0 : index
    %108 = vector.load %arg12[%c0_55, %c0_56, %c0_57] : memref<1x16x256xf32, #tpu.memory_space<vmem>>, vector<1x16x256xf32>
    %109 = vector.shape_cast %108 : vector<1x16x256xf32> to vector<16x256xf32>
    %110 = vector.shape_cast %107 : vector<16x256xf32> to vector<1x16x256xf32>
    tpu.vector_store %arg12[%c0_55, %c0_56, %c0_57], %110 {strides = array<i32>} : memref<1x16x256xf32, #tpu.memory_space<vmem>>, vector<1x16x256xf32>,
    return
  }
  func.func @transform_0(%arg0: i32) -> (i32, i32, i32) {
    %c0_i32 = arith.constant 0 : i32
    %c0_i32_0 = arith.constant 0 : i32
    %c0_i32_1 = arith.constant 0 : i32
    return %arg0, %c0_i32, %c0_i32_0 : i32, i32, i32
  }
  func.func @transform_1(%arg0: i32) -> (i32, i32) {
    %c0_i32 = arith.constant 0 : i32
    %c0_i32_0 = arith.constant 0 : i32
    %c0_i32_1 = arith.constant 0 : i32
    return %c0_i32, %c0_i32_0 : i32, i32
  }
  func.func @transform_2(%arg0: i32) -> (i32, i32) {
    %c0_i32 = arith.constant 0 : i32
    %c0_i32_0 = arith.constant 0 : i32
    %c0_i32_1 = arith.constant 0 : i32
    return %c0_i32, %c0_i32_0 : i32, i32
  }
  func.func @transform_3(%arg0: i32) -> (i32, i32) {
    %c0_i32 = arith.constant 0 : i32
    %c0_i32_0 = arith.constant 0 : i32
    %c0_i32_1 = arith.constant 0 : i32
    return %c0_i32, %c0_i32_0 : i32, i32
  }
  func.func @transform_4(%arg0: i32) -> (i32, i32) {
    %c0_i32 = arith.constant 0 : i32
    %c0_i32_0 = arith.constant 0 : i32
    %c0_i32_1 = arith.constant 0 : i32
    return %c0_i32, %c0_i32_0 : i32, i32
  }
  func.func @transform_5(%arg0: i32) -> (i32, i32) {
    %c0_i32 = arith.constant 0 : i32
    %c0_i32_0 = arith.constant 0 : i32
    %c0_i32_1 = arith.constant 0 : i32
    return %c0_i32, %c0_i32_0 : i32, i32
  }
  func.func @transform_6(%arg0: i32) -> (i32, i32) {
    %c0_i32 = arith.constant 0 : i32
    %c0_i32_0 = arith.constant 0 : i32
    %c0_i32_1 = arith.constant 0 : i32
    return %c0_i32, %c0_i32_0 : i32, i32
  }
  func.func @transform_7(%arg0: i32) -> (i32, i32) {
    %c0_i32 = arith.constant 0 : i32
    %c0_i32_0 = arith.constant 0 : i32
    %c0_i32_1 = arith.constant 0 : i32
    return %c0_i32, %c0_i32_0 : i32, i32
  }
  func.func @transform_8(%arg0: i32) -> (i32, i32) {
    %c0_i32 = arith.constant 0 : i32
    %c0_i32_0 = arith.constant 0 : i32
    %c0_i32_1 = arith.constant 0 : i32
    return %c0_i32, %c0_i32_0 : i32, i32
  }
  func.func @transform_9(%arg0: i32) -> (i32, i32) {
    %c0_i32 = arith.constant 0 : i32
    %c0_i32_0 = arith.constant 0 : i32
    %c0_i32_1 = arith.constant 0 : i32
    return %c0_i32, %c0_i32_0 : i32, i32
  }
  func.func @transform_10(%arg0: i32) -> (i32, i32) {
    %c0_i32 = arith.constant 0 : i32
    %c0_i32_0 = arith.constant 0 : i32
    %c0_i32_1 = arith.constant 0 : i32
    return %c0_i32, %c0_i32_0 : i32, i32
  }
  func.func @transform_11(%arg0: i32) -> (i32, i32, i32) {
    %c0_i32 = arith.constant 0 : i32
    %c0_i32_0 = arith.constant 0 : i32
    %c0_i32_1 = arith.constant 0 : i32
    return %arg0, %c0_i32, %c0_i32_0 : i32, i32, i32
  }
}

</mosaic_0001>

<llo_original>
// kernel: tpu_custom_call.1
$region0: #{tpu_custom_call.1}
  #allocation0 [shape = 'u32[]', space=smem, size = 0x4, offset = 0x4, fixed_abs, tag = 'smem constant byte address 0x4 - core index']
  #allocation1 [shape = 'u32[144,128]{1,0:T(1,128)}', space=vmem, size = 0x12000, scoped, tag = 'internal scratch']
  #allocation2 [shape = 'f32[256,32]{1,0:T(8,128)}', space=vmem, size = 0x20000, scoped, tag = 'scratch operand']
  #allocation3 [shape = 'f32[256,32]{1,0:T(8,128)}', space=vmem, size = 0x20000, scoped, tag = 'scratch operand']
  #allocation4 [shape = 'f32[256,16]{1,0:T(8,128)}', space=vmem, size = 0x20000, scoped, tag = 'scratch operand']
  #allocation5 [shape = 'f32[256,16]{1,0:T(8,128)}', space=vmem, size = 0x20000, scoped, tag = 'scratch operand']
  #allocation6 [shape = 'f32[256,32]{1,0:T(8,128)}', space=vmem, size = 0x20000, scoped, tag = 'scratch operand']
  %s0 = inlined_call_operand.vmem [shape: f32[2,256,16], index: 0, kind: input, shape index: {}]
  %s1 = inlined_call_operand.vmem [shape: f32[1,16], index: 1, kind: input, shape index: {}]
  %s2 = inlined_call_operand.vmem [shape: f32[1,16], index: 2, kind: input, shape index: {}]
  %s3 = inlined_call_operand.vmem [shape: bf16[16,64], index: 3, kind: input, shape index: {}]
  %s4 = inlined_call_operand.vmem [shape: f32[4,32], index: 4, kind: input, shape index: {}]
  %s5 = inlined_call_operand.vmem [shape: f32[1,32], index: 5, kind: input, shape index: {}]
  %s6 = inlined_call_operand.vmem [shape: bf16[32,64], index: 6, kind: input, shape index: {}]
  %s7 = inlined_call_operand.vmem [shape: f32[1,32], index: 7, kind: input, shape index: {}]
  %s8 = inlined_call_operand.vmem [shape: f32[16,32], index: 8, kind: input, shape index: {}]
  %s9 = inlined_call_operand.vmem [shape: f32[1,32], index: 9, kind: input, shape index: {}]
  %s10 = inlined_call_operand.vmem [shape: bf16[16,32], index: 10, kind: input, shape index: {}]
  %s11 = inlined_call_operand.hbm [shape: f32[2,16,256], index: 11, kind: output, shape index: {}]
  %s12 = sld [smem:[#allocation0]]
  $region84: #{tpu_custom_call.1} parent=0
    _
  %s14 = ssub.s32 1, %s12
  %s15 = scalar_select 0, %s14, %s12
  $region1: #{tpu_custom_call.1} parent=0
    #allocation7 [shape = 'u8[32768]{0}', space=vmem, size = 0x8000, scoped, tag = 'output window, operand 0']
    #allocation8 [shape = 's32[2]{0}', space=sflag, size = 0x8, scoped, tag = 'scoped memory for tpu_custom_call.1']
    %16 = vsyncpa [#allocation8], 0
    %s17 = scalar_lea.sflag [#allocation8], 1
    %18 = vsyncpa %s17, 0
    loop: start=0, step=1, limit=4
    $region2: #{tpu_custom_call.1} parent=1 // loop_pre_header
      _
    $region3: #{tpu_custom_call.1} parent=1 // loop_header
      %s20 = sphi 0, %s24
      %p21 = scmp.ge.s32.totalorder %s20, 4
      %s30 = sphi 0, %s32
      %s33 = sphi 0, %s30
      %s34 = sphi 0, %s33
      %s50 = sphi 0, %s34
      %s54 = sphi 0, %s54
      %s56 = sphi 0, %s54
      %s57 = sphi 0, %s56
      %s71 = sphi 0, %s57
      %s75 = sphi 0, %s75
      %s77 = sphi 0, %s75
      %s78 = sphi 0, %s77
      %s92 = sphi 0, %s78
      %s96 = sphi 0, %s96
      %s98 = sphi 0, %s96
      %s99 = sphi 0, %s98
      %s113 = sphi 0, %s99
      %s117 = sphi 0, %s117
      %s119 = sphi 0, %s117
      %s120 = sphi 0, %s119
      %s134 = sphi 0, %s120
      %s138 = sphi 0, %s138
      %s140 = sphi 0, %s138
      %s141 = sphi 0, %s140
      %s155 = sphi 0, %s141
      %s159 = sphi 0, %s159
      %s161 = sphi 0, %s159
      %s162 = sphi 0, %s161
      %s176 = sphi 0, %s162
      %s180 = sphi 0, %s180
      %s182 = sphi 0, %s180
      %s183 = sphi 0, %s182
      %s197 = sphi 0, %s183
      %s201 = sphi 0, %s201
      %s203 = sphi 0, %s201
      %s204 = sphi 0, %s203
      %s218 = sphi 0, %s204
      %s222 = sphi 0, %s222
      %s224 = sphi 0, %s222
      %s225 = sphi 0, %s224
      %s239 = sphi 0, %s225
      %s243 = sphi 0, %s243
      %s245 = sphi 0, %s243
      %s246 = sphi 0, %s245
      %s260 = sphi 0, %s246
      %s266 = sphi 0, %s268
      %s269 = sphi 0, %s266
      %s270 = sphi 0, %s269
      %s286 = sphi 0, %s270
    $region4: #{tpu_custom_call.1} parent=1 // loop_header_branch
      %23 = sbr.rel (%p21) target = $region8
    $region5: #{tpu_custom_call.1} parent=1 // loop_body
      %s25 = ssub.s32 %s20, 1
      %s26 = ssub.s32 %s20, 2
      %s27 = sadd.s32 %s20, 1
      %s28 = ssub.s32 %s20, %s27
      %p29 = scmp.eq.s32.totalorder %s28, 0
      %s31 = sadd.s32 %s30, 1
      %s32 = scalar_select %p29, %s30, %s31
      %p35 = pneg %p29
      %p36 = scmp.eq.s32.totalorder %s20, 1
      %p37 = por %p35, %p36
      %p38 = scmp.ne.s32.totalorder %s30, %s33
      %p39 = scmp.eq.s32.totalorder %s20, 0
      %p40 = por %p38, %p39
      %p41 = scmp.ne.s32.totalorder %s30, %s33
      %p42 = scmp.eq.s32.totalorder %s25, 1
      %p43 = por %p41, %p42
      %p44 = scmp.ne.s32.totalorder %s33, %s34
      %p45 = scmp.eq.s32.totalorder %s25, 0
      %p46 = por %p44, %p45
      %p47 = scmp.ne.s32.totalorder %s33, %s34
      %p48 = scmp.eq.s32.totalorder %s26, 1
      %p49 = por %p47, %p48
      %p51 = scmp.ne.s32.totalorder %s34, %s50
      %p52 = scmp.eq.s32.totalorder %s26, 0
      %p53 = por %p51, %p52
      %s55 = sadd.s32 %s54, 1
      %p58 = scmp.eq.s32.totalorder %s20, 1
      %p59 = scmp.ne.s32.totalorder %s54, %s56
      %p60 = scmp.eq.s32.totalorder %s20, 0
      %p61 = por %p59, %p60
      %p62 = scmp.ne.s32.totalorder %s54, %s56
      %p63 = scmp.eq.s32.totalorder %s25, 1
      %p64 = por %p62, %p63
      %p65 = scmp.ne.s32.totalorder %s56, %s57
      %p66 = scmp.eq.s32.totalorder %s25, 0
      %p67 = por %p65, %p66
      %p68 = scmp.ne.s32.totalorder %s56, %s57
      %p69 = scmp.eq.s32.totalorder %s26, 1
      %p70 = por %p68, %p69
      %p72 = scmp.ne.s32.totalorder %s57, %s71
      %p73 = scmp.eq.s32.totalorder %s26, 0
      %p74 = por %p72, %p73
      %s76 = sadd.s32 %s75, 1
      %p79 = scmp.eq.s32.totalorder %s20, 1
      %p80 = scmp.ne.s32.totalorder %s75, %s77
      %p81 = scmp.eq.s32.totalorder %s20, 0
      %p82 = por %p80, %p81
      %p83 = scmp.ne.s32.totalorder %s75, %s77
      %p84 = scmp.eq.s32.totalorder %s25, 1
      %p85 = por %p83, %p84
      %p86 = scmp.ne.s32.totalorder %s77, %s78
      %p87 = scmp.eq.s32.totalorder %s25, 0
      %p88 = por %p86, %p87
      %p89 = scmp.ne.s32.totalorder %s77, %s78
      %p90 = scmp.eq.s32.totalorder %s26, 1
      %p91 = por %p89, %p90
      %p93 = scmp.ne.s32.totalorder %s78, %s92
      %p94 = scmp.eq.s32.totalorder %s26, 0
      %p95 = por %p93, %p94
      %s97 = sadd.s32 %s96, 1
      %p100 = scmp.eq.s32.totalorder %s20, 1
      %p101 = scmp.ne.s32.totalorder %s96, %s98
      %p102 = scmp.eq.s32.totalorder %s20, 0
      %p103 = por %p101, %p102
      %p104 = scmp.ne.s32.totalorder %s96, %s98
      %p105 = scmp.eq.s32.totalorder %s25, 1
      %p106 = por %p104, %p105
      %p107 = scmp.ne.s32.totalorder %s98, %s99
      %p108 = scmp.eq.s32.totalorder %s25, 0
      %p109 = por %p107, %p108
      %p110 = scmp.ne.s32.totalorder %s98, %s99
      %p111 = scmp.eq.s32.totalorder %s26, 1
      %p112 = por %p110, %p111
      %p114 = scmp.ne.s32.totalorder %s99, %s113
      %p115 = scmp.eq.s32.totalorder %s26, 0
      %p116 = por %p114, %p115
      %s118 = sadd.s32 %s117, 1
      %p121 = scmp.eq.s32.totalorder %s20, 1
      %p122 = scmp.ne.s32.totalorder %s117, %s119
      %p123 = scmp.eq.s32.totalorder %s20, 0
      %p124 = por %p122, %p123
      %p125 = scmp.ne.s32.totalorder %s117, %s119
      %p126 = scmp.eq.s32.totalorder %s25, 1
      %p127 = por %p125, %p126
      %p128 = scmp.ne.s32.totalorder %s119, %s120
      %p129 = scmp.eq.s32.totalorder %s25, 0
      %p130 = por %p128, %p129
      %p131 = scmp.ne.s32.totalorder %s119, %s120
      %p132 = scmp.eq.s32.totalorder %s26, 1
      %p133 = por %p131, %p132
      %p135 = scmp.ne.s32.totalorder %s120, %s134
      %p136 = scmp.eq.s32.totalorder %s26, 0
      %p137 = por %p135, %p136
      %s139 = sadd.s32 %s138, 1
      %p142 = scmp.eq.s32.totalorder %s20, 1
      %p143 = scmp.ne.s32.totalorder %s138, %s140
      %p144 = scmp.eq.s32.totalorder %s20, 0
      %p145 = por %p143, %p144
      %p146 = scmp.ne.s32.totalorder %s138, %s140
      %p147 = scmp.eq.s32.totalorder %s25, 1
      %p148 = por %p146, %p147
      %p149 = scmp.ne.s32.totalorder %s140, %s141
      %p150 = scmp.eq.s32.totalorder %s25, 0
      %p151 = por %p149, %p150
      %p152 = scmp.ne.s32.totalorder %s140, %s141
      %p153 = scmp.eq.s32.totalorder %s26, 1
      %p154 = por %p152, %p153
      %p156 = scmp.ne.s32.totalorder %s141, %s155
      %p157 = scmp.eq.s32.totalorder %s26, 0
      %p158 = por %p156, %p157
      %s160 = sadd.s32 %s159, 1
      %p163 = scmp.eq.s32.totalorder %s20, 1
      %p164 = scmp.ne.s32.totalorder %s159, %s161
      %p165 = scmp.eq.s32.totalorder %s20, 0
      %p166 = por %p164, %p165
      %p167 = scmp.ne.s32.totalorder %s159, %s161
      %p168 = scmp.eq.s32.totalorder %s25, 1
      %p169 = por %p167, %p168
      %p170 = scmp.ne.s32.totalorder %s161, %s162
      %p171 = scmp.eq.s32.totalorder %s25, 0
      %p172 = por %p170, %p171
      %p173 = scmp.ne.s32.totalorder %s161, %s162
      %p174 = scmp.eq.s32.totalorder %s26, 1
      %p175 = por %p173, %p174
      %p177 = scmp.ne.s32.totalorder %s162, %s176
      %p178 = scmp.eq.s32.totalorder %s26, 0
      %p179 = por %p177, %p178
      %s181 = sadd.s32 %s180, 1
      %p184 = scmp.eq.s32.totalorder %s20, 1
      %p185 = scmp.ne.s32.totalorder %s180, %s182
      %p186 = scmp.eq.s32.totalorder %s20, 0
      %p187 = por %p185, %p186
      %p188 = scmp.ne.s32.totalorder %s180, %s182
      %p189 = scmp.eq.s32.totalorder %s25, 1
      %p190 = por %p188, %p189
      %p191 = scmp.ne.s32.totalorder %s182, %s183
      %p192 = scmp.eq.s32.totalorder %s25, 0
      %p193 = por %p191, %p192
      %p194 = scmp.ne.s32.totalorder %s182, %s183
      %p195 = scmp.eq.s32.totalorder %s26, 1
      %p196 = por %p194, %p195
      %p198 = scmp.ne.s32.totalorder %s183, %s197
      %p199 = scmp.eq.s32.totalorder %s26, 0
      %p200 = por %p198, %p199
      %s202 = sadd.s32 %s201, 1
      %p205 = scmp.eq.s32.totalorder %s20, 1
      %p206 = scmp.ne.s32.totalorder %s201, %s203
      %p207 = scmp.eq.s32.totalorder %s20, 0
      %p208 = por %p206, %p207
      %p209 = scmp.ne.s32.totalorder %s201, %s203
      %p210 = scmp.eq.s32.totalorder %s25, 1
      %p211 = por %p209, %p210
      %p212 = scmp.ne.s32.totalorder %s203, %s204
      %p213 = scmp.eq.s32.totalorder %s25, 0
      %p214 = por %p212, %p213
      %p215 = scmp.ne.s32.totalorder %s203, %s204
      %p216 = scmp.eq.s32.totalorder %s26, 1
      %p217 = por %p215, %p216
      %p219 = scmp.ne.s32.totalorder %s204, %s218
      %p220 = scmp.eq.s32.totalorder %s26, 0
      %p221 = por %p219, %p220
      %s223 = sadd.s32 %s222, 1
      %p226 = scmp.eq.s32.totalorder %s20, 1
      %p227 = scmp.ne.s32.totalorder %s222, %s224
      %p228 = scmp.eq.s32.totalorder %s20, 0
      %p229 = por %p227, %p228
      %p230 = scmp.ne.s32.totalorder %s222, %s224
      %p231 = scmp.eq.s32.totalorder %s25, 1
      %p232 = por %p230, %p231
      %p233 = scmp.ne.s32.totalorder %s224, %s225
      %p234 = scmp.eq.s32.totalorder %s25, 0
      %p235 = por %p233, %p234
      %p236 = scmp.ne.s32.totalorder %s224, %s225
      %p237 = scmp.eq.s32.totalorder %s26, 1
      %p238 = por %p236, %p237
      %p240 = scmp.ne.s32.totalorder %s225, %s239
      %p241 = scmp.eq.s32.totalorder %s26, 0
      %p242 = por %p240, %p241
      %s244 = sadd.s32 %s243, 1
      %p247 = scmp.eq.s32.totalorder %s20, 1
      %p248 = scmp.ne.s32.totalorder %s243, %s245
      %p249 = scmp.eq.s32.totalorder %s20, 0
      %p250 = por %p248, %p249
      %p251 = scmp.ne.s32.totalorder %s243, %s245
      %p252 = scmp.eq.s32.totalorder %s25, 1
      %p253 = por %p251, %p252
      %p254 = scmp.ne.s32.totalorder %s245, %s246
      %p255 = scmp.eq.s32.totalorder %s25, 0
      %p256 = por %p254, %p255
      %p257 = scmp.ne.s32.totalorder %s245, %s246
      %p258 = scmp.eq.s32.totalorder %s26, 1
      %p259 = por %p257, %p258
      %p261 = scmp.ne.s32.totalorder %s246, %s260
      %p262 = scmp.eq.s32.totalorder %s26, 0
      %p263 = por %p261, %p262
      %s264 = ssub.s32 %s20, %s27
      %p265 = scmp.eq.s32.totalorder %s264, 0
      %s267 = sadd.s32 %s266, 1
      %s268 = scalar_select %p265, %s266, %s267
      %p271 = pneg %p265
      %p272 = scmp.eq.s32.totalorder %s20, 1
      %p273 = por %p271, %p272
      %p274 = scmp.ne.s32.totalorder %s266, %s269
      %p275 = scmp.eq.s32.totalorder %s20, 0
      %p276 = por %p274, %p275
      %p277 = scmp.ne.s32.totalorder %s266, %s269
      %p278 = scmp.eq.s32.totalorder %s25, 1
      %p279 = por %p277, %p278
      %p280 = scmp.ne.s32.totalorder %s269, %s270
      %p281 = scmp.eq.s32.totalorder %s25, 0
      %p282 = por %p280, %p281
      %p283 = scmp.ne.s32.totalorder %s269, %s270
      %p284 = scmp.eq.s32.totalorder %s26, 1
      %p285 = por %p283, %p284
      %p287 = scmp.ne.s32.totalorder %s270, %s286
      %p288 = scmp.eq.s32.totalorder %s26, 0
      %p289 = por %p287, %p288
      %p290 = scmp.le.s32.totalorder 1, %s20
      %p291 = scmp.lt.s32.totalorder %s20, 3
      %p292 = pnand %p290, %p291
      %p293 = pneg %p292
      // Predicated region
      $region9: #{tpu_custom_call.1} parent=5 // pred_check
        _
      $region10: #{tpu_custom_call.1} parent=5 // pred_check_branch
        %295 = sbr.rel (%p292) target = $region12
      $region11: #{tpu_custom_call.1} parent=5 // pred_region
        %s296 = ssub.s32 %s20, 1
        // Predicated region
        $region13: #{tpu_custom_call.1} parent=11 // pred_check
          %p297 = pneg %p67
        $region14: #{tpu_custom_call.1} parent=11 // pred_check_branch
          %299 = sbr.rel (%p297) target = $region16
        $region15: #{tpu_custom_call.1} parent=11 // pred_region
          _
        $region16: #{tpu_custom_call.1} parent=11 // pred_fallthru
          _
        // Predicated region
        $region17: #{tpu_custom_call.1} parent=11 // pred_check
          %p300 = pneg %p88
        $region18: #{tpu_custom_call.1} parent=11 // pred_check_branch
          %302 = sbr.rel (%p300) target = $region20
        $region19: #{tpu_custom_call.1} parent=11 // pred_region
          _
        $region20: #{tpu_custom_call.1} parent=11 // pred_fallthru
          _
        // Predicated region
        $region21: #{tpu_custom_call.1} parent=11 // pred_check
          %p303 = pneg %p109
        $region22: #{tpu_custom_call.1} parent=11 // pred_check_branch
          %305 = sbr.rel (%p303) target = $region24
        $region23: #{tpu_custom_call.1} parent=11 // pred_region
          _
        $region24: #{tpu_custom_call.1} parent=11 // pred_fallthru
          _
        // Predicated region
        $region25: #{tpu_custom_call.1} parent=11 // pred_check
          %p306 = pneg %p130
        $region26: #{tpu_custom_call.1} parent=11 // pred_check_branch
          %308 = sbr.rel (%p306) target = $region28
        $region27: #{tpu_custom_call.1} parent=11 // pred_region
          _
        $region28: #{tpu_custom_call.1} parent=11 // pred_fallthru
          _
        // Predicated region
        $region29: #{tpu_custom_call.1} parent=11 // pred_check
          %p309 = pneg %p151
        $region30: #{tpu_custom_call.1} parent=11 // pred_check_branch
          %311 = sbr.rel (%p309) target = $region32
        $region31: #{tpu_custom_call.1} parent=11 // pred_region
          _
        $region32: #{tpu_custom_call.1} parent=11 // pred_fallthru
          _
        // Predicated region
        $region33: #{tpu_custom_call.1} parent=11 // pred_check
          %p312 = pneg %p172
        $region34: #{tpu_custom_call.1} parent=11 // pred_check_branch
          %314 = sbr.rel (%p312) target = $region36
        $region35: #{tpu_custom_call.1} parent=11 // pred_region
          _
        $region36: #{tpu_custom_call.1} parent=11 // pred_fallthru
          _
        // Predicated region
        $region37: #{tpu_custom_call.1} parent=11 // pred_check
          %p315 = pneg %p193
        $region38: #{tpu_custom_call.1} parent=11 // pred_check_branch
          %317 = sbr.rel (%p315) target = $region40
        $region39: #{tpu_custom_call.1} parent=11 // pred_region
          _
        $region40: #{tpu_custom_call.1} parent=11 // pred_fallthru
          _
        // Predicated region
        $region41: #{tpu_custom_call.1} parent=11 // pred_check
          %p318 = pneg %p214
        $region42: #{tpu_custom_call.1} parent=11 // pred_check_branch
          %320 = sbr.rel (%p318) target = $region44
        $region43: #{tpu_custom_call.1} parent=11 // pred_region
          _
        $region44: #{tpu_custom_call.1} parent=11 // pred_fallthru
          _
        // Predicated region
        $region45: #{tpu_custom_call.1} parent=11 // pred_check
          %p321 = pneg %p235
        $region46: #{tpu_custom_call.1} parent=11 // pred_check_branch
          %323 = sbr.rel (%p321) target = $region48
        $region47: #{tpu_custom_call.1} parent=11 // pred_region
          _
        $region48: #{tpu_custom_call.1} parent=11 // pred_fallthru
          _
        // Predicated region
        $region49: #{tpu_custom_call.1} parent=11 // pred_check
          %p324 = pneg %p256
        $region50: #{tpu_custom_call.1} parent=11 // pred_check_branch
          %326 = sbr.rel (%p324) target = $region52
        $region51: #{tpu_custom_call.1} parent=11 // pred_region
          _
        $region52: #{tpu_custom_call.1} parent=11 // pred_fallthru
          _
      $region12: #{tpu_custom_call.1} parent=5 // pred_fallthru
        _
      %p327 = scmp.lt.s32.totalorder %s20, 2
      // Predicated region
      $region53: #{tpu_custom_call.1} parent=5 // pred_check
        %p328 = pneg %p327
      $region54: #{tpu_custom_call.1} parent=5 // pred_check_branch
        %330 = sbr.rel (%p328) target = $region56
      $region55: #{tpu_custom_call.1} parent=5 // pred_region
        // Predicated region
        $region57: #{tpu_custom_call.1} parent=55 // pred_check
          %p331 = pneg %p40
        $region58: #{tpu_custom_call.1} parent=55 // pred_check_branch
          %333 = sbr.rel (%p331) target = $region60
        $region59: #{tpu_custom_call.1} parent=55 // pred_region
          %p334 = scmp.lt.s32.totalorder %s20, 1
          %s335 = scalar_select %p334, %s20, 1
          %s336 = smul.addr %s335, 32
          %s337 = smul.addr %s336, 8
          %s338 = scalar_lea.vmem %s0, %s337
        $region60: #{tpu_custom_call.1} parent=55 // pred_fallthru
          _
      $region56: #{tpu_custom_call.1} parent=5 // pred_fallthru
        _
      %p339 = scmp.le.s32.totalorder 1, %s20
      %p340 = scmp.lt.s32.totalorder %s20, 3
      %p341 = pnand %p339, %p340
      %p342 = pneg %p341
      // Predicated region
      $region61: #{tpu_custom_call.1} parent=5 // pred_check
        _
      $region62: #{tpu_custom_call.1} parent=5 // pred_check_branch
        %344 = sbr.rel (%p341) target = $region64
      $region63: #{tpu_custom_call.1} parent=5 // pred_region
        %s345 = ssub.s32 %s20, 1
        %p346 = scmp.lt.s32.totalorder %s25, 1
        %s347 = scalar_select %p346, %s25, 1
        %s348 = smul.addr %s347, 32
        %s349 = smul.addr %s348, 8
        %s350 = scalar_lea.vmem %s0, %s349
        %p351 = pneg %p46
        %p352 = pneg %p43
        %p353 = pneg %p67
        %p354 = pneg %p64
        %p355 = pneg %p88
        %p356 = pneg %p85
        %p357 = pneg %p109
        %p358 = pneg %p106
        %p359 = pneg %p130
        %p360 = pneg %p127
        %p361 = pneg %p151
        %p362 = pneg %p148
        %p363 = pneg %p172
        %p364 = pneg %p169
        %p365 = pneg %p193
        %p366 = pneg %p190
        %p367 = pneg %p214
        %p368 = pneg %p211
        %p369 = pneg %p235
        %p370 = pneg %p232
        %p371 = pneg %p256
        %p372 = pneg %p253
        %p373 = pneg %p282
        %p374 = pneg %p279
        %s375 = sand.u32 %s269, 1
        %s376 = scalar_lea.sflag [#allocation8], %s375
        %s377 = sand.u32 %s269, 1
        %s378 = smul.addr %s377, 32
        %s379 = scalar_lea.vmem [#allocation7], %s378
        %p380 = scmp.lt.s32.totalorder %s25, 1
        %s381 = scalar_select %p380, %s25, 1
        %s382 = smul.addr %s381, 32
        %s383 = smul.addr %s382, 8
        %s384 = scalar_lea.vmem %s0, %s383
        %v386 = vld [vmem:[%s384] sm:$0xff]
        %v387 = vld [vmem:[%s384 + $0x8] sm:$0xff]
        %v388 = vld [vmem:[%s384 + $0x10] sm:$0xff]
        %v389 = vld [vmem:[%s384 + $0x18] sm:$0xff]
        %v390 = vld [vmem:[%s384 + $0x20] sm:$0xff]
        %v391 = vld [vmem:[%s384 + $0x28] sm:$0xff]
        %v392 = vld [vmem:[%s384 + $0x30] sm:$0xff]
        %v393 = vld [vmem:[%s384 + $0x38] sm:$0xff]
        %v394 = vld [vmem:[%s384 + $0x40] sm:$0xff]
        %v395 = vld [vmem:[%s384 + $0x48] sm:$0xff]
        %v396 = vld [vmem:[%s384 + $0x50] sm:$0xff]
        %v397 = vld [vmem:[%s384 + $0x58] sm:$0xff]
        %v398 = vld [vmem:[%s384 + $0x60] sm:$0xff]
        %v399 = vld [vmem:[%s384 + $0x68] sm:$0xff]
        %v400 = vld [vmem:[%s384 + $0x70] sm:$0xff]
        %v401 = vld [vmem:[%s384 + $0x78] sm:$0xff]
        %v402 = vld [vmem:[%s384 + $0x80] sm:$0xff]
        %v403 = vld [vmem:[%s384 + $0x88] sm:$0xff]
        %v404 = vld [vmem:[%s384 + $0x90] sm:$0xff]
        %v405 = vld [vmem:[%s384 + $0x98] sm:$0xff]
        %v406 = vld [vmem:[%s384 + $0xa0] sm:$0xff]
        %v407 = vld [vmem:[%s384 + $0xa8] sm:$0xff]
        %v408 = vld [vmem:[%s384 + $0xb0] sm:$0xff]
        %v409 = vld [vmem:[%s384 + $0xb8] sm:$0xff]
        %v410 = vld [vmem:[%s384 + $0xc0] sm:$0xff]
        %v411 = vld [vmem:[%s384 + $0xc8] sm:$0xff]
        %v412 = vld [vmem:[%s384 + $0xd0] sm:$0xff]
        %v413 = vld [vmem:[%s384 + $0xd8] sm:$0xff]
        %v414 = vld [vmem:[%s384 + $0xe0] sm:$0xff]
        %v415 = vld [vmem:[%s384 + $0xe8] sm:$0xff]
        %v416 = vld [vmem:[%s384 + $0xf0] sm:$0xff]
        %v417 = vld [vmem:[%s384 + $0xf8] sm:$0xff]
        %vm418 = vcmask 130048
        %v419 = vsel %vm418, %v386, 0.0
        %420 = vadd.xlane.f32.xlu0 %v419
        %v421 = vpop.xlane.xlu0 %420
        %v422 = vsel %vm418, %v387, 0.0
        %423 = vadd.xlane.f32.xlu0 %v422
        %v424 = vpop.xlane.xlu0 %423
        %v425 = vsel %vm418, %v388, 0.0
        %426 = vadd.xlane.f32.xlu0 %v425
        %v427 = vpop.xlane.xlu0 %426
        %v428 = vsel %vm418, %v389, 0.0
        %429 = vadd.xlane.f32.xlu0 %v428
        %v430 = vpop.xlane.xlu0 %429
        %v431 = vsel %vm418, %v390, 0.0
        %432 = vadd.xlane.f32.xlu0 %v431
        %v433 = vpop.xlane.xlu0 %432
        %v434 = vsel %vm418, %v391, 0.0
        %435 = vadd.xlane.f32.xlu0 %v434
        %v436 = vpop.xlane.xlu0 %435
        %v437 = vsel %vm418, %v392, 0.0
        %438 = vadd.xlane.f32.xlu0 %v437
        %v439 = vpop.xlane.xlu0 %438
        %v440 = vsel %vm418, %v393, 0.0
        %441 = vadd.xlane.f32.xlu0 %v440
        %v442 = vpop.xlane.xlu0 %441
        %v443 = vsel %vm418, %v394, 0.0
        %444 = vadd.xlane.f32.xlu0 %v443
        %v445 = vpop.xlane.xlu0 %444
        %v446 = vsel %vm418, %v395, 0.0
        %447 = vadd.xlane.f32.xlu0 %v446
        %v448 = vpop.xlane.xlu0 %447
        %v449 = vsel %vm418, %v396, 0.0
        %450 = vadd.xlane.f32.xlu0 %v449
        %v451 = vpop.xlane.xlu0 %450
        %v452 = vsel %vm418, %v397, 0.0
        %453 = vadd.xlane.f32.xlu0 %v452
        %v454 = vpop.xlane.xlu0 %453
        %v455 = vsel %vm418, %v398, 0.0
        %456 = vadd.xlane.f32.xlu0 %v455
        %v457 = vpop.xlane.xlu0 %456
        %v458 = vsel %vm418, %v399, 0.0
        %459 = vadd.xlane.f32.xlu0 %v458
        %v460 = vpop.xlane.xlu0 %459
        %v461 = vsel %vm418, %v400, 0.0
        %462 = vadd.xlane.f32.xlu0 %v461
        %v463 = vpop.xlane.xlu0 %462
        %v464 = vsel %vm418, %v401, 0.0
        %465 = vadd.xlane.f32.xlu0 %v464
        %v466 = vpop.xlane.xlu0 %465
        %v467 = vsel %vm418, %v402, 0.0
        %468 = vadd.xlane.f32.xlu0 %v467
        %v469 = vpop.xlane.xlu0 %468
        %v470 = vsel %vm418, %v403, 0.0
        %471 = vadd.xlane.f32.xlu0 %v470
        %v472 = vpop.xlane.xlu0 %471
        %v473 = vsel %vm418, %v404, 0.0
        %474 = vadd.xlane.f32.xlu0 %v473
        %v475 = vpop.xlane.xlu0 %474
        %v476 = vsel %vm418, %v405, 0.0
        %477 = vadd.xlane.f32.xlu0 %v476
        %v478 = vpop.xlane.xlu0 %477
        %v479 = vsel %vm418, %v406, 0.0
        %480 = vadd.xlane.f32.xlu0 %v479
        %v481 = vpop.xlane.xlu0 %480
        %v482 = vsel %vm418, %v407, 0.0
        %483 = vadd.xlane.f32.xlu0 %v482
        %v484 = vpop.xlane.xlu0 %483
        %v485 = vsel %vm418, %v408, 0.0
        %486 = vadd.xlane.f32.xlu0 %v485
        %v487 = vpop.xlane.xlu0 %486
        %v488 = vsel %vm418, %v409, 0.0
        %489 = vadd.xlane.f32.xlu0 %v488
        %v490 = vpop.xlane.xlu0 %489
        %v491 = vsel %vm418, %v410, 0.0
        %492 = vadd.xlane.f32.xlu0 %v491
        %v493 = vpop.xlane.xlu0 %492
        %v494 = vsel %vm418, %v411, 0.0
        %495 = vadd.xlane.f32.xlu0 %v494
        %v496 = vpop.xlane.xlu0 %495
        %v497 = vsel %vm418, %v412, 0.0
        %498 = vadd.xlane.f32.xlu0 %v497
        %v499 = vpop.xlane.xlu0 %498
        %v500 = vsel %vm418, %v413, 0.0
        %501 = vadd.xlane.f32.xlu0 %v500
        %v502 = vpop.xlane.xlu0 %501
        %v503 = vsel %vm418, %v414, 0.0
        %504 = vadd.xlane.f32.xlu0 %v503
        %v505 = vpop.xlane.xlu0 %504
        %v506 = vsel %vm418, %v415, 0.0
        %507 = vadd.xlane.f32.xlu0 %v506
        %v508 = vpop.xlane.xlu0 %507
        %v509 = vsel %vm418, %v416, 0.0
        %510 = vadd.xlane.f32.xlu0 %v509
        %v511 = vpop.xlane.xlu0 %510
        %v512 = vsel %vm418, %v417, 0.0
        %513 = vadd.xlane.f32.xlu0 %v512
        %v514 = vpop.xlane.xlu0 %513
        %v515 = vrcp.pop 16.0
        %v516 = vmul.f32 %v421, %v515
        %v517 = vmul.f32 %v424, %v515
        %v518 = vmul.f32 %v427, %v515
        %v519 = vmul.f32 %v430, %v515
        %v520 = vmul.f32 %v433, %v515
        %v521 = vmul.f32 %v436, %v515
        %v522 = vmul.f32 %v439, %v515
        %v523 = vmul.f32 %v442, %v515
        %v524 = vmul.f32 %v445, %v515
        %v525 = vmul.f32 %v448, %v515
        %v526 = vmul.f32 %v451, %v515
        %v527 = vmul.f32 %v454, %v515
        %v528 = vmul.f32 %v457, %v515
        %v529 = vmul.f32 %v460, %v515
        %v530 = vmul.f32 %v463, %v515
        %v531 = vmul.f32 %v466, %v515
        %v532 = vmul.f32 %v469, %v515
        %v533 = vmul.f32 %v472, %v515
        %v534 = vmul.f32 %v475, %v515
        %v535 = vmul.f32 %v478, %v515
        %v536 = vmul.f32 %v481, %v515
        %v537 = vmul.f32 %v484, %v515
        %v538 = vmul.f32 %v487, %v515
        %v539 = vmul.f32 %v490, %v515
        %v540 = vmul.f32 %v493, %v515
        %v541 = vmul.f32 %v496, %v515
        %v542 = vmul.f32 %v499, %v515
        %v543 = vmul.f32 %v502, %v515
        %v544 = vmul.f32 %v505, %v515
        %v545 = vmul.f32 %v508, %v515
        %v546 = vmul.f32 %v511, %v515
        %v547 = vmul.f32 %v514, %v515
        %v548 = vsub.f32 %v386, %v516
        %v549 = vsub.f32 %v387, %v517
        %v550 = vsub.f32 %v388, %v518
        %v551 = vsub.f32 %v389, %v519
        %v552 = vsub.f32 %v390, %v520
        %v553 = vsub.f32 %v391, %v521
        %v554 = vsub.f32 %v392, %v522
        %v555 = vsub.f32 %v393, %v523
        %v556 = vsub.f32 %v394, %v524
        %v557 = vsub.f32 %v395, %v525
        %v558 = vsub.f32 %v396, %v526
        %v559 = vsub.f32 %v397, %v527
        %v560 = vsub.f32 %v398, %v528
        %v561 = vsub.f32 %v399, %v529
        %v562 = vsub.f32 %v400, %v530
        %v563 = vsub.f32 %v401, %v531
        %v564 = vsub.f32 %v402, %v532
        %v565 = vsub.f32 %v403, %v533
        %v566 = vsub.f32 %v404, %v534
        %v567 = vsub.f32 %v405, %v535
        %v568 = vsub.f32 %v406, %v536
        %v569 = vsub.f32 %v407, %v537
        %v570 = vsub.f32 %v408, %v538
        %v571 = vsub.f32 %v409, %v539
        %v572 = vsub.f32 %v410, %v540
        %v573 = vsub.f32 %v411, %v541
        %v574 = vsub.f32 %v412, %v542
        %v575 = vsub.f32 %v413, %v543
        %v576 = vsub.f32 %v414, %v544
        %v577 = vsub.f32 %v415, %v545
        %v578 = vsub.f32 %v416, %v546
        %v579 = vsub.f32 %v417, %v547
        %v580 = vmul.f32 %v548, %v548
        %v581 = vmul.f32 %v549, %v549
        %v582 = vmul.f32 %v550, %v550
        %v583 = vmul.f32 %v551, %v551
        %v584 = vmul.f32 %v552, %v552
        %v585 = vmul.f32 %v553, %v553
        %v586 = vmul.f32 %v554, %v554
        %v587 = vmul.f32 %v555, %v555
        %v588 = vmul.f32 %v556, %v556
        %v589 = vmul.f32 %v557, %v557
        %v590 = vmul.f32 %v558, %v558
        %v591 = vmul.f32 %v559, %v559
        %v592 = vmul.f32 %v560, %v560
        %v593 = vmul.f32 %v561, %v561
        %v594 = vmul.f32 %v562, %v562
        %v595 = vmul.f32 %v563, %v563
        %v596 = vmul.f32 %v564, %v564
        %v597 = vmul.f32 %v565, %v565
        %v598 = vmul.f32 %v566, %v566
        %v599 = vmul.f32 %v567, %v567
        %v600 = vmul.f32 %v568, %v568
        %v601 = vmul.f32 %v569, %v569
        %v602 = vmul.f32 %v570, %v570
        %v603 = vmul.f32 %v571, %v571
        %v604 = vmul.f32 %v572, %v572
        %v605 = vmul.f32 %v573, %v573
        %v606 = vmul.f32 %v574, %v574
        %v607 = vmul.f32 %v575, %v575
        %v608 = vmul.f32 %v576, %v576
        %v609 = vmul.f32 %v577, %v577
        %v610 = vmul.f32 %v578, %v578
        %v611 = vmul.f32 %v579, %v579
        %v612 = vsel %vm418, %v580, 0.0
        %613 = vadd.xlane.f32.xlu0 %v612
        %v614 = vpop.xlane.xlu0 %613
        %v615 = vsel %vm418, %v581, 0.0
        %616 = vadd.xlane.f32.xlu0 %v615
        %v617 = vpop.xlane.xlu0 %616
        %v618 = vsel %vm418, %v582, 0.0
        %619 = vadd.xlane.f32.xlu0 %v618
        %v620 = vpop.xlane.xlu0 %619
        %v621 = vsel %vm418, %v583, 0.0
        %622 = vadd.xlane.f32.xlu0 %v621
        %v623 = vpop.xlane.xlu0 %622
        %v624 = vsel %vm418, %v584, 0.0
        %625 = vadd.xlane.f32.xlu0 %v624
        %v626 = vpop.xlane.xlu0 %625
        %v627 = vsel %vm418, %v585, 0.0
        %628 = vadd.xlane.f32.xlu0 %v627
        %v629 = vpop.xlane.xlu0 %628
        %v630 = vsel %vm418, %v586, 0.0
        %631 = vadd.xlane.f32.xlu0 %v630
        %v632 = vpop.xlane.xlu0 %631
        %v633 = vsel %vm418, %v587, 0.0
        %634 = vadd.xlane.f32.xlu0 %v633
        %v635 = vpop.xlane.xlu0 %634
        %v636 = vsel %vm418, %v588, 0.0
        %637 = vadd.xlane.f32.xlu0 %v636
        %v638 = vpop.xlane.xlu0 %637
        %v639 = vsel %vm418, %v589, 0.0
        %640 = vadd.xlane.f32.xlu0 %v639
        %v641 = vpop.xlane.xlu0 %640
        %v642 = vsel %vm418, %v590, 0.0
        %643 = vadd.xlane.f32.xlu0 %v642
        %v644 = vpop.xlane.xlu0 %643
        %v645 = vsel %vm418, %v591, 0.0
        %646 = vadd.xlane.f32.xlu0 %v645
        %v647 = vpop.xlane.xlu0 %646
        %v648 = vsel %vm418, %v592, 0.0
        %649 = vadd.xlane.f32.xlu0 %v648
        %v650 = vpop.xlane.xlu0 %649
        %v651 = vsel %vm418, %v593, 0.0
        %652 = vadd.xlane.f32.xlu0 %v651
        %v653 = vpop.xlane.xlu0 %652
        %v654 = vsel %vm418, %v594, 0.0
        %655 = vadd.xlane.f32.xlu0 %v654
        %v656 = vpop.xlane.xlu0 %655
        %v657 = vsel %vm418, %v595, 0.0
        %658 = vadd.xlane.f32.xlu0 %v657
        %v659 = vpop.xlane.xlu0 %658
        %v660 = vsel %vm418, %v596, 0.0
        %661 = vadd.xlane.f32.xlu0 %v660
        %v662 = vpop.xlane.xlu0 %661
        %v663 = vsel %vm418, %v597, 0.0
        %664 = vadd.xlane.f32.xlu0 %v663
        %v665 = vpop.xlane.xlu0 %664
        %v666 = vsel %vm418, %v598, 0.0
        %667 = vadd.xlane.f32.xlu0 %v666
        %v668 = vpop.xlane.xlu0 %667
        %v669 = vsel %vm418, %v599, 0.0
        %670 = vadd.xlane.f32.xlu0 %v669
        %v671 = vpop.xlane.xlu0 %670
        %v672 = vsel %vm418, %v600, 0.0
        %673 = vadd.xlane.f32.xlu0 %v672
        %v674 = vpop.xlane.xlu0 %673
        %v675 = vsel %vm418, %v601, 0.0
        %676 = vadd.xlane.f32.xlu0 %v675
        %v677 = vpop.xlane.xlu0 %676
        %v678 = vsel %vm418, %v602, 0.0
        %679 = vadd.xlane.f32.xlu0 %v678
        %v680 = vpop.xlane.xlu0 %679
        %v681 = vsel %vm418, %v603, 0.0
        %682 = vadd.xlane.f32.xlu0 %v681
        %v683 = vpop.xlane.xlu0 %682
        %v684 = vsel %vm418, %v604, 0.0
        %685 = vadd.xlane.f32.xlu0 %v684
        %v686 = vpop.xlane.xlu0 %685
        %v687 = vsel %vm418, %v605, 0.0
        %688 = vadd.xlane.f32.xlu0 %v687
        %v689 = vpop.xlane.xlu0 %688
        %v690 = vsel %vm418, %v606, 0.0
        %691 = vadd.xlane.f32.xlu0 %v690
        %v692 = vpop.xlane.xlu0 %691
        %v693 = vsel %vm418, %v607, 0.0
        %694 = vadd.xlane.f32.xlu0 %v693
        %v695 = vpop.xlane.xlu0 %694
        %v696 = vsel %vm418, %v608, 0.0
        %697 = vadd.xlane.f32.xlu0 %v696
        %v698 = vpop.xlane.xlu0 %697
        %v699 = vsel %vm418, %v609, 0.0
        %700 = vadd.xlane.f32.xlu0 %v699
        %v701 = vpop.xlane.xlu0 %700
        %v702 = vsel %vm418, %v610, 0.0
        %703 = vadd.xlane.f32.xlu0 %v702
        %v704 = vpop.xlane.xlu0 %703
        %v705 = vsel %vm418, %v611, 0.0
        %706 = vadd.xlane.f32.xlu0 %v705
        %v707 = vpop.xlane.xlu0 %706
        %v708 = vmul.f32 %v614, %v515
        %v709 = vmul.f32 %v617, %v515
        %v710 = vmul.f32 %v620, %v515
        %v711 = vmul.f32 %v623, %v515
        %v712 = vmul.f32 %v626, %v515
        %v713 = vmul.f32 %v629, %v515
        %v714 = vmul.f32 %v632, %v515
        %v715 = vmul.f32 %v635, %v515
        %v716 = vmul.f32 %v638, %v515
        %v717 = vmul.f32 %v641, %v515
        %v718 = vmul.f32 %v644, %v515
        %v719 = vmul.f32 %v647, %v515
        %v720 = vmul.f32 %v650, %v515
        %v721 = vmul.f32 %v653, %v515
        %v722 = vmul.f32 %v656, %v515
        %v723 = vmul.f32 %v659, %v515
        %v724 = vmul.f32 %v662, %v515
        %v725 = vmul.f32 %v665, %v515
        %v726 = vmul.f32 %v668, %v515
        %v727 = vmul.f32 %v671, %v515
        %v728 = vmul.f32 %v674, %v515
        %v729 = vmul.f32 %v677, %v515
        %v730 = vmul.f32 %v680, %v515
        %v731 = vmul.f32 %v683, %v515
        %v732 = vmul.f32 %v686, %v515
        %v733 = vmul.f32 %v689, %v515
        %v734 = vmul.f32 %v692, %v515
        %v735 = vmul.f32 %v695, %v515
        %v736 = vmul.f32 %v698, %v515
        %v737 = vmul.f32 %v701, %v515
        %v738 = vmul.f32 %v704, %v515
        %v739 = vmul.f32 %v707, %v515
        %v740 = vadd.f32 %v708, 1e-05
        %v741 = vadd.f32 %v709, 1e-05
        %v742 = vadd.f32 %v710, 1e-05
        %v743 = vadd.f32 %v711, 1e-05
        %v744 = vadd.f32 %v712, 1e-05
        %v745 = vadd.f32 %v713, 1e-05
        %v746 = vadd.f32 %v714, 1e-05
        %v747 = vadd.f32 %v715, 1e-05
        %v748 = vadd.f32 %v716, 1e-05
        %v749 = vadd.f32 %v717, 1e-05
        %v750 = vadd.f32 %v718, 1e-05
        %v751 = vadd.f32 %v719, 1e-05
        %v752 = vadd.f32 %v720, 1e-05
        %v753 = vadd.f32 %v721, 1e-05
        %v754 = vadd.f32 %v722, 1e-05
        %v755 = vadd.f32 %v723, 1e-05
        %v756 = vadd.f32 %v724, 1e-05
        %v757 = vadd.f32 %v725, 1e-05
        %v758 = vadd.f32 %v726, 1e-05
        %v759 = vadd.f32 %v727, 1e-05
        %v760 = vadd.f32 %v728, 1e-05
        %v761 = vadd.f32 %v729, 1e-05
        %v762 = vadd.f32 %v730, 1e-05
        %v763 = vadd.f32 %v731, 1e-05
        %v764 = vadd.f32 %v732, 1e-05
        %v765 = vadd.f32 %v733, 1e-05
        %v766 = vadd.f32 %v734, 1e-05
        %v767 = vadd.f32 %v735, 1e-05
        %v768 = vadd.f32 %v736, 1e-05
        %v769 = vadd.f32 %v737, 1e-05
        %v770 = vadd.f32 %v738, 1e-05
        %v771 = vadd.f32 %v739, 1e-05
        %v772 = vrsqrt.pop %v740
        %v773 = vrsqrt.pop %v741
        %v774 = vrsqrt.pop %v742
        %v775 = vrsqrt.pop %v743
        %v776 = vrsqrt.pop %v744
        %v777 = vrsqrt.pop %v745
        %v778 = vrsqrt.pop %v746
        %v779 = vrsqrt.pop %v747
        %v780 = vrsqrt.pop %v748
        %v781 = vrsqrt.pop %v749
        %v782 = vrsqrt.pop %v750
        %v783 = vrsqrt.pop %v751
        %v784 = vrsqrt.pop %v752
        %v785 = vrsqrt.pop %v753
        %v786 = vrsqrt.pop %v754
        %v787 = vrsqrt.pop %v755
        %v788 = vrsqrt.pop %v756
        %v789 = vrsqrt.pop %v757
        %v790 = vrsqrt.pop %v758
        %v791 = vrsqrt.pop %v759
        %v792 = vrsqrt.pop %v760
        %v793 = vrsqrt.pop %v761
        %v794 = vrsqrt.pop %v762
        %v795 = vrsqrt.pop %v763
        %v796 = vrsqrt.pop %v764
        %v797 = vrsqrt.pop %v765
        %v798 = vrsqrt.pop %v766
        %v799 = vrsqrt.pop %v767
        %v800 = vrsqrt.pop %v768
        %v801 = vrsqrt.pop %v769
        %v802 = vrsqrt.pop %v770
        %v803 = vrsqrt.pop %v771
        %v804 = vmul.f32 %v548, %v772
        %v805 = vmul.f32 %v549, %v773
        %v806 = vmul.f32 %v550, %v774
        %v807 = vmul.f32 %v551, %v775
        %v808 = vmul.f32 %v552, %v776
        %v809 = vmul.f32 %v553, %v777
        %v810 = vmul.f32 %v554, %v778
        %v811 = vmul.f32 %v555, %v779
        %v812 = vmul.f32 %v556, %v780
        %v813 = vmul.f32 %v557, %v781
        %v814 = vmul.f32 %v558, %v782
        %v815 = vmul.f32 %v559, %v783
        %v816 = vmul.f32 %v560, %v784
        %v817 = vmul.f32 %v561, %v785
        %v818 = vmul.f32 %v562, %v786
        %v819 = vmul.f32 %v563, %v787
        %v820 = vmul.f32 %v564, %v788
        %v821 = vmul.f32 %v565, %v789
        %v822 = vmul.f32 %v566, %v790
        %v823 = vmul.f32 %v567, %v791
        %v824 = vmul.f32 %v568, %v792
        %v825 = vmul.f32 %v569, %v793
        %v826 = vmul.f32 %v570, %v794
        %v827 = vmul.f32 %v571, %v795
        %v828 = vmul.f32 %v572, %v796
        %v829 = vmul.f32 %v573, %v797
        %v830 = vmul.f32 %v574, %v798
        %v831 = vmul.f32 %v575, %v799
        %v832 = vmul.f32 %v576, %v800
        %v833 = vmul.f32 %v577, %v801
        %v834 = vmul.f32 %v578, %v802
        %v835 = vmul.f32 %v579, %v803
        %v836 = vld [vmem:[%s1] sm:$0x1]
        %v838 = vlaneseq
        %v839 = vshrl.u32 %v838, 7
        %v840 = vsub.s32 0, %v839
        %v841 = vrot.slane %v836, %v840
        %v843 = vmul.f32 %v804, %v841
        %v844 = vmul.f32 %v805, %v841
        %v845 = vmul.f32 %v806, %v841
        %v846 = vmul.f32 %v807, %v841
        %v847 = vmul.f32 %v808, %v841
        %v848 = vmul.f32 %v809, %v841
        %v849 = vmul.f32 %v810, %v841
        %v850 = vmul.f32 %v811, %v841
        %v851 = vmul.f32 %v812, %v841
        %v852 = vmul.f32 %v813, %v841
        %v853 = vmul.f32 %v814, %v841
        %v854 = vmul.f32 %v815, %v841
        %v855 = vmul.f32 %v816, %v841
        %v856 = vmul.f32 %v817, %v841
        %v857 = vmul.f32 %v818, %v841
        %v858 = vmul.f32 %v819, %v841
        %v859 = vmul.f32 %v820, %v841
        %v860 = vmul.f32 %v821, %v841
        %v861 = vmul.f32 %v822, %v841
        %v862 = vmul.f32 %v823, %v841
        %v863 = vmul.f32 %v824, %v841
        %v864 = vmul.f32 %v825, %v841
        %v865 = vmul.f32 %v826, %v841
        %v866 = vmul.f32 %v827, %v841
        %v867 = vmul.f32 %v828, %v841
        %v868 = vmul.f32 %v829, %v841
        %v869 = vmul.f32 %v830, %v841
        %v870 = vmul.f32 %v831, %v841
        %v871 = vmul.f32 %v832, %v841
        %v872 = vmul.f32 %v833, %v841
        %v873 = vmul.f32 %v834, %v841
        %v874 = vmul.f32 %v835, %v841
        %v875 = vld [vmem:[%s2] sm:$0x1]
        %v877 = vlaneseq
        %v878 = vshrl.u32 %v877, 7
        %v879 = vsub.s32 0, %v878
        %v880 = vrot.slane %v875, %v879
        %v882 = vadd.f32 %v843, %v880
        %v883 = vadd.f32 %v844, %v880
        %v884 = vadd.f32 %v845, %v880
        %v885 = vadd.f32 %v846, %v880
        %v886 = vadd.f32 %v847, %v880
        %v887 = vadd.f32 %v848, %v880
        %v888 = vadd.f32 %v849, %v880
        %v889 = vadd.f32 %v850, %v880
        %v890 = vadd.f32 %v851, %v880
        %v891 = vadd.f32 %v852, %v880
        %v892 = vadd.f32 %v853, %v880
        %v893 = vadd.f32 %v854, %v880
        %v894 = vadd.f32 %v855, %v880
        %v895 = vadd.f32 %v856, %v880
        %v896 = vadd.f32 %v857, %v880
        %v897 = vadd.f32 %v858, %v880
        %v898 = vadd.f32 %v859, %v880
        %v899 = vadd.f32 %v860, %v880
        %v900 = vadd.f32 %v861, %v880
        %v901 = vadd.f32 %v862, %v880
        %v902 = vadd.f32 %v863, %v880
        %v903 = vadd.f32 %v864, %v880
        %v904 = vadd.f32 %v865, %v880
        %v905 = vadd.f32 %v866, %v880
        %v906 = vadd.f32 %v867, %v880
        %v907 = vadd.f32 %v868, %v880
        %v908 = vadd.f32 %v869, %v880
        %v909 = vadd.f32 %v870, %v880
        %v910 = vadd.f32 %v871, %v880
        %v911 = vadd.f32 %v872, %v880
        %v912 = vadd.f32 %v873, %v880
        %v913 = vadd.f32 %v874, %v880
        %v914 = vpack.c.bf16 %v883, %v882
        %v915 = vpack.c.bf16 %v885, %v884
        %v916 = vpack.c.bf16 %v887, %v886
        %v917 = vpack.c.bf16 %v889, %v888
        %v918 = vpack.c.bf16 %v891, %v890
        %v919 = vpack.c.bf16 %v893, %v892
        %v920 = vpack.c.bf16 %v895, %v894
        %v921 = vpack.c.bf16 %v897, %v896
        %v922 = vpack.c.bf16 %v899, %v898
        %v923 = vpack.c.bf16 %v901, %v900
        %v924 = vpack.c.bf16 %v903, %v902
        %v925 = vpack.c.bf16 %v905, %v904
        %v926 = vpack.c.bf16 %v907, %v906
        %v927 = vpack.c.bf16 %v909, %v908
        %v928 = vpack.c.bf16 %v911, %v910
        %v929 = vpack.c.bf16 %v913, %v912
        %v930 = vld [vmem:[%s3] sm:$0xf]
        %v931 = vld [vmem:[%s3 + $0x4] sm:$0xf]
        %v934 = vunpack.c.l.b16 %v930
        %v935 = vunpack.c.l.b16 %v931
        %v936 = vpack.c.b16 %v935, %v934
        %v939 = vsel %vm418, %v914, 0
        %v942 = vsel %vm418, %v915, 0
        %v945 = vsel %vm418, %v916, 0
        %v948 = vsel %vm418, %v917, 0
        %v951 = vsel %vm418, %v918, 0
        %v954 = vsel %vm418, %v919, 0
        %v957 = vsel %vm418, %v920, 0
        %v960 = vsel %vm418, %v921, 0
        %v963 = vsel %vm418, %v922, 0
        %v966 = vsel %vm418, %v923, 0
        %v969 = vsel %vm418, %v924, 0
        %v972 = vsel %vm418, %v925, 0
        %v975 = vsel %vm418, %v926, 0
        %v978 = vsel %vm418, %v927, 0
        %v981 = vsel %vm418, %v928, 0
        %v984 = vsel %vm418, %v929, 0
        %986 = vmatprep.subr.bf16.mxu0 0
        %987 = vmatpush1.bf16.msra.mxu0 0
        %988 = vmatprep.subr.bf16.mxu0 0
        %989 = vmatpush1.bf16.msra.mxu0 0
        %990 = vmatprep.subr.bf16.mxu0 0
        %991 = vmatpush1.bf16.msra.mxu0 0
        %992 = vmatprep.subr.bf16.mxu0 0
        %993 = vmatpush1.bf16.msra.mxu0 0
        %994 = vmatprep.subr.bf16.mxu0 0
        %995 = vmatpush1.bf16.msra.mxu0 0
        %996 = vmatprep.subr.bf16.mxu0 0
        %997 = vmatpush1.bf16.msra.mxu0 0
        %998 = vmatprep.subr.bf16.mxu0 0
        %999 = vmatpush1.bf16.msra.mxu0 0
        %1000 = vmatprep.subr.bf16.mxu0 0
        %1001 = vmatpush1.bf16.msra.mxu0 %v936
        %1002 = vmatprep.subr.bf16.mxu0 0
        %1003 = vmatpush2.bf16.msra.mxu0 0
        %1004 = vmatprep.subr.bf16.mxu0 0
        %1005 = vmatpush2.bf16.msra.mxu0 0
        %1006 = vmatprep.subr.bf16.mxu0 0
        %1007 = vmatpush2.bf16.msra.mxu0 0
        %1008 = vmatprep.subr.bf16.mxu0 0
        %1009 = vmatpush2.bf16.msra.mxu0 0
        %1010 = vmatprep.subr.bf16.mxu0 0
        %1011 = vmatpush2.bf16.msra.mxu0 0
        %1012 = vmatprep.subr.bf16.mxu0 0
        %1013 = vmatpush2.bf16.msra.mxu0 0
        %1014 = vmatprep.subr.bf16.mxu0 0
        %1015 = vmatpush2.bf16.msra.mxu0 0
        %1016 = vmatprep.subr.bf16.mxu0 0
        %1017 = vmatpush2.bf16.msra.mxu0 0
        %1018 = vmatprep.mubr.bf16.mxu0 0
        %1019 = vmatmul.mubr.bf16.gmra.mxu0 %v939
        %v1020 = vpop.f32.mrf.mxu0
        %v1021 = vadd.f32 0.0, %v1020
        %v1022 = vpop.f32.mrf.mxu0
        %v1023 = vpop.f32.mrf.mxu0
        %v1024 = vadd.f32 0.0, %v1023
        %v1025 = vpop.f32.mrf.mxu0
        %1026 = vmatprep.mubr.bf16.mxu0 0
        %1027 = vmatmul.mubr.bf16.gmra.mxu0 %v942
        %v1028 = vpop.f32.mrf.mxu0
        %v1029 = vadd.f32 0.0, %v1028
        %v1030 = vpop.f32.mrf.mxu0
        %v1031 = vpop.f32.mrf.mxu0
        %v1032 = vadd.f32 0.0, %v1031
        %v1033 = vpop.f32.mrf.mxu0
        %1034 = vmatprep.mubr.bf16.mxu0 0
        %1035 = vmatmul.mubr.bf16.gmra.mxu0 %v945
        %v1036 = vpop.f32.mrf.mxu0
        %v1037 = vadd.f32 0.0, %v1036
        %v1038 = vpop.f32.mrf.mxu0
        %v1039 = vpop.f32.mrf.mxu0
        %v1040 = vadd.f32 0.0, %v1039
        %v1041 = vpop.f32.mrf.mxu0
        %1042 = vmatprep.mubr.bf16.mxu0 0
        %1043 = vmatmul.mubr.bf16.gmra.mxu0 %v948
        %v1044 = vpop.f32.mrf.mxu0
        %v1045 = vadd.f32 0.0, %v1044
        %v1046 = vpop.f32.mrf.mxu0
        %v1047 = vpop.f32.mrf.mxu0
        %v1048 = vadd.f32 0.0, %v1047
        %v1049 = vpop.f32.mrf.mxu0
        %1050 = vmatprep.mubr.bf16.mxu0 0
        %1051 = vmatmul.mubr.bf16.gmra.mxu0 %v951
        %v1052 = vpop.f32.mrf.mxu0
        %v1053 = vadd.f32 0.0, %v1052
        %v1054 = vpop.f32.mrf.mxu0
        %v1055 = vpop.f32.mrf.mxu0
        %v1056 = vadd.f32 0.0, %v1055
        %v1057 = vpop.f32.mrf.mxu0
        %1058 = vmatprep.mubr.bf16.mxu0 0
        %1059 = vmatmul.mubr.bf16.gmra.mxu0 %v954
        %v1060 = vpop.f32.mrf.mxu0
        %v1061 = vadd.f32 0.0, %v1060
        %v1062 = vpop.f32.mrf.mxu0
        %v1063 = vpop.f32.mrf.mxu0
        %v1064 = vadd.f32 0.0, %v1063
        %v1065 = vpop.f32.mrf.mxu0
        %1066 = vmatprep.mubr.bf16.mxu0 0
        %1067 = vmatmul.mubr.bf16.gmra.mxu0 %v957
        %v1068 = vpop.f32.mrf.mxu0
        %v1069 = vadd.f32 0.0, %v1068
        %v1070 = vpop.f32.mrf.mxu0
        %v1071 = vpop.f32.mrf.mxu0
        %v1072 = vadd.f32 0.0, %v1071
        %v1073 = vpop.f32.mrf.mxu0
        %1074 = vmatprep.mubr.bf16.mxu0 0
        %1075 = vmatmul.mubr.bf16.gmra.mxu0 %v960
        %v1076 = vpop.f32.mrf.mxu0
        %v1077 = vadd.f32 0.0, %v1076
        %v1078 = vpop.f32.mrf.mxu0
        %v1079 = vpop.f32.mrf.mxu0
        %v1080 = vadd.f32 0.0, %v1079
        %v1081 = vpop.f32.mrf.mxu0
        %1082 = vmatprep.mubr.bf16.mxu0 0
        %1083 = vmatmul.mubr.bf16.gmra.mxu0 %v963
        %v1084 = vpop.f32.mrf.mxu0
        %v1085 = vadd.f32 0.0, %v1084
        %v1086 = vpop.f32.mrf.mxu0
        %v1087 = vpop.f32.mrf.mxu0
        %v1088 = vadd.f32 0.0, %v1087
        %v1089 = vpop.f32.mrf.mxu0
        %1090 = vmatprep.mubr.bf16.mxu0 0
        %1091 = vmatmul.mubr.bf16.gmra.mxu0 %v966
        %v1092 = vpop.f32.mrf.mxu0
        %v1093 = vadd.f32 0.0, %v1092
        %v1094 = vpop.f32.mrf.mxu0
        %v1095 = vpop.f32.mrf.mxu0
        %v1096 = vadd.f32 0.0, %v1095
        %v1097 = vpop.f32.mrf.mxu0
        %1098 = vmatprep.mubr.bf16.mxu0 0
        %1099 = vmatmul.mubr.bf16.gmra.mxu0 %v969
        %v1100 = vpop.f32.mrf.mxu0
        %v1101 = vadd.f32 0.0, %v1100
        %v1102 = vpop.f32.mrf.mxu0
        %v1103 = vpop.f32.mrf.mxu0
        %v1104 = vadd.f32 0.0, %v1103
        %v1105 = vpop.f32.mrf.mxu0
        %1106 = vmatprep.mubr.bf16.mxu0 0
        %1107 = vmatmul.mubr.bf16.gmra.mxu0 %v972
        %v1108 = vpop.f32.mrf.mxu0
        %v1109 = vadd.f32 0.0, %v1108
        %v1110 = vpop.f32.mrf.mxu0
        %v1111 = vpop.f32.mrf.mxu0
        %v1112 = vadd.f32 0.0, %v1111
        %v1113 = vpop.f32.mrf.mxu0
        %1114 = vmatprep.mubr.bf16.mxu0 0
        %1115 = vmatmul.mubr.bf16.gmra.mxu0 %v975
        %v1116 = vpop.f32.mrf.mxu0
        %v1117 = vadd.f32 0.0, %v1116
        %v1118 = vpop.f32.mrf.mxu0
        %v1119 = vpop.f32.mrf.mxu0
        %v1120 = vadd.f32 0.0, %v1119
        %v1121 = vpop.f32.mrf.mxu0
        %1122 = vmatprep.mubr.bf16.mxu0 0
        %1123 = vmatmul.mubr.bf16.gmra.mxu0 %v978
        %v1124 = vpop.f32.mrf.mxu0
        %v1125 = vadd.f32 0.0, %v1124
        %v1126 = vpop.f32.mrf.mxu0
        %v1127 = vpop.f32.mrf.mxu0
        %v1128 = vadd.f32 0.0, %v1127
        %v1129 = vpop.f32.mrf.mxu0
        %1130 = vmatprep.mubr.bf16.mxu0 0
        %1131 = vmatmul.mubr.bf16.gmra.mxu0 %v981
        %v1132 = vpop.f32.mrf.mxu0
        %v1133 = vadd.f32 0.0, %v1132
        %v1134 = vpop.f32.mrf.mxu0
        %v1135 = vpop.f32.mrf.mxu0
        %v1136 = vadd.f32 0.0, %v1135
        %v1137 = vpop.f32.mrf.mxu0
        %1138 = vmatprep.mubr.bf16.mxu0 0
        %1139 = vmatmul.mubr.bf16.gmra.mxu0 %v984
        %v1140 = vpop.f32.mrf.mxu0
        %v1141 = vadd.f32 0.0, %v1140
        %v1142 = vpop.f32.mrf.mxu0
        %v1143 = vpop.f32.mrf.mxu0
        %v1144 = vadd.f32 0.0, %v1143
        %v1145 = vpop.f32.mrf.mxu0
        %1146 = vdwg.mxu0
        %v1147 = vld [vmem:[%s5] sm:$0x1]
        %v1149 = vlaneseq
        %v1150 = vshrl.u32 %v1149, 7
        %v1151 = vsub.s32 0, %v1150
        %v1152 = vrot.slane %v1147, %v1151
        %v1154 = vadd.f32 %v1152, 0.0
        %vm1187 = vcmask 1042432
        %v1188 = vrot.slane %v1021, 5
        %v1189 = vrot.slane %v1024, 5
        %v1190 = vsel %vm1187, %v1188, %v1189
        %v1191 = vrot.slane %v1029, 5
        %v1192 = vsel %vm1187, %v1189, %v1191
        %v1193 = vrot.slane %v1032, 5
        %v1194 = vsel %vm1187, %v1191, %v1193
        %v1195 = vrot.slane %v1037, 5
        %v1196 = vsel %vm1187, %v1193, %v1195
        %v1197 = vrot.slane %v1040, 5
        %v1198 = vsel %vm1187, %v1195, %v1197
        %v1199 = vrot.slane %v1045, 5
        %v1200 = vsel %vm1187, %v1197, %v1199
        %v1201 = vrot.slane %v1048, 5
        %v1202 = vsel %vm1187, %v1199, %v1201
        %v1203 = vrot.slane %v1053, 5
        %v1204 = vsel %vm1187, %v1201, %v1203
        %v1205 = vrot.slane %v1056, 5
        %v1206 = vsel %vm1187, %v1203, %v1205
        %v1207 = vrot.slane %v1061, 5
        %v1208 = vsel %vm1187, %v1205, %v1207
        %v1209 = vrot.slane %v1064, 5
        %v1210 = vsel %vm1187, %v1207, %v1209
        %v1211 = vrot.slane %v1069, 5
        %v1212 = vsel %vm1187, %v1209, %v1211
        %v1213 = vrot.slane %v1072, 5
        %v1214 = vsel %vm1187, %v1211, %v1213
        %v1215 = vrot.slane %v1077, 5
        %v1216 = vsel %vm1187, %v1213, %v1215
        %v1217 = vrot.slane %v1080, 5
        %v1218 = vsel %vm1187, %v1215, %v1217
        %v1219 = vrot.slane %v1085, 5
        %v1220 = vsel %vm1187, %v1217, %v1219
        %v1221 = vrot.slane %v1088, 5
        %v1222 = vsel %vm1187, %v1219, %v1221
        %v1223 = vrot.slane %v1093, 5
        %v1224 = vsel %vm1187, %v1221, %v1223
        %v1225 = vrot.slane %v1096, 5
        %v1226 = vsel %vm1187, %v1223, %v1225
        %v1227 = vrot.slane %v1101, 5
        %v1228 = vsel %vm1187, %v1225, %v1227
        %v1229 = vrot.slane %v1104, 5
        %v1230 = vsel %vm1187, %v1227, %v1229
        %v1231 = vrot.slane %v1109, 5
        %v1232 = vsel %vm1187, %v1229, %v1231
        %v1233 = vrot.slane %v1112, 5
        %v1234 = vsel %vm1187, %v1231, %v1233
        %v1235 = vrot.slane %v1117, 5
        %v1236 = vsel %vm1187, %v1233, %v1235
        %v1237 = vrot.slane %v1120, 5
        %v1238 = vsel %vm1187, %v1235, %v1237
        %v1239 = vrot.slane %v1125, 5
        %v1240 = vsel %vm1187, %v1237, %v1239
        %v1241 = vrot.slane %v1128, 5
        %v1242 = vsel %vm1187, %v1239, %v1241
        %v1243 = vrot.slane %v1133, 5
        %v1244 = vsel %vm1187, %v1241, %v1243
        %v1245 = vrot.slane %v1136, 5
        %v1246 = vsel %vm1187, %v1243, %v1245
        %v1247 = vrot.slane %v1141, 5
        %v1248 = vsel %vm1187, %v1245, %v1247
        %v1249 = vrot.slane %v1144, 5
        %v1250 = vsel %vm1187, %v1247, %v1249
        %v1283 = vsel %vm1187, 0.0, %v1188
        %v1284 = vld [vmem:[%s4] sm:$0x1]
        %v1285 = vlaneseq
        %v1286 = vshrl.u32 %v1285, 7
        %v1287 = vsub.s32 0, %v1286
        %v1288 = vrot.slane %v1284, %v1287
        %v1289 = vmul.f32 %v1283, %v1288
        %v1290 = vmul.f32 %v1190, %v1288
        %v1291 = vmul.f32 %v1192, %v1288
        %v1292 = vmul.f32 %v1194, %v1288
        %v1293 = vmul.f32 %v1196, %v1288
        %v1294 = vmul.f32 %v1198, %v1288
        %v1295 = vmul.f32 %v1200, %v1288
        %v1296 = vmul.f32 %v1202, %v1288
        %v1297 = vmul.f32 %v1204, %v1288
        %v1298 = vmul.f32 %v1206, %v1288
        %v1299 = vmul.f32 %v1208, %v1288
        %v1300 = vmul.f32 %v1210, %v1288
        %v1301 = vmul.f32 %v1212, %v1288
        %v1302 = vmul.f32 %v1214, %v1288
        %v1303 = vmul.f32 %v1216, %v1288
        %v1304 = vmul.f32 %v1218, %v1288
        %v1305 = vmul.f32 %v1220, %v1288
        %v1306 = vmul.f32 %v1222, %v1288
        %v1307 = vmul.f32 %v1224, %v1288
        %v1308 = vmul.f32 %v1226, %v1288
        %v1309 = vmul.f32 %v1228, %v1288
        %v1310 = vmul.f32 %v1230, %v1288
        %v1311 = vmul.f32 %v1232, %v1288
        %v1312 = vmul.f32 %v1234, %v1288
        %v1313 = vmul.f32 %v1236, %v1288
        %v1314 = vmul.f32 %v1238, %v1288
        %v1315 = vmul.f32 %v1240, %v1288
        %v1316 = vmul.f32 %v1242, %v1288
        %v1317 = vmul.f32 %v1244, %v1288
        %v1318 = vmul.f32 %v1246, %v1288
        %v1319 = vmul.f32 %v1248, %v1288
        %v1320 = vmul.f32 %v1250, %v1288
        %v1321 = vadd.f32 %v1154, %v1289
        %v1322 = vadd.f32 %v1154, %v1290
        %v1323 = vadd.f32 %v1154, %v1291
        %v1324 = vadd.f32 %v1154, %v1292
        %v1325 = vadd.f32 %v1154, %v1293
        %v1326 = vadd.f32 %v1154, %v1294
        %v1327 = vadd.f32 %v1154, %v1295
        %v1328 = vadd.f32 %v1154, %v1296
        %v1329 = vadd.f32 %v1154, %v1297
        %v1330 = vadd.f32 %v1154, %v1298
        %v1331 = vadd.f32 %v1154, %v1299
        %v1332 = vadd.f32 %v1154, %v1300
        %v1333 = vadd.f32 %v1154, %v1301
        %v1334 = vadd.f32 %v1154, %v1302
        %v1335 = vadd.f32 %v1154, %v1303
        %v1336 = vadd.f32 %v1154, %v1304
        %v1337 = vadd.f32 %v1154, %v1305
        %v1338 = vadd.f32 %v1154, %v1306
        %v1339 = vadd.f32 %v1154, %v1307
        %v1340 = vadd.f32 %v1154, %v1308
        %v1341 = vadd.f32 %v1154, %v1309
        %v1342 = vadd.f32 %v1154, %v1310
        %v1343 = vadd.f32 %v1154, %v1311
        %v1344 = vadd.f32 %v1154, %v1312
        %v1345 = vadd.f32 %v1154, %v1313
        %v1346 = vadd.f32 %v1154, %v1314
        %v1347 = vadd.f32 %v1154, %v1315
        %v1348 = vadd.f32 %v1154, %v1316
        %v1349 = vadd.f32 %v1154, %v1317
        %v1350 = vadd.f32 %v1154, %v1318
        %v1351 = vadd.f32 %v1154, %v1319
        %v1352 = vadd.f32 %v1154, %v1320
        %vm1353 = vcmask 1041408
        %v1354 = vrot.slane %v1021, 6
        %v1355 = vrot.slane %v1024, 6
        %v1356 = vsel %vm1353, %v1354, %v1355
        %v1357 = vrot.slane %v1029, 6
        %v1358 = vsel %vm1353, %v1355, %v1357
        %v1359 = vrot.slane %v1032, 6
        %v1360 = vsel %vm1353, %v1357, %v1359
        %v1361 = vrot.slane %v1037, 6
        %v1362 = vsel %vm1353, %v1359, %v1361
        %v1363 = vrot.slane %v1040, 6
        %v1364 = vsel %vm1353, %v1361, %v1363
        %v1365 = vrot.slane %v1045, 6
        %v1366 = vsel %vm1353, %v1363, %v1365
        %v1367 = vrot.slane %v1048, 6
        %v1368 = vsel %vm1353, %v1365, %v1367
        %v1369 = vrot.slane %v1053, 6
        %v1370 = vsel %vm1353, %v1367, %v1369
        %v1371 = vrot.slane %v1056, 6
        %v1372 = vsel %vm1353, %v1369, %v1371
        %v1373 = vrot.slane %v1061, 6
        %v1374 = vsel %vm1353, %v1371, %v1373
        %v1375 = vrot.slane %v1064, 6
        %v1376 = vsel %vm1353, %v1373, %v1375
        %v1377 = vrot.slane %v1069, 6
        %v1378 = vsel %vm1353, %v1375, %v1377
        %v1379 = vrot.slane %v1072, 6
        %v1380 = vsel %vm1353, %v1377, %v1379
        %v1381 = vrot.slane %v1077, 6
        %v1382 = vsel %vm1353, %v1379, %v1381
        %v1383 = vrot.slane %v1080, 6
        %v1384 = vsel %vm1353, %v1381, %v1383
        %v1385 = vrot.slane %v1085, 6
        %v1386 = vsel %vm1353, %v1383, %v1385
        %v1387 = vrot.slane %v1088, 6
        %v1388 = vsel %vm1353, %v1385, %v1387
        %v1389 = vrot.slane %v1093, 6
        %v1390 = vsel %vm1353, %v1387, %v1389
        %v1391 = vrot.slane %v1096, 6
        %v1392 = vsel %vm1353, %v1389, %v1391
        %v1393 = vrot.slane %v1101, 6
        %v1394 = vsel %vm1353, %v1391, %v1393
        %v1395 = vrot.slane %v1104, 6
        %v1396 = vsel %vm1353, %v1393, %v1395
        %v1397 = vrot.slane %v1109, 6
        %v1398 = vsel %vm1353, %v1395, %v1397
        %v1399 = vrot.slane %v1112, 6
        %v1400 = vsel %vm1353, %v1397, %v1399
        %v1401 = vrot.slane %v1117, 6
        %v1402 = vsel %vm1353, %v1399, %v1401
        %v1403 = vrot.slane %v1120, 6
        %v1404 = vsel %vm1353, %v1401, %v1403
        %v1405 = vrot.slane %v1125, 6
        %v1406 = vsel %vm1353, %v1403, %v1405
        %v1407 = vrot.slane %v1128, 6
        %v1408 = vsel %vm1353, %v1405, %v1407
        %v1409 = vrot.slane %v1133, 6
        %v1410 = vsel %vm1353, %v1407, %v1409
        %v1411 = vrot.slane %v1136, 6
        %v1412 = vsel %vm1353, %v1409, %v1411
        %v1413 = vrot.slane %v1141, 6
        %v1414 = vsel %vm1353, %v1411, %v1413
        %v1415 = vrot.slane %v1144, 6
        %v1416 = vsel %vm1353, %v1413, %v1415
        %v1449 = vsel %vm1353, 0.0, %v1354
        %v1450 = vld [vmem:[%s4 + $0x1] sm:$0x1]
        %v1451 = vlaneseq
        %v1452 = vshrl.u32 %v1451, 7
        %v1453 = vsub.s32 0, %v1452
        %v1454 = vrot.slane %v1450, %v1453
        %v1455 = vmul.f32 %v1449, %v1454
        %v1456 = vmul.f32 %v1356, %v1454
        %v1457 = vmul.f32 %v1358, %v1454
        %v1458 = vmul.f32 %v1360, %v1454
        %v1459 = vmul.f32 %v1362, %v1454
        %v1460 = vmul.f32 %v1364, %v1454
        %v1461 = vmul.f32 %v1366, %v1454
        %v1462 = vmul.f32 %v1368, %v1454
        %v1463 = vmul.f32 %v1370, %v1454
        %v1464 = vmul.f32 %v1372, %v1454
        %v1465 = vmul.f32 %v1374, %v1454
        %v1466 = vmul.f32 %v1376, %v1454
        %v1467 = vmul.f32 %v1378, %v1454
        %v1468 = vmul.f32 %v1380, %v1454
        %v1469 = vmul.f32 %v1382, %v1454
        %v1470 = vmul.f32 %v1384, %v1454
        %v1471 = vmul.f32 %v1386, %v1454
        %v1472 = vmul.f32 %v1388, %v1454
        %v1473 = vmul.f32 %v1390, %v1454
        %v1474 = vmul.f32 %v1392, %v1454
        %v1475 = vmul.f32 %v1394, %v1454
        %v1476 = vmul.f32 %v1396, %v1454
        %v1477 = vmul.f32 %v1398, %v1454
        %v1478 = vmul.f32 %v1400, %v1454
        %v1479 = vmul.f32 %v1402, %v1454
        %v1480 = vmul.f32 %v1404, %v1454
        %v1481 = vmul.f32 %v1406, %v1454
        %v1482 = vmul.f32 %v1408, %v1454
        %v1483 = vmul.f32 %v1410, %v1454
        %v1484 = vmul.f32 %v1412, %v1454
        %v1485 = vmul.f32 %v1414, %v1454
        %v1486 = vmul.f32 %v1416, %v1454
        %v1487 = vadd.f32 %v1321, %v1455
        %v1488 = vadd.f32 %v1322, %v1456
        %v1489 = vadd.f32 %v1323, %v1457
        %v1490 = vadd.f32 %v1324, %v1458
        %v1491 = vadd.f32 %v1325, %v1459
        %v1492 = vadd.f32 %v1326, %v1460
        %v1493 = vadd.f32 %v1327, %v1461
        %v1494 = vadd.f32 %v1328, %v1462
        %v1495 = vadd.f32 %v1329, %v1463
        %v1496 = vadd.f32 %v1330, %v1464
        %v1497 = vadd.f32 %v1331, %v1465
        %v1498 = vadd.f32 %v1332, %v1466
        %v1499 = vadd.f32 %v1333, %v1467
        %v1500 = vadd.f32 %v1334, %v1468
        %v1501 = vadd.f32 %v1335, %v1469
        %v1502 = vadd.f32 %v1336, %v1470
        %v1503 = vadd.f32 %v1337, %v1471
        %v1504 = vadd.f32 %v1338, %v1472
        %v1505 = vadd.f32 %v1339, %v1473
        %v1506 = vadd.f32 %v1340, %v1474
        %v1507 = vadd.f32 %v1341, %v1475
        %v1508 = vadd.f32 %v1342, %v1476
        %v1509 = vadd.f32 %v1343, %v1477
        %v1510 = vadd.f32 %v1344, %v1478
        %v1511 = vadd.f32 %v1345, %v1479
        %v1512 = vadd.f32 %v1346, %v1480
        %v1513 = vadd.f32 %v1347, %v1481
        %v1514 = vadd.f32 %v1348, %v1482
        %v1515 = vadd.f32 %v1349, %v1483
        %v1516 = vadd.f32 %v1350, %v1484
        %v1517 = vadd.f32 %v1351, %v1485
        %v1518 = vadd.f32 %v1352, %v1486
        %vm1519 = vcmask 1040384
        %v1520 = vrot.slane %v1021, 7
        %v1521 = vrot.slane %v1024, 7
        %v1522 = vsel %vm1519, %v1520, %v1521
        %v1523 = vrot.slane %v1029, 7
        %v1524 = vsel %vm1519, %v1521, %v1523
        %v1525 = vrot.slane %v1032, 7
        %v1526 = vsel %vm1519, %v1523, %v1525
        %v1527 = vrot.slane %v1037, 7
        %v1528 = vsel %vm1519, %v1525, %v1527
        %v1529 = vrot.slane %v1040, 7
        %v1530 = vsel %vm1519, %v1527, %v1529
        %v1531 = vrot.slane %v1045, 7
        %v1532 = vsel %vm1519, %v1529, %v1531
        %v1533 = vrot.slane %v1048, 7
        %v1534 = vsel %vm1519, %v1531, %v1533
        %v1535 = vrot.slane %v1053, 7
        %v1536 = vsel %vm1519, %v1533, %v1535
        %v1537 = vrot.slane %v1056, 7
        %v1538 = vsel %vm1519, %v1535, %v1537
        %v1539 = vrot.slane %v1061, 7
        %v1540 = vsel %vm1519, %v1537, %v1539
        %v1541 = vrot.slane %v1064, 7
        %v1542 = vsel %vm1519, %v1539, %v1541
        %v1543 = vrot.slane %v1069, 7
        %v1544 = vsel %vm1519, %v1541, %v1543
        %v1545 = vrot.slane %v1072, 7
        %v1546 = vsel %vm1519, %v1543, %v1545
        %v1547 = vrot.slane %v1077, 7
        %v1548 = vsel %vm1519, %v1545, %v1547
        %v1549 = vrot.slane %v1080, 7
        %v1550 = vsel %vm1519, %v1547, %v1549
        %v1551 = vrot.slane %v1085, 7
        %v1552 = vsel %vm1519, %v1549, %v1551
        %v1553 = vrot.slane %v1088, 7
        %v1554 = vsel %vm1519, %v1551, %v1553
        %v1555 = vrot.slane %v1093, 7
        %v1556 = vsel %vm1519, %v1553, %v1555
        %v1557 = vrot.slane %v1096, 7
        %v1558 = vsel %vm1519, %v1555, %v1557
        %v1559 = vrot.slane %v1101, 7
        %v1560 = vsel %vm1519, %v1557, %v1559
        %v1561 = vrot.slane %v1104, 7
        %v1562 = vsel %vm1519, %v1559, %v1561
        %v1563 = vrot.slane %v1109, 7
        %v1564 = vsel %vm1519, %v1561, %v1563
        %v1565 = vrot.slane %v1112, 7
        %v1566 = vsel %vm1519, %v1563, %v1565
        %v1567 = vrot.slane %v1117, 7
        %v1568 = vsel %vm1519, %v1565, %v1567
        %v1569 = vrot.slane %v1120, 7
        %v1570 = vsel %vm1519, %v1567, %v1569
        %v1571 = vrot.slane %v1125, 7
        %v1572 = vsel %vm1519, %v1569, %v1571
        %v1573 = vrot.slane %v1128, 7
        %v1574 = vsel %vm1519, %v1571, %v1573
        %v1575 = vrot.slane %v1133, 7
        %v1576 = vsel %vm1519, %v1573, %v1575
        %v1577 = vrot.slane %v1136, 7
        %v1578 = vsel %vm1519, %v1575, %v1577
        %v1579 = vrot.slane %v1141, 7
        %v1580 = vsel %vm1519, %v1577, %v1579
        %v1581 = vrot.slane %v1144, 7
        %v1582 = vsel %vm1519, %v1579, %v1581
        %v1615 = vsel %vm1519, 0.0, %v1520
        %v1616 = vld [vmem:[%s4 + $0x2] sm:$0x1]
        %v1617 = vlaneseq
        %v1618 = vshrl.u32 %v1617, 7
        %v1619 = vsub.s32 0, %v1618
        %v1620 = vrot.slane %v1616, %v1619
        %v1621 = vmul.f32 %v1615, %v1620
        %v1622 = vmul.f32 %v1522, %v1620
        %v1623 = vmul.f32 %v1524, %v1620
        %v1624 = vmul.f32 %v1526, %v1620
        %v1625 = vmul.f32 %v1528, %v1620
        %v1626 = vmul.f32 %v1530, %v1620
        %v1627 = vmul.f32 %v1532, %v1620
        %v1628 = vmul.f32 %v1534, %v1620
        %v1629 = vmul.f32 %v1536, %v1620
        %v1630 = vmul.f32 %v1538, %v1620
        %v1631 = vmul.f32 %v1540, %v1620
        %v1632 = vmul.f32 %v1542, %v1620
        %v1633 = vmul.f32 %v1544, %v1620
        %v1634 = vmul.f32 %v1546, %v1620
        %v1635 = vmul.f32 %v1548, %v1620
        %v1636 = vmul.f32 %v1550, %v1620
        %v1637 = vmul.f32 %v1552, %v1620
        %v1638 = vmul.f32 %v1554, %v1620
        %v1639 = vmul.f32 %v1556, %v1620
        %v1640 = vmul.f32 %v1558, %v1620
        %v1641 = vmul.f32 %v1560, %v1620
        %v1642 = vmul.f32 %v1562, %v1620
        %v1643 = vmul.f32 %v1564, %v1620
        %v1644 = vmul.f32 %v1566, %v1620
        %v1645 = vmul.f32 %v1568, %v1620
        %v1646 = vmul.f32 %v1570, %v1620
        %v1647 = vmul.f32 %v1572, %v1620
        %v1648 = vmul.f32 %v1574, %v1620
        %v1649 = vmul.f32 %v1576, %v1620
        %v1650 = vmul.f32 %v1578, %v1620
        %v1651 = vmul.f32 %v1580, %v1620
        %v1652 = vmul.f32 %v1582, %v1620
        %v1653 = vadd.f32 %v1487, %v1621
        %v1654 = vadd.f32 %v1488, %v1622
        %v1655 = vadd.f32 %v1489, %v1623
        %v1656 = vadd.f32 %v1490, %v1624
        %v1657 = vadd.f32 %v1491, %v1625
        %v1658 = vadd.f32 %v1492, %v1626
        %v1659 = vadd.f32 %v1493, %v1627
        %v1660 = vadd.f32 %v1494, %v1628
        %v1661 = vadd.f32 %v1495, %v1629
        %v1662 = vadd.f32 %v1496, %v1630
        %v1663 = vadd.f32 %v1497, %v1631
        %v1664 = vadd.f32 %v1498, %v1632
        %v1665 = vadd.f32 %v1499, %v1633
        %v1666 = vadd.f32 %v1500, %v1634
        %v1667 = vadd.f32 %v1501, %v1635
        %v1668 = vadd.f32 %v1502, %v1636
        %v1669 = vadd.f32 %v1503, %v1637
        %v1670 = vadd.f32 %v1504, %v1638
        %v1671 = vadd.f32 %v1505, %v1639
        %v1672 = vadd.f32 %v1506, %v1640
        %v1673 = vadd.f32 %v1507, %v1641
        %v1674 = vadd.f32 %v1508, %v1642
        %v1675 = vadd.f32 %v1509, %v1643
        %v1676 = vadd.f32 %v1510, %v1644
        %v1677 = vadd.f32 %v1511, %v1645
        %v1678 = vadd.f32 %v1512, %v1646
        %v1679 = vadd.f32 %v1513, %v1647
        %v1680 = vadd.f32 %v1514, %v1648
        %v1681 = vadd.f32 %v1515, %v1649
        %v1682 = vadd.f32 %v1516, %v1650
        %v1683 = vadd.f32 %v1517, %v1651
        %v1684 = vadd.f32 %v1518, %v1652
        %v1685 = vld [vmem:[%s4 + $0x3] sm:$0x1]
        %v1686 = vlaneseq
        %v1687 = vshrl.u32 %v1686, 7
        %v1688 = vsub.s32 0, %v1687
        %v1689 = vrot.slane %v1685, %v1688
        %v1690 = vmul.f32 %v1021, %v1689
        %v1691 = vmul.f32 %v1024, %v1689
        %v1692 = vmul.f32 %v1029, %v1689
        %v1693 = vmul.f32 %v1032, %v1689
        %v1694 = vmul.f32 %v1037, %v1689
        %v1695 = vmul.f32 %v1040, %v1689
        %v1696 = vmul.f32 %v1045, %v1689
        %v1697 = vmul.f32 %v1048, %v1689
        %v1698 = vmul.f32 %v1053, %v1689
        %v1699 = vmul.f32 %v1056, %v1689
        %v1700 = vmul.f32 %v1061, %v1689
        %v1701 = vmul.f32 %v1064, %v1689
        %v1702 = vmul.f32 %v1069, %v1689
        %v1703 = vmul.f32 %v1072, %v1689
        %v1704 = vmul.f32 %v1077, %v1689
        %v1705 = vmul.f32 %v1080, %v1689
        %v1706 = vmul.f32 %v1085, %v1689
        %v1707 = vmul.f32 %v1088, %v1689
        %v1708 = vmul.f32 %v1093, %v1689
        %v1709 = vmul.f32 %v1096, %v1689
        %v1710 = vmul.f32 %v1101, %v1689
        %v1711 = vmul.f32 %v1104, %v1689
        %v1712 = vmul.f32 %v1109, %v1689
        %v1713 = vmul.f32 %v1112, %v1689
        %v1714 = vmul.f32 %v1117, %v1689
        %v1715 = vmul.f32 %v1120, %v1689
        %v1716 = vmul.f32 %v1125, %v1689
        %v1717 = vmul.f32 %v1128, %v1689
        %v1718 = vmul.f32 %v1133, %v1689
        %v1719 = vmul.f32 %v1136, %v1689
        %v1720 = vmul.f32 %v1141, %v1689
        %v1721 = vmul.f32 %v1144, %v1689
        %v1722 = vadd.f32 %v1653, %v1690
        %v1723 = vadd.f32 %v1654, %v1691
        %v1724 = vadd.f32 %v1655, %v1692
        %v1725 = vadd.f32 %v1656, %v1693
        %v1726 = vadd.f32 %v1657, %v1694
        %v1727 = vadd.f32 %v1658, %v1695
        %v1728 = vadd.f32 %v1659, %v1696
        %v1729 = vadd.f32 %v1660, %v1697
        %v1730 = vadd.f32 %v1661, %v1698
        %v1731 = vadd.f32 %v1662, %v1699
        %v1732 = vadd.f32 %v1663, %v1700
        %v1733 = vadd.f32 %v1664, %v1701
        %v1734 = vadd.f32 %v1665, %v1702
        %v1735 = vadd.f32 %v1666, %v1703
        %v1736 = vadd.f32 %v1667, %v1704
        %v1737 = vadd.f32 %v1668, %v1705
        %v1738 = vadd.f32 %v1669, %v1706
        %v1739 = vadd.f32 %v1670, %v1707
        %v1740 = vadd.f32 %v1671, %v1708
        %v1741 = vadd.f32 %v1672, %v1709
        %v1742 = vadd.f32 %v1673, %v1710
        %v1743 = vadd.f32 %v1674, %v1711
        %v1744 = vadd.f32 %v1675, %v1712
        %v1745 = vadd.f32 %v1676, %v1713
        %v1746 = vadd.f32 %v1677, %v1714
        %v1747 = vadd.f32 %v1678, %v1715
        %v1748 = vadd.f32 %v1679, %v1716
        %v1749 = vadd.f32 %v1680, %v1717
        %v1750 = vadd.f32 %v1681, %v1718
        %v1751 = vadd.f32 %v1682, %v1719
        %v1752 = vadd.f32 %v1683, %v1720
        %v1753 = vadd.f32 %v1684, %v1721
        %v1754 = vsub.f32 0.0, %v1722
        %v1755 = vsub.f32 0.0, %v1723
        %v1756 = vsub.f32 0.0, %v1724
        %v1757 = vsub.f32 0.0, %v1725
        %v1758 = vsub.f32 0.0, %v1726
        %v1759 = vsub.f32 0.0, %v1727
        %v1760 = vsub.f32 0.0, %v1728
        %v1761 = vsub.f32 0.0, %v1729
        %v1762 = vsub.f32 0.0, %v1730
        %v1763 = vsub.f32 0.0, %v1731
        %v1764 = vsub.f32 0.0, %v1732
        %v1765 = vsub.f32 0.0, %v1733
        %v1766 = vsub.f32 0.0, %v1734
        %v1767 = vsub.f32 0.0, %v1735
        %v1768 = vsub.f32 0.0, %v1736
        %v1769 = vsub.f32 0.0, %v1737
        %v1770 = vsub.f32 0.0, %v1738
        %v1771 = vsub.f32 0.0, %v1739
        %v1772 = vsub.f32 0.0, %v1740
        %v1773 = vsub.f32 0.0, %v1741
        %v1774 = vsub.f32 0.0, %v1742
        %v1775 = vsub.f32 0.0, %v1743
        %v1776 = vsub.f32 0.0, %v1744
        %v1777 = vsub.f32 0.0, %v1745
        %v1778 = vsub.f32 0.0, %v1746
        %v1779 = vsub.f32 0.0, %v1747
        %v1780 = vsub.f32 0.0, %v1748
        %v1781 = vsub.f32 0.0, %v1749
        %v1782 = vsub.f32 0.0, %v1750
        %v1783 = vsub.f32 0.0, %v1751
        %v1784 = vsub.f32 0.0, %v1752
        %v1785 = vsub.f32 0.0, %v1753
        %v1786 = vmul.f32 %v1754, 1.442695
        %v1787 = vpow.pop %v1786
        %v1788 = vmul.f32 %v1755, 1.442695
        %v1789 = vpow.pop %v1788
        %v1790 = vmul.f32 %v1756, 1.442695
        %v1791 = vpow.pop %v1790
        %v1792 = vmul.f32 %v1757, 1.442695
        %v1793 = vpow.pop %v1792
        %v1794 = vmul.f32 %v1758, 1.442695
        %v1795 = vpow.pop %v1794
        %v1796 = vmul.f32 %v1759, 1.442695
        %v1797 = vpow.pop %v1796
        %v1798 = vmul.f32 %v1760, 1.442695
        %v1799 = vpow.pop %v1798
        %v1800 = vmul.f32 %v1761, 1.442695
        %v1801 = vpow.pop %v1800
        %v1802 = vmul.f32 %v1762, 1.442695
        %v1803 = vpow.pop %v1802
        %v1804 = vmul.f32 %v1763, 1.442695
        %v1805 = vpow.pop %v1804
        %v1806 = vmul.f32 %v1764, 1.442695
        %v1807 = vpow.pop %v1806
        %v1808 = vmul.f32 %v1765, 1.442695
        %v1809 = vpow.pop %v1808
        %v1810 = vmul.f32 %v1766, 1.442695
        %v1811 = vpow.pop %v1810
        %v1812 = vmul.f32 %v1767, 1.442695
        %v1813 = vpow.pop %v1812
        %v1814 = vmul.f32 %v1768, 1.442695
        %v1815 = vpow.pop %v1814
        %v1816 = vmul.f32 %v1769, 1.442695
        %v1817 = vpow.pop %v1816
        %v1818 = vmul.f32 %v1770, 1.442695
        %v1819 = vpow.pop %v1818
        %v1820 = vmul.f32 %v1771, 1.442695
        %v1821 = vpow.pop %v1820
        %v1822 = vmul.f32 %v1772, 1.442695
        %v1823 = vpow.pop %v1822
        %v1824 = vmul.f32 %v1773, 1.442695
        %v1825 = vpow.pop %v1824
        %v1826 = vmul.f32 %v1774, 1.442695
        %v1827 = vpow.pop %v1826
        %v1828 = vmul.f32 %v1775, 1.442695
        %v1829 = vpow.pop %v1828
        %v1830 = vmul.f32 %v1776, 1.442695
        %v1831 = vpow.pop %v1830
        %v1832 = vmul.f32 %v1777, 1.442695
        %v1833 = vpow.pop %v1832
        %v1834 = vmul.f32 %v1778, 1.442695
        %v1835 = vpow.pop %v1834
        %v1836 = vmul.f32 %v1779, 1.442695
        %v1837 = vpow.pop %v1836
        %v1838 = vmul.f32 %v1780, 1.442695
        %v1839 = vpow.pop %v1838
        %v1840 = vmul.f32 %v1781, 1.442695
        %v1841 = vpow.pop %v1840
        %v1842 = vmul.f32 %v1782, 1.442695
        %v1843 = vpow.pop %v1842
        %v1844 = vmul.f32 %v1783, 1.442695
        %v1845 = vpow.pop %v1844
        %v1846 = vmul.f32 %v1784, 1.442695
        %v1847 = vpow.pop %v1846
        %v1848 = vmul.f32 %v1785, 1.442695
        %v1849 = vpow.pop %v1848
        %v1850 = vadd.f32 %v1787, 1.0
        %v1851 = vadd.f32 %v1789, 1.0
        %v1852 = vadd.f32 %v1791, 1.0
        %v1853 = vadd.f32 %v1793, 1.0
        %v1854 = vadd.f32 %v1795, 1.0
        %v1855 = vadd.f32 %v1797, 1.0
        %v1856 = vadd.f32 %v1799, 1.0
        %v1857 = vadd.f32 %v1801, 1.0
        %v1858 = vadd.f32 %v1803, 1.0
        %v1859 = vadd.f32 %v1805, 1.0
        %v1860 = vadd.f32 %v1807, 1.0
        %v1861 = vadd.f32 %v1809, 1.0
        %v1862 = vadd.f32 %v1811, 1.0
        %v1863 = vadd.f32 %v1813, 1.0
        %v1864 = vadd.f32 %v1815, 1.0
        %v1865 = vadd.f32 %v1817, 1.0
        %v1866 = vadd.f32 %v1819, 1.0
        %v1867 = vadd.f32 %v1821, 1.0
        %v1868 = vadd.f32 %v1823, 1.0
        %v1869 = vadd.f32 %v1825, 1.0
        %v1870 = vadd.f32 %v1827, 1.0
        %v1871 = vadd.f32 %v1829, 1.0
        %v1872 = vadd.f32 %v1831, 1.0
        %v1873 = vadd.f32 %v1833, 1.0
        %v1874 = vadd.f32 %v1835, 1.0
        %v1875 = vadd.f32 %v1837, 1.0
        %v1876 = vadd.f32 %v1839, 1.0
        %v1877 = vadd.f32 %v1841, 1.0
        %v1878 = vadd.f32 %v1843, 1.0
        %v1879 = vadd.f32 %v1845, 1.0
        %v1880 = vadd.f32 %v1847, 1.0
        %v1881 = vadd.f32 %v1849, 1.0
        %v1882 = vrcp.pop %v1850
        %v1883 = vrcp.pop %v1851
        %v1884 = vrcp.pop %v1852
        %v1885 = vrcp.pop %v1853
        %v1886 = vrcp.pop %v1854
        %v1887 = vrcp.pop %v1855
        %v1888 = vrcp.pop %v1856
        %v1889 = vrcp.pop %v1857
        %v1890 = vrcp.pop %v1858
        %v1891 = vrcp.pop %v1859
        %v1892 = vrcp.pop %v1860
        %v1893 = vrcp.pop %v1861
        %v1894 = vrcp.pop %v1862
        %v1895 = vrcp.pop %v1863
        %v1896 = vrcp.pop %v1864
        %v1897 = vrcp.pop %v1865
        %v1898 = vrcp.pop %v1866
        %v1899 = vrcp.pop %v1867
        %v1900 = vrcp.pop %v1868
        %v1901 = vrcp.pop %v1869
        %v1902 = vrcp.pop %v1870
        %v1903 = vrcp.pop %v1871
        %v1904 = vrcp.pop %v1872
        %v1905 = vrcp.pop %v1873
        %v1906 = vrcp.pop %v1874
        %v1907 = vrcp.pop %v1875
        %v1908 = vrcp.pop %v1876
        %v1909 = vrcp.pop %v1877
        %v1910 = vrcp.pop %v1878
        %v1911 = vrcp.pop %v1879
        %v1912 = vrcp.pop %v1880
        %v1913 = vrcp.pop %v1881
        %v1914 = vmul.f32 %v1722, %v1882
        %v1915 = vmul.f32 %v1723, %v1883
        %v1916 = vmul.f32 %v1724, %v1884
        %v1917 = vmul.f32 %v1725, %v1885
        %v1918 = vmul.f32 %v1726, %v1886
        %v1919 = vmul.f32 %v1727, %v1887
        %v1920 = vmul.f32 %v1728, %v1888
        %v1921 = vmul.f32 %v1729, %v1889
        %v1922 = vmul.f32 %v1730, %v1890
        %v1923 = vmul.f32 %v1731, %v1891
        %v1924 = vmul.f32 %v1732, %v1892
        %v1925 = vmul.f32 %v1733, %v1893
        %v1926 = vmul.f32 %v1734, %v1894
        %v1927 = vmul.f32 %v1735, %v1895
        %v1928 = vmul.f32 %v1736, %v1896
        %v1929 = vmul.f32 %v1737, %v1897
        %v1930 = vmul.f32 %v1738, %v1898
        %v1931 = vmul.f32 %v1739, %v1899
        %v1932 = vmul.f32 %v1740, %v1900
        %v1933 = vmul.f32 %v1741, %v1901
        %v1934 = vmul.f32 %v1742, %v1902
        %v1935 = vmul.f32 %v1743, %v1903
        %v1936 = vmul.f32 %v1744, %v1904
        %v1937 = vmul.f32 %v1745, %v1905
        %v1938 = vmul.f32 %v1746, %v1906
        %v1939 = vmul.f32 %v1747, %v1907
        %v1940 = vmul.f32 %v1748, %v1908
        %v1941 = vmul.f32 %v1749, %v1909
        %v1942 = vmul.f32 %v1750, %v1910
        %v1943 = vmul.f32 %v1751, %v1911
        %v1944 = vmul.f32 %v1752, %v1912
        %v1945 = vmul.f32 %v1753, %v1913
        %v1946 = vpack.c.bf16 %v1915, %v1914
        %v1947 = vpack.c.bf16 %v1917, %v1916
        %v1948 = vpack.c.bf16 %v1919, %v1918
        %v1949 = vpack.c.bf16 %v1921, %v1920
        %v1950 = vpack.c.bf16 %v1923, %v1922
        %v1951 = vpack.c.bf16 %v1925, %v1924
        %v1952 = vpack.c.bf16 %v1927, %v1926
        %v1953 = vpack.c.bf16 %v1929, %v1928
        %v1954 = vpack.c.bf16 %v1931, %v1930
        %v1955 = vpack.c.bf16 %v1933, %v1932
        %v1956 = vpack.c.bf16 %v1935, %v1934
        %v1957 = vpack.c.bf16 %v1937, %v1936
        %v1958 = vpack.c.bf16 %v1939, %v1938
        %v1959 = vpack.c.bf16 %v1941, %v1940
        %v1960 = vpack.c.bf16 %v1943, %v1942
        %v1961 = vpack.c.bf16 %v1945, %v1944
        %v1962 = vld [vmem:[%s6] sm:$0xf]
        %v1963 = vld [vmem:[%s6 + $0x4] sm:$0xf]
        %v1964 = vld [vmem:[%s6 + $0x8] sm:$0xf]
        %v1965 = vld [vmem:[%s6 + $0xc] sm:$0xf]
        %v1970 = vunpack.c.l.b16 %v1962
        %v1971 = vunpack.c.l.b16 %v1963
        %v1972 = vunpack.c.l.b16 %v1964
        %v1973 = vunpack.c.l.b16 %v1965
        %v1974 = vpack.c.b16 %v1971, %v1970
        %v1975 = vpack.c.b16 %v1973, %v1972
        %vm1978 = vcmask 261120
        %v1980 = vsel %vm1978, %v1946, 0
        %v1983 = vsel %vm1978, %v1947, 0
        %v1986 = vsel %vm1978, %v1948, 0
        %v1989 = vsel %vm1978, %v1949, 0
        %v1992 = vsel %vm1978, %v1950, 0
        %v1995 = vsel %vm1978, %v1951, 0
        %v1998 = vsel %vm1978, %v1952, 0
        %v2001 = vsel %vm1978, %v1953, 0
        %v2004 = vsel %vm1978, %v1954, 0
        %v2007 = vsel %vm1978, %v1955, 0
        %v2010 = vsel %vm1978, %v1956, 0
        %v2013 = vsel %vm1978, %v1957, 0
        %v2016 = vsel %vm1978, %v1958, 0
        %v2019 = vsel %vm1978, %v1959, 0
        %v2022 = vsel %vm1978, %v1960, 0
        %v2025 = vsel %vm1978, %v1961, 0
        %2027 = vmatprep.subr.bf16.mxu0 0
        %2028 = vmatpush1.bf16.msra.mxu0 0
        %2029 = vmatprep.subr.bf16.mxu0 0
        %2030 = vmatpush1.bf16.msra.mxu0 0
        %2031 = vmatprep.subr.bf16.mxu0 0
        %2032 = vmatpush1.bf16.msra.mxu0 0
        %2033 = vmatprep.subr.bf16.mxu0 0
        %2034 = vmatpush1.bf16.msra.mxu0 0
        %2035 = vmatprep.subr.bf16.mxu0 0
        %2036 = vmatpush1.bf16.msra.mxu0 0
        %2037 = vmatprep.subr.bf16.mxu0 0
        %2038 = vmatpush1.bf16.msra.mxu0 0
        %2039 = vmatprep.subr.bf16.mxu0 0
        %2040 = vmatpush1.bf16.msra.mxu0 %v1975
        %2041 = vmatprep.subr.bf16.mxu0 0
        %2042 = vmatpush1.bf16.msra.mxu0 %v1974
        %2043 = vmatprep.subr.bf16.mxu0 0
        %2044 = vmatpush2.bf16.msra.mxu0 0
        %2045 = vmatprep.subr.bf16.mxu0 0
        %2046 = vmatpush2.bf16.msra.mxu0 0
        %2047 = vmatprep.subr.bf16.mxu0 0
        %2048 = vmatpush2.bf16.msra.mxu0 0
        %2049 = vmatprep.subr.bf16.mxu0 0
        %2050 = vmatpush2.bf16.msra.mxu0 0
        %2051 = vmatprep.subr.bf16.mxu0 0
        %2052 = vmatpush2.bf16.msra.mxu0 0
        %2053 = vmatprep.subr.bf16.mxu0 0
        %2054 = vmatpush2.bf16.msra.mxu0 0
        %2055 = vmatprep.subr.bf16.mxu0 0
        %2056 = vmatpush2.bf16.msra.mxu0 0
        %2057 = vmatprep.subr.bf16.mxu0 0
        %2058 = vmatpush2.bf16.msra.mxu0 0
        %2059 = vmatprep.mubr.bf16.mxu0 0
        %2060 = vmatmul.mubr.bf16.gmra.mxu0 %v1980
        %v2061 = vpop.f32.mrf.mxu0
        %v2062 = vadd.f32 0.0, %v2061
        %v2063 = vpop.f32.mrf.mxu0
        %v2064 = vpop.f32.mrf.mxu0
        %v2065 = vadd.f32 0.0, %v2064
        %v2066 = vpop.f32.mrf.mxu0
        %2067 = vmatprep.mubr.bf16.mxu0 0
        %2068 = vmatmul.mubr.bf16.gmra.mxu0 %v1983
        %v2069 = vpop.f32.mrf.mxu0
        %v2070 = vadd.f32 0.0, %v2069
        %v2071 = vpop.f32.mrf.mxu0
        %v2072 = vpop.f32.mrf.mxu0
        %v2073 = vadd.f32 0.0, %v2072
        %v2074 = vpop.f32.mrf.mxu0
        %2075 = vmatprep.mubr.bf16.mxu0 0
        %2076 = vmatmul.mubr.bf16.gmra.mxu0 %v1986
        %v2077 = vpop.f32.mrf.mxu0
        %v2078 = vadd.f32 0.0, %v2077
        %v2079 = vpop.f32.mrf.mxu0
        %v2080 = vpop.f32.mrf.mxu0
        %v2081 = vadd.f32 0.0, %v2080
        %v2082 = vpop.f32.mrf.mxu0
        %2083 = vmatprep.mubr.bf16.mxu0 0
        %2084 = vmatmul.mubr.bf16.gmra.mxu0 %v1989
        %v2085 = vpop.f32.mrf.mxu0
        %v2086 = vadd.f32 0.0, %v2085
        %v2087 = vpop.f32.mrf.mxu0
        %v2088 = vpop.f32.mrf.mxu0
        %v2089 = vadd.f32 0.0, %v2088
        %v2090 = vpop.f32.mrf.mxu0
        %2091 = vmatprep.mubr.bf16.mxu0 0
        %2092 = vmatmul.mubr.bf16.gmra.mxu0 %v1992
        %v2093 = vpop.f32.mrf.mxu0
        %v2094 = vadd.f32 0.0, %v2093
        %v2095 = vpop.f32.mrf.mxu0
        %v2096 = vpop.f32.mrf.mxu0
        %v2097 = vadd.f32 0.0, %v2096
        %v2098 = vpop.f32.mrf.mxu0
        %2099 = vmatprep.mubr.bf16.mxu0 0
        %2100 = vmatmul.mubr.bf16.gmra.mxu0 %v1995
        %v2101 = vpop.f32.mrf.mxu0
        %v2102 = vadd.f32 0.0, %v2101
        %v2103 = vpop.f32.mrf.mxu0
        %v2104 = vpop.f32.mrf.mxu0
        %v2105 = vadd.f32 0.0, %v2104
        %v2106 = vpop.f32.mrf.mxu0
        %2107 = vmatprep.mubr.bf16.mxu0 0
        %2108 = vmatmul.mubr.bf16.gmra.mxu0 %v1998
        %v2109 = vpop.f32.mrf.mxu0
        %v2110 = vadd.f32 0.0, %v2109
        %v2111 = vpop.f32.mrf.mxu0
        %v2112 = vpop.f32.mrf.mxu0
        %v2113 = vadd.f32 0.0, %v2112
        %v2114 = vpop.f32.mrf.mxu0
        %2115 = vmatprep.mubr.bf16.mxu0 0
        %2116 = vmatmul.mubr.bf16.gmra.mxu0 %v2001
        %v2117 = vpop.f32.mrf.mxu0
        %v2118 = vadd.f32 0.0, %v2117
        %v2119 = vpop.f32.mrf.mxu0
        %v2120 = vpop.f32.mrf.mxu0
        %v2121 = vadd.f32 0.0, %v2120
        %v2122 = vpop.f32.mrf.mxu0
        %2123 = vmatprep.mubr.bf16.mxu0 0
        %2124 = vmatmul.mubr.bf16.gmra.mxu0 %v2004
        %v2125 = vpop.f32.mrf.mxu0
        %v2126 = vadd.f32 0.0, %v2125
        %v2127 = vpop.f32.mrf.mxu0
        %v2128 = vpop.f32.mrf.mxu0
        %v2129 = vadd.f32 0.0, %v2128
        %v2130 = vpop.f32.mrf.mxu0
        %2131 = vmatprep.mubr.bf16.mxu0 0
        %2132 = vmatmul.mubr.bf16.gmra.mxu0 %v2007
        %v2133 = vpop.f32.mrf.mxu0
        %v2134 = vadd.f32 0.0, %v2133
        %v2135 = vpop.f32.mrf.mxu0
        %v2136 = vpop.f32.mrf.mxu0
        %v2137 = vadd.f32 0.0, %v2136
        %v2138 = vpop.f32.mrf.mxu0
        %2139 = vmatprep.mubr.bf16.mxu0 0
        %2140 = vmatmul.mubr.bf16.gmra.mxu0 %v2010
        %v2141 = vpop.f32.mrf.mxu0
        %v2142 = vadd.f32 0.0, %v2141
        %v2143 = vpop.f32.mrf.mxu0
        %v2144 = vpop.f32.mrf.mxu0
        %v2145 = vadd.f32 0.0, %v2144
        %v2146 = vpop.f32.mrf.mxu0
        %2147 = vmatprep.mubr.bf16.mxu0 0
        %2148 = vmatmul.mubr.bf16.gmra.mxu0 %v2013
        %v2149 = vpop.f32.mrf.mxu0
        %v2150 = vadd.f32 0.0, %v2149
        %v2151 = vpop.f32.mrf.mxu0
        %v2152 = vpop.f32.mrf.mxu0
        %v2153 = vadd.f32 0.0, %v2152
        %v2154 = vpop.f32.mrf.mxu0
        %2155 = vmatprep.mubr.bf16.mxu0 0
        %2156 = vmatmul.mubr.bf16.gmra.mxu0 %v2016
        %v2157 = vpop.f32.mrf.mxu0
        %v2158 = vadd.f32 0.0, %v2157
        %v2159 = vpop.f32.mrf.mxu0
        %v2160 = vpop.f32.mrf.mxu0
        %v2161 = vadd.f32 0.0, %v2160
        %v2162 = vpop.f32.mrf.mxu0
        %2163 = vmatprep.mubr.bf16.mxu0 0
        %2164 = vmatmul.mubr.bf16.gmra.mxu0 %v2019
        %v2165 = vpop.f32.mrf.mxu0
        %v2166 = vadd.f32 0.0, %v2165
        %v2167 = vpop.f32.mrf.mxu0
        %v2168 = vpop.f32.mrf.mxu0
        %v2169 = vadd.f32 0.0, %v2168
        %v2170 = vpop.f32.mrf.mxu0
        %2171 = vmatprep.mubr.bf16.mxu0 0
        %2172 = vmatmul.mubr.bf16.gmra.mxu0 %v2022
        %v2173 = vpop.f32.mrf.mxu0
        %v2174 = vadd.f32 0.0, %v2173
        %v2175 = vpop.f32.mrf.mxu0
        %v2176 = vpop.f32.mrf.mxu0
        %v2177 = vadd.f32 0.0, %v2176
        %v2178 = vpop.f32.mrf.mxu0
        %2179 = vmatprep.mubr.bf16.mxu0 0
        %2180 = vmatmul.mubr.bf16.gmra.mxu0 %v2025
        %v2181 = vpop.f32.mrf.mxu0
        %v2182 = vadd.f32 0.0, %v2181
        %v2183 = vpop.f32.mrf.mxu0
        %v2184 = vpop.f32.mrf.mxu0
        %v2185 = vadd.f32 0.0, %v2184
        %v2186 = vpop.f32.mrf.mxu0
        %2187 = vdwg.mxu0
        %v2188 = vld [vmem:[%s7] sm:$0x1]
        %v2190 = vlaneseq
        %v2191 = vshrl.u32 %v2190, 7
        %v2192 = vsub.s32 0, %v2191
        %v2193 = vrot.slane %v2188, %v2192
        %v2195 = vadd.f32 %v2062, %v2193
        %v2196 = vadd.f32 %v2065, %v2193
        %v2197 = vadd.f32 %v2070, %v2193
        %v2198 = vadd.f32 %v2073, %v2193
        %v2199 = vadd.f32 %v2078, %v2193
        %v2200 = vadd.f32 %v2081, %v2193
        %v2201 = vadd.f32 %v2086, %v2193
        %v2202 = vadd.f32 %v2089, %v2193
        %v2203 = vadd.f32 %v2094, %v2193
        %v2204 = vadd.f32 %v2097, %v2193
        %v2205 = vadd.f32 %v2102, %v2193
        %v2206 = vadd.f32 %v2105, %v2193
        %v2207 = vadd.f32 %v2110, %v2193
        %v2208 = vadd.f32 %v2113, %v2193
        %v2209 = vadd.f32 %v2118, %v2193
        %v2210 = vadd.f32 %v2121, %v2193
        %v2211 = vadd.f32 %v2126, %v2193
        %v2212 = vadd.f32 %v2129, %v2193
        %v2213 = vadd.f32 %v2134, %v2193
        %v2214 = vadd.f32 %v2137, %v2193
        %v2215 = vadd.f32 %v2142, %v2193
        %v2216 = vadd.f32 %v2145, %v2193
        %v2217 = vadd.f32 %v2150, %v2193
        %v2218 = vadd.f32 %v2153, %v2193
        %v2219 = vadd.f32 %v2158, %v2193
        %v2220 = vadd.f32 %v2161, %v2193
        %v2221 = vadd.f32 %v2166, %v2193
        %v2222 = vadd.f32 %v2169, %v2193
        %v2223 = vadd.f32 %v2174, %v2193
        %v2224 = vadd.f32 %v2177, %v2193
        %v2225 = vadd.f32 %v2182, %v2193
        %v2226 = vadd.f32 %v2185, %v2193
        %vm2227 = vcmp.gt.f32.partialorder %v2195, 20.0
        %vm2228 = vcmp.gt.f32.partialorder %v2196, 20.0
        %vm2229 = vcmp.gt.f32.partialorder %v2197, 20.0
        %vm2230 = vcmp.gt.f32.partialorder %v2198, 20.0
        %vm2231 = vcmp.gt.f32.partialorder %v2199, 20.0
        %vm2232 = vcmp.gt.f32.partialorder %v2200, 20.0
        %vm2233 = vcmp.gt.f32.partialorder %v2201, 20.0
        %vm2234 = vcmp.gt.f32.partialorder %v2202, 20.0
        %vm2235 = vcmp.gt.f32.partialorder %v2203, 20.0
        %vm2236 = vcmp.gt.f32.partialorder %v2204, 20.0
        %vm2237 = vcmp.gt.f32.partialorder %v2205, 20.0
        %vm2238 = vcmp.gt.f32.partialorder %v2206, 20.0
        %vm2239 = vcmp.gt.f32.partialorder %v2207, 20.0
        %vm2240 = vcmp.gt.f32.partialorder %v2208, 20.0
        %vm2241 = vcmp.gt.f32.partialorder %v2209, 20.0
        %vm2242 = vcmp.gt.f32.partialorder %v2210, 20.0
        %vm2243 = vcmp.gt.f32.partialorder %v2211, 20.0
        %vm2244 = vcmp.gt.f32.partialorder %v2212, 20.0
        %vm2245 = vcmp.gt.f32.partialorder %v2213, 20.0
        %vm2246 = vcmp.gt.f32.partialorder %v2214, 20.0
        %vm2247 = vcmp.gt.f32.partialorder %v2215, 20.0
        %vm2248 = vcmp.gt.f32.partialorder %v2216, 20.0
        %vm2249 = vcmp.gt.f32.partialorder %v2217, 20.0
        %vm2250 = vcmp.gt.f32.partialorder %v2218, 20.0
        %vm2251 = vcmp.gt.f32.partialorder %v2219, 20.0
        %vm2252 = vcmp.gt.f32.partialorder %v2220, 20.0
        %vm2253 = vcmp.gt.f32.partialorder %v2221, 20.0
        %vm2254 = vcmp.gt.f32.partialorder %v2222, 20.0
        %vm2255 = vcmp.gt.f32.partialorder %v2223, 20.0
        %vm2256 = vcmp.gt.f32.partialorder %v2224, 20.0
        %vm2257 = vcmp.gt.f32.partialorder %v2225, 20.0
        %vm2258 = vcmp.gt.f32.partialorder %v2226, 20.0
        %v2259 = vmin.f32 %v2195, 20.0
        %v2260 = vmin.f32 %v2196, 20.0
        %v2261 = vmin.f32 %v2197, 20.0
        %v2262 = vmin.f32 %v2198, 20.0
        %v2263 = vmin.f32 %v2199, 20.0
        %v2264 = vmin.f32 %v2200, 20.0
        %v2265 = vmin.f32 %v2201, 20.0
        %v2266 = vmin.f32 %v2202, 20.0
        %v2267 = vmin.f32 %v2203, 20.0
        %v2268 = vmin.f32 %v2204, 20.0
        %v2269 = vmin.f32 %v2205, 20.0
        %v2270 = vmin.f32 %v2206, 20.0
        %v2271 = vmin.f32 %v2207, 20.0
        %v2272 = vmin.f32 %v2208, 20.0
        %v2273 = vmin.f32 %v2209, 20.0
        %v2274 = vmin.f32 %v2210, 20.0
        %v2275 = vmin.f32 %v2211, 20.0
        %v2276 = vmin.f32 %v2212, 20.0
        %v2277 = vmin.f32 %v2213, 20.0
        %v2278 = vmin.f32 %v2214, 20.0
        %v2279 = vmin.f32 %v2215, 20.0
        %v2280 = vmin.f32 %v2216, 20.0
        %v2281 = vmin.f32 %v2217, 20.0
        %v2282 = vmin.f32 %v2218, 20.0
        %v2283 = vmin.f32 %v2219, 20.0
        %v2284 = vmin.f32 %v2220, 20.0
        %v2285 = vmin.f32 %v2221, 20.0
        %v2286 = vmin.f32 %v2222, 20.0
        %v2287 = vmin.f32 %v2223, 20.0
        %v2288 = vmin.f32 %v2224, 20.0
        %v2289 = vmin.f32 %v2225, 20.0
        %v2290 = vmin.f32 %v2226, 20.0
        %v2291 = vmul.f32 %v2259, 1.442695
        %v2292 = vpow.pop %v2291
        %v2293 = vmul.f32 %v2260, 1.442695
        %v2294 = vpow.pop %v2293
        %v2295 = vmul.f32 %v2261, 1.442695
        %v2296 = vpow.pop %v2295
        %v2297 = vmul.f32 %v2262, 1.442695
        %v2298 = vpow.pop %v2297
        %v2299 = vmul.f32 %v2263, 1.442695
        %v2300 = vpow.pop %v2299
        %v2301 = vmul.f32 %v2264, 1.442695
        %v2302 = vpow.pop %v2301
        %v2303 = vmul.f32 %v2265, 1.442695
        %v2304 = vpow.pop %v2303
        %v2305 = vmul.f32 %v2266, 1.442695
        %v2306 = vpow.pop %v2305
        %v2307 = vmul.f32 %v2267, 1.442695
        %v2308 = vpow.pop %v2307
        %v2309 = vmul.f32 %v2268, 1.442695
        %v2310 = vpow.pop %v2309
        %v2311 = vmul.f32 %v2269, 1.442695
        %v2312 = vpow.pop %v2311
        %v2313 = vmul.f32 %v2270, 1.442695
        %v2314 = vpow.pop %v2313
        %v2315 = vmul.f32 %v2271, 1.442695
        %v2316 = vpow.pop %v2315
        %v2317 = vmul.f32 %v2272, 1.442695
        %v2318 = vpow.pop %v2317
        %v2319 = vmul.f32 %v2273, 1.442695
        %v2320 = vpow.pop %v2319
        %v2321 = vmul.f32 %v2274, 1.442695
        %v2322 = vpow.pop %v2321
        %v2323 = vmul.f32 %v2275, 1.442695
        %v2324 = vpow.pop %v2323
        %v2325 = vmul.f32 %v2276, 1.442695
        %v2326 = vpow.pop %v2325
        %v2327 = vmul.f32 %v2277, 1.442695
        %v2328 = vpow.pop %v2327
        %v2329 = vmul.f32 %v2278, 1.442695
        %v2330 = vpow.pop %v2329
        %v2331 = vmul.f32 %v2279, 1.442695
        %v2332 = vpow.pop %v2331
        %v2333 = vmul.f32 %v2280, 1.442695
        %v2334 = vpow.pop %v2333
        %v2335 = vmul.f32 %v2281, 1.442695
        %v2336 = vpow.pop %v2335
        %v2337 = vmul.f32 %v2282, 1.442695
        %v2338 = vpow.pop %v2337
        %v2339 = vmul.f32 %v2283, 1.442695
        %v2340 = vpow.pop %v2339
        %v2341 = vmul.f32 %v2284, 1.442695
        %v2342 = vpow.pop %v2341
        %v2343 = vmul.f32 %v2285, 1.442695
        %v2344 = vpow.pop %v2343
        %v2345 = vmul.f32 %v2286, 1.442695
        %v2346 = vpow.pop %v2345
        %v2347 = vmul.f32 %v2287, 1.442695
        %v2348 = vpow.pop %v2347
        %v2349 = vmul.f32 %v2288, 1.442695
        %v2350 = vpow.pop %v2349
        %v2351 = vmul.f32 %v2289, 1.442695
        %v2352 = vpow.pop %v2351
        %v2353 = vmul.f32 %v2290, 1.442695
        %v2354 = vpow.pop %v2353
        %v2355 = vadd.f32 %v2292, 1.0
        %v2356 = vadd.f32 %v2294, 1.0
        %v2357 = vadd.f32 %v2296, 1.0
        %v2358 = vadd.f32 %v2298, 1.0
        %v2359 = vadd.f32 %v2300, 1.0
        %v2360 = vadd.f32 %v2302, 1.0
        %v2361 = vadd.f32 %v2304, 1.0
        %v2362 = vadd.f32 %v2306, 1.0
        %v2363 = vadd.f32 %v2308, 1.0
        %v2364 = vadd.f32 %v2310, 1.0
        %v2365 = vadd.f32 %v2312, 1.0
        %v2366 = vadd.f32 %v2314, 1.0
        %v2367 = vadd.f32 %v2316, 1.0
        %v2368 = vadd.f32 %v2318, 1.0
        %v2369 = vadd.f32 %v2320, 1.0
        %v2370 = vadd.f32 %v2322, 1.0
        %v2371 = vadd.f32 %v2324, 1.0
        %v2372 = vadd.f32 %v2326, 1.0
        %v2373 = vadd.f32 %v2328, 1.0
        %v2374 = vadd.f32 %v2330, 1.0
        %v2375 = vadd.f32 %v2332, 1.0
        %v2376 = vadd.f32 %v2334, 1.0
        %v2377 = vadd.f32 %v2336, 1.0
        %v2378 = vadd.f32 %v2338, 1.0
        %v2379 = vadd.f32 %v2340, 1.0
        %v2380 = vadd.f32 %v2342, 1.0
        %v2381 = vadd.f32 %v2344, 1.0
        %v2382 = vadd.f32 %v2346, 1.0
        %v2383 = vadd.f32 %v2348, 1.0
        %v2384 = vadd.f32 %v2350, 1.0
        %v2385 = vadd.f32 %v2352, 1.0
        %v2386 = vadd.f32 %v2354, 1.0
        %v2387 = vlog2.pop %v2355
        %v2388 = vmul.f32 %v2387, 0.6931472
        %v2389 = vlog2.pop %v2356
        %v2390 = vmul.f32 %v2389, 0.6931472
        %v2391 = vlog2.pop %v2357
        %v2392 = vmul.f32 %v2391, 0.6931472
        %v2393 = vlog2.pop %v2358
        %v2394 = vmul.f32 %v2393, 0.6931472
        %v2395 = vlog2.pop %v2359
        %v2396 = vmul.f32 %v2395, 0.6931472
        %v2397 = vlog2.pop %v2360
        %v2398 = vmul.f32 %v2397, 0.6931472
        %v2399 = vlog2.pop %v2361
        %v2400 = vmul.f32 %v2399, 0.6931472
        %v2401 = vlog2.pop %v2362
        %v2402 = vmul.f32 %v2401, 0.6931472
        %v2403 = vlog2.pop %v2363
        %v2404 = vmul.f32 %v2403, 0.6931472
        %v2405 = vlog2.pop %v2364
        %v2406 = vmul.f32 %v2405, 0.6931472
        %v2407 = vlog2.pop %v2365
        %v2408 = vmul.f32 %v2407, 0.6931472
        %v2409 = vlog2.pop %v2366
        %v2410 = vmul.f32 %v2409, 0.6931472
        %v2411 = vlog2.pop %v2367
        %v2412 = vmul.f32 %v2411, 0.6931472
        %v2413 = vlog2.pop %v2368
        %v2414 = vmul.f32 %v2413, 0.6931472
        %v2415 = vlog2.pop %v2369
        %v2416 = vmul.f32 %v2415, 0.6931472
        %v2417 = vlog2.pop %v2370
        %v2418 = vmul.f32 %v2417, 0.6931472
        %v2419 = vlog2.pop %v2371
        %v2420 = vmul.f32 %v2419, 0.6931472
        %v2421 = vlog2.pop %v2372
        %v2422 = vmul.f32 %v2421, 0.6931472
        %v2423 = vlog2.pop %v2373
        %v2424 = vmul.f32 %v2423, 0.6931472
        %v2425 = vlog2.pop %v2374
        %v2426 = vmul.f32 %v2425, 0.6931472
        %v2427 = vlog2.pop %v2375
        %v2428 = vmul.f32 %v2427, 0.6931472
        %v2429 = vlog2.pop %v2376
        %v2430 = vmul.f32 %v2429, 0.6931472
        %v2431 = vlog2.pop %v2377
        %v2432 = vmul.f32 %v2431, 0.6931472
        %v2433 = vlog2.pop %v2378
        %v2434 = vmul.f32 %v2433, 0.6931472
        %v2435 = vlog2.pop %v2379
        %v2436 = vmul.f32 %v2435, 0.6931472
        %v2437 = vlog2.pop %v2380
        %v2438 = vmul.f32 %v2437, 0.6931472
        %v2439 = vlog2.pop %v2381
        %v2440 = vmul.f32 %v2439, 0.6931472
        %v2441 = vlog2.pop %v2382
        %v2442 = vmul.f32 %v2441, 0.6931472
        %v2443 = vlog2.pop %v2383
        %v2444 = vmul.f32 %v2443, 0.6931472
        %v2445 = vlog2.pop %v2384
        %v2446 = vmul.f32 %v2445, 0.6931472
        %v2447 = vlog2.pop %v2385
        %v2448 = vmul.f32 %v2447, 0.6931472
        %v2449 = vlog2.pop %v2386
        %v2450 = vmul.f32 %v2449, 0.6931472
        %v2451 = vsel %vm2227, %v2195, %v2388
        %v2452 = vsel %vm2228, %v2196, %v2390
        %v2453 = vsel %vm2229, %v2197, %v2392
        %v2454 = vsel %vm2230, %v2198, %v2394
        %v2455 = vsel %vm2231, %v2199, %v2396
        %v2456 = vsel %vm2232, %v2200, %v2398
        %v2457 = vsel %vm2233, %v2201, %v2400
        %v2458 = vsel %vm2234, %v2202, %v2402
        %v2459 = vsel %vm2235, %v2203, %v2404
        %v2460 = vsel %vm2236, %v2204, %v2406
        %v2461 = vsel %vm2237, %v2205, %v2408
        %v2462 = vsel %vm2238, %v2206, %v2410
        %v2463 = vsel %vm2239, %v2207, %v2412
        %v2464 = vsel %vm2240, %v2208, %v2414
        %v2465 = vsel %vm2241, %v2209, %v2416
        %v2466 = vsel %vm2242, %v2210, %v2418
        %v2467 = vsel %vm2243, %v2211, %v2420
        %v2468 = vsel %vm2244, %v2212, %v2422
        %v2469 = vsel %vm2245, %v2213, %v2424
        %v2470 = vsel %vm2246, %v2214, %v2426
        %v2471 = vsel %vm2247, %v2215, %v2428
        %v2472 = vsel %vm2248, %v2216, %v2430
        %v2473 = vsel %vm2249, %v2217, %v2432
        %v2474 = vsel %vm2250, %v2218, %v2434
        %v2475 = vsel %vm2251, %v2219, %v2436
        %v2476 = vsel %vm2252, %v2220, %v2438
        %v2477 = vsel %vm2253, %v2221, %v2440
        %v2478 = vsel %vm2254, %v2222, %v2442
        %v2479 = vsel %vm2255, %v2223, %v2444
        %v2480 = vsel %vm2256, %v2224, %v2446
        %v2481 = vsel %vm2257, %v2225, %v2448
        %v2482 = vsel %vm2258, %v2226, %v2450
        %v2483 = vld [vmem:[%s8] sm:$0xff]
        %v2484 = vld [vmem:[%s8 + $0x8] sm:$0xff]
        %2485 = vst.msk [vmem:[#allocation2] sm:$0xff] %vm1978, %v2451
        %2486 = vst.msk [vmem:[#allocation2 + $0x8] sm:$0xff] %vm1978, %v2452
        %2487 = vst.msk [vmem:[#allocation2 + $0x10] sm:$0xff] %vm1978, %v2453
        %2488 = vst.msk [vmem:[#allocation2 + $0x18] sm:$0xff] %vm1978, %v2454
        %2489 = vst.msk [vmem:[#allocation2 + $0x20] sm:$0xff] %vm1978, %v2455
        %2490 = vst.msk [vmem:[#allocation2 + $0x28] sm:$0xff] %vm1978, %v2456
        %2491 = vst.msk [vmem:[#allocation2 + $0x30] sm:$0xff] %vm1978, %v2457
        %2492 = vst.msk [vmem:[#allocation2 + $0x38] sm:$0xff] %vm1978, %v2458
        %2493 = vst.msk [vmem:[#allocation2 + $0x40] sm:$0xff] %vm1978, %v2459
        %2494 = vst.msk [vmem:[#allocation2 + $0x48] sm:$0xff] %vm1978, %v2460
        %2495 = vst.msk [vmem:[#allocation2 + $0x50] sm:$0xff] %vm1978, %v2461
        %2496 = vst.msk [vmem:[#allocation2 + $0x58] sm:$0xff] %vm1978, %v2462
        %2497 = vst.msk [vmem:[#allocation2 + $0x60] sm:$0xff] %vm1978, %v2463
        %2498 = vst.msk [vmem:[#allocation2 + $0x68] sm:$0xff] %vm1978, %v2464
        %2499 = vst.msk [vmem:[#allocation2 + $0x70] sm:$0xff] %vm1978, %v2465
        %2500 = vst.msk [vmem:[#allocation2 + $0x78] sm:$0xff] %vm1978, %v2466
        %2501 = vst.msk [vmem:[#allocation2 + $0x80] sm:$0xff] %vm1978, %v2467
        %2502 = vst.msk [vmem:[#allocation2 + $0x88] sm:$0xff] %vm1978, %v2468
        %2503 = vst.msk [vmem:[#allocation2 + $0x90] sm:$0xff] %vm1978, %v2469
        %2504 = vst.msk [vmem:[#allocation2 + $0x98] sm:$0xff] %vm1978, %v2470
        %2505 = vst.msk [vmem:[#allocation2 + $0xa0] sm:$0xff] %vm1978, %v2471
        %2506 = vst.msk [vmem:[#allocation2 + $0xa8] sm:$0xff] %vm1978, %v2472
        %2507 = vst.msk [vmem:[#allocation2 + $0xb0] sm:$0xff] %vm1978, %v2473
        %2508 = vst.msk [vmem:[#allocation2 + $0xb8] sm:$0xff] %vm1978, %v2474
        %2509 = vst.msk [vmem:[#allocation2 + $0xc0] sm:$0xff] %vm1978, %v2475
        %2510 = vst.msk [vmem:[#allocation2 + $0xc8] sm:$0xff] %vm1978, %v2476
        %2511 = vst.msk [vmem:[#allocation2 + $0xd0] sm:$0xff] %vm1978, %v2477
        %2512 = vst.msk [vmem:[#allocation2 + $0xd8] sm:$0xff] %vm1978, %v2478
        %2513 = vst.msk [vmem:[#allocation2 + $0xe0] sm:$0xff] %vm1978, %v2479
        %2514 = vst.msk [vmem:[#allocation2 + $0xe8] sm:$0xff] %vm1978, %v2480
        %2515 = vst.msk [vmem:[#allocation2 + $0xf0] sm:$0xff] %vm1978, %v2481
        %2516 = vst.msk [vmem:[#allocation2 + $0xf8] sm:$0xff] %vm1978, %v2482
        %v2517 = vmul.f32 %v2451, %v1914
        %v2518 = vmul.f32 %v2452, %v1915
        %v2519 = vmul.f32 %v2453, %v1916
        %v2520 = vmul.f32 %v2454, %v1917
        %v2521 = vmul.f32 %v2455, %v1918
        %v2522 = vmul.f32 %v2456, %v1919
        %v2523 = vmul.f32 %v2457, %v1920
        %v2524 = vmul.f32 %v2458, %v1921
        %v2525 = vmul.f32 %v2459, %v1922
        %v2526 = vmul.f32 %v2460, %v1923
        %v2527 = vmul.f32 %v2461, %v1924
        %v2528 = vmul.f32 %v2462, %v1925
        %v2529 = vmul.f32 %v2463, %v1926
        %v2530 = vmul.f32 %v2464, %v1927
        %v2531 = vmul.f32 %v2465, %v1928
        %v2532 = vmul.f32 %v2466, %v1929
        %v2533 = vmul.f32 %v2467, %v1930
        %v2534 = vmul.f32 %v2468, %v1931
        %v2535 = vmul.f32 %v2469, %v1932
        %v2536 = vmul.f32 %v2470, %v1933
        %v2537 = vmul.f32 %v2471, %v1934
        %v2538 = vmul.f32 %v2472, %v1935
        %v2539 = vmul.f32 %v2473, %v1936
        %v2540 = vmul.f32 %v2474, %v1937
        %v2541 = vmul.f32 %v2475, %v1938
        %v2542 = vmul.f32 %v2476, %v1939
        %v2543 = vmul.f32 %v2477, %v1940
        %v2544 = vmul.f32 %v2478, %v1941
        %v2545 = vmul.f32 %v2479, %v1942
        %v2546 = vmul.f32 %v2480, %v1943
        %v2547 = vmul.f32 %v2481, %v1944
        %v2548 = vmul.f32 %v2482, %v1945
        %2549 = vst.msk [vmem:[#allocation3] sm:$0xff] %vm1978, %v2517
        %2550 = vst.msk [vmem:[#allocation3 + $0x8] sm:$0xff] %vm1978, %v2518
        %2551 = vst.msk [vmem:[#allocation3 + $0x10] sm:$0xff] %vm1978, %v2519
        %2552 = vst.msk [vmem:[#allocation3 + $0x18] sm:$0xff] %vm1978, %v2520
        %2553 = vst.msk [vmem:[#allocation3 + $0x20] sm:$0xff] %vm1978, %v2521
        %2554 = vst.msk [vmem:[#allocation3 + $0x28] sm:$0xff] %vm1978, %v2522
        %2555 = vst.msk [vmem:[#allocation3 + $0x30] sm:$0xff] %vm1978, %v2523
        %2556 = vst.msk [vmem:[#allocation3 + $0x38] sm:$0xff] %vm1978, %v2524
        %2557 = vst.msk [vmem:[#allocation3 + $0x40] sm:$0xff] %vm1978, %v2525
        %2558 = vst.msk [vmem:[#allocation3 + $0x48] sm:$0xff] %vm1978, %v2526
        %2559 = vst.msk [vmem:[#allocation3 + $0x50] sm:$0xff] %vm1978, %v2527
        %2560 = vst.msk [vmem:[#allocation3 + $0x58] sm:$0xff] %vm1978, %v2528
        %2561 = vst.msk [vmem:[#allocation3 + $0x60] sm:$0xff] %vm1978, %v2529
        %2562 = vst.msk [vmem:[#allocation3 + $0x68] sm:$0xff] %vm1978, %v2530
        %2563 = vst.msk [vmem:[#allocation3 + $0x70] sm:$0xff] %vm1978, %v2531
        %2564 = vst.msk [vmem:[#allocation3 + $0x78] sm:$0xff] %vm1978, %v2532
        %2565 = vst.msk [vmem:[#allocation3 + $0x80] sm:$0xff] %vm1978, %v2533
        %2566 = vst.msk [vmem:[#allocation3 + $0x88] sm:$0xff] %vm1978, %v2534
        %2567 = vst.msk [vmem:[#allocation3 + $0x90] sm:$0xff] %vm1978, %v2535
        %2568 = vst.msk [vmem:[#allocation3 + $0x98] sm:$0xff] %vm1978, %v2536
        %2569 = vst.msk [vmem:[#allocation3 + $0xa0] sm:$0xff] %vm1978, %v2537
        %2570 = vst.msk [vmem:[#allocation3 + $0xa8] sm:$0xff] %vm1978, %v2538
        %2571 = vst.msk [vmem:[#allocation3 + $0xb0] sm:$0xff] %vm1978, %v2539
        %2572 = vst.msk [vmem:[#allocation3 + $0xb8] sm:$0xff] %vm1978, %v2540
        %2573 = vst.msk [vmem:[#allocation3 + $0xc0] sm:$0xff] %vm1978, %v2541
        %2574 = vst.msk [vmem:[#allocation3 + $0xc8] sm:$0xff] %vm1978, %v2542
        %2575 = vst.msk [vmem:[#allocation3 + $0xd0] sm:$0xff] %vm1978, %v2543
        %2576 = vst.msk [vmem:[#allocation3 + $0xd8] sm:$0xff] %vm1978, %v2544
        %2577 = vst.msk [vmem:[#allocation3 + $0xe0] sm:$0xff] %vm1978, %v2545
        %2578 = vst.msk [vmem:[#allocation3 + $0xe8] sm:$0xff] %vm1978, %v2546
        %2579 = vst.msk [vmem:[#allocation3 + $0xf0] sm:$0xff] %vm1978, %v2547
        %2580 = vst.msk [vmem:[#allocation3 + $0xf8] sm:$0xff] %vm1978, %v2548
        %2613 = vrot.lane.b32.xlu0 %v2062, 96
        %v2614 = vpop.permute.xlu0 %2613
        %2615 = vrot.lane.b32.xlu0 %v2065, 96
        %v2616 = vpop.permute.xlu0 %2615
        %2617 = vrot.lane.b32.xlu0 %v2070, 96
        %v2618 = vpop.permute.xlu0 %2617
        %2619 = vrot.lane.b32.xlu0 %v2073, 96
        %v2620 = vpop.permute.xlu0 %2619
        %2621 = vrot.lane.b32.xlu0 %v2078, 96
        %v2622 = vpop.permute.xlu0 %2621
        %2623 = vrot.lane.b32.xlu0 %v2081, 96
        %v2624 = vpop.permute.xlu0 %2623
        %2625 = vrot.lane.b32.xlu0 %v2086, 96
        %v2626 = vpop.permute.xlu0 %2625
        %2627 = vrot.lane.b32.xlu0 %v2089, 96
        %v2628 = vpop.permute.xlu0 %2627
        %2629 = vrot.lane.b32.xlu0 %v2094, 96
        %v2630 = vpop.permute.xlu0 %2629
        %2631 = vrot.lane.b32.xlu0 %v2097, 96
        %v2632 = vpop.permute.xlu0 %2631
        %2633 = vrot.lane.b32.xlu0 %v2102, 96
        %v2634 = vpop.permute.xlu0 %2633
        %2635 = vrot.lane.b32.xlu0 %v2105, 96
        %v2636 = vpop.permute.xlu0 %2635
        %2637 = vrot.lane.b32.xlu0 %v2110, 96
        %v2638 = vpop.permute.xlu0 %2637
        %2639 = vrot.lane.b32.xlu0 %v2113, 96
        %v2640 = vpop.permute.xlu0 %2639
        %2641 = vrot.lane.b32.xlu0 %v2118, 96
        %v2642 = vpop.permute.xlu0 %2641
        %2643 = vrot.lane.b32.xlu0 %v2121, 96
        %v2644 = vpop.permute.xlu0 %2643
        %2645 = vrot.lane.b32.xlu0 %v2126, 96
        %v2646 = vpop.permute.xlu0 %2645
        %2647 = vrot.lane.b32.xlu0 %v2129, 96
        %v2648 = vpop.permute.xlu0 %2647
        %2649 = vrot.lane.b32.xlu0 %v2134, 96
        %v2650 = vpop.permute.xlu0 %2649
        %2651 = vrot.lane.b32.xlu0 %v2137, 96
        %v2652 = vpop.permute.xlu0 %2651
        %2653 = vrot.lane.b32.xlu0 %v2142, 96
        %v2654 = vpop.permute.xlu0 %2653
        %2655 = vrot.lane.b32.xlu0 %v2145, 96
        %v2656 = vpop.permute.xlu0 %2655
        %2657 = vrot.lane.b32.xlu0 %v2150, 96
        %v2658 = vpop.permute.xlu0 %2657
        %2659 = vrot.lane.b32.xlu0 %v2153, 96
        %v2660 = vpop.permute.xlu0 %2659
        %2661 = vrot.lane.b32.xlu0 %v2158, 96
        %v2662 = vpop.permute.xlu0 %2661
        %2663 = vrot.lane.b32.xlu0 %v2161, 96
        %v2664 = vpop.permute.xlu0 %2663
        %2665 = vrot.lane.b32.xlu0 %v2166, 96
        %v2666 = vpop.permute.xlu0 %2665
        %2667 = vrot.lane.b32.xlu0 %v2169, 96
        %v2668 = vpop.permute.xlu0 %2667
        %2669 = vrot.lane.b32.xlu0 %v2174, 96
        %v2670 = vpop.permute.xlu0 %2669
        %2671 = vrot.lane.b32.xlu0 %v2177, 96
        %v2672 = vpop.permute.xlu0 %2671
        %2673 = vrot.lane.b32.xlu0 %v2182, 96
        %v2674 = vpop.permute.xlu0 %2673
        %2675 = vrot.lane.b32.xlu0 %v2185, 96
        %v2676 = vpop.permute.xlu0 %2675
        %2709 = vst.msk [vmem:[#allocation4] sm:$0xff] %vm418, %v2614
        %2710 = vst.msk [vmem:[#allocation4 + $0x8] sm:$0xff] %vm418, %v2616
        %2711 = vst.msk [vmem:[#allocation4 + $0x10] sm:$0xff] %vm418, %v2618
        %2712 = vst.msk [vmem:[#allocation4 + $0x18] sm:$0xff] %vm418, %v2620
        %2713 = vst.msk [vmem:[#allocation4 + $0x20] sm:$0xff] %vm418, %v2622
        %2714 = vst.msk [vmem:[#allocation4 + $0x28] sm:$0xff] %vm418, %v2624
        %2715 = vst.msk [vmem:[#allocation4 + $0x30] sm:$0xff] %vm418, %v2626
        %2716 = vst.msk [vmem:[#allocation4 + $0x38] sm:$0xff] %vm418, %v2628
        %2717 = vst.msk [vmem:[#allocation4 + $0x40] sm:$0xff] %vm418, %v2630
        %2718 = vst.msk [vmem:[#allocation4 + $0x48] sm:$0xff] %vm418, %v2632
        %2719 = vst.msk [vmem:[#allocation4 + $0x50] sm:$0xff] %vm418, %v2634
        %2720 = vst.msk [vmem:[#allocation4 + $0x58] sm:$0xff] %vm418, %v2636
        %2721 = vst.msk [vmem:[#allocation4 + $0x60] sm:$0xff] %vm418, %v2638
        %2722 = vst.msk [vmem:[#allocation4 + $0x68] sm:$0xff] %vm418, %v2640
        %2723 = vst.msk [vmem:[#allocation4 + $0x70] sm:$0xff] %vm418, %v2642
        %2724 = vst.msk [vmem:[#allocation4 + $0x78] sm:$0xff] %vm418, %v2644
        %2725 = vst.msk [vmem:[#allocation4 + $0x80] sm:$0xff] %vm418, %v2646
        %2726 = vst.msk [vmem:[#allocation4 + $0x88] sm:$0xff] %vm418, %v2648
        %2727 = vst.msk [vmem:[#allocation4 + $0x90] sm:$0xff] %vm418, %v2650
        %2728 = vst.msk [vmem:[#allocation4 + $0x98] sm:$0xff] %vm418, %v2652
        %2729 = vst.msk [vmem:[#allocation4 + $0xa0] sm:$0xff] %vm418, %v2654
        %2730 = vst.msk [vmem:[#allocation4 + $0xa8] sm:$0xff] %vm418, %v2656
        %2731 = vst.msk [vmem:[#allocation4 + $0xb0] sm:$0xff] %vm418, %v2658
        %2732 = vst.msk [vmem:[#allocation4 + $0xb8] sm:$0xff] %vm418, %v2660
        %2733 = vst.msk [vmem:[#allocation4 + $0xc0] sm:$0xff] %vm418, %v2662
        %2734 = vst.msk [vmem:[#allocation4 + $0xc8] sm:$0xff] %vm418, %v2664
        %2735 = vst.msk [vmem:[#allocation4 + $0xd0] sm:$0xff] %vm418, %v2666
        %2736 = vst.msk [vmem:[#allocation4 + $0xd8] sm:$0xff] %vm418, %v2668
        %2737 = vst.msk [vmem:[#allocation4 + $0xe0] sm:$0xff] %vm418, %v2670
        %2738 = vst.msk [vmem:[#allocation4 + $0xe8] sm:$0xff] %vm418, %v2672
        %2739 = vst.msk [vmem:[#allocation4 + $0xf0] sm:$0xff] %vm418, %v2674
        %2740 = vst.msk [vmem:[#allocation4 + $0xf8] sm:$0xff] %vm418, %v2676
        %2741 = vrot.lane.b32.xlu0 %v2062, 80
        %v2742 = vpop.permute.xlu0 %2741
        %2743 = vrot.lane.b32.xlu0 %v2065, 80
        %v2744 = vpop.permute.xlu0 %2743
        %2745 = vrot.lane.b32.xlu0 %v2070, 80
        %v2746 = vpop.permute.xlu0 %2745
        %2747 = vrot.lane.b32.xlu0 %v2073, 80
        %v2748 = vpop.permute.xlu0 %2747
        %2749 = vrot.lane.b32.xlu0 %v2078, 80
        %v2750 = vpop.permute.xlu0 %2749
        %2751 = vrot.lane.b32.xlu0 %v2081, 80
        %v2752 = vpop.permute.xlu0 %2751
        %2753 = vrot.lane.b32.xlu0 %v2086, 80
        %v2754 = vpop.permute.xlu0 %2753
        %2755 = vrot.lane.b32.xlu0 %v2089, 80
        %v2756 = vpop.permute.xlu0 %2755
        %2757 = vrot.lane.b32.xlu0 %v2094, 80
        %v2758 = vpop.permute.xlu0 %2757
        %2759 = vrot.lane.b32.xlu0 %v2097, 80
        %v2760 = vpop.permute.xlu0 %2759
        %2761 = vrot.lane.b32.xlu0 %v2102, 80
        %v2762 = vpop.permute.xlu0 %2761
        %2763 = vrot.lane.b32.xlu0 %v2105, 80
        %v2764 = vpop.permute.xlu0 %2763
        %2765 = vrot.lane.b32.xlu0 %v2110, 80
        %v2766 = vpop.permute.xlu0 %2765
        %2767 = vrot.lane.b32.xlu0 %v2113, 80
        %v2768 = vpop.permute.xlu0 %2767
        %2769 = vrot.lane.b32.xlu0 %v2118, 80
        %v2770 = vpop.permute.xlu0 %2769
        %2771 = vrot.lane.b32.xlu0 %v2121, 80
        %v2772 = vpop.permute.xlu0 %2771
        %2773 = vrot.lane.b32.xlu0 %v2126, 80
        %v2774 = vpop.permute.xlu0 %2773
        %2775 = vrot.lane.b32.xlu0 %v2129, 80
        %v2776 = vpop.permute.xlu0 %2775
        %2777 = vrot.lane.b32.xlu0 %v2134, 80
        %v2778 = vpop.permute.xlu0 %2777
        %2779 = vrot.lane.b32.xlu0 %v2137, 80
        %v2780 = vpop.permute.xlu0 %2779
        %2781 = vrot.lane.b32.xlu0 %v2142, 80
        %v2782 = vpop.permute.xlu0 %2781
        %2783 = vrot.lane.b32.xlu0 %v2145, 80
        %v2784 = vpop.permute.xlu0 %2783
        %2785 = vrot.lane.b32.xlu0 %v2150, 80
        %v2786 = vpop.permute.xlu0 %2785
        %2787 = vrot.lane.b32.xlu0 %v2153, 80
        %v2788 = vpop.permute.xlu0 %2787
        %2789 = vrot.lane.b32.xlu0 %v2158, 80
        %v2790 = vpop.permute.xlu0 %2789
        %2791 = vrot.lane.b32.xlu0 %v2161, 80
        %v2792 = vpop.permute.xlu0 %2791
        %2793 = vrot.lane.b32.xlu0 %v2166, 80
        %v2794 = vpop.permute.xlu0 %2793
        %2795 = vrot.lane.b32.xlu0 %v2169, 80
        %v2796 = vpop.permute.xlu0 %2795
        %2797 = vrot.lane.b32.xlu0 %v2174, 80
        %v2798 = vpop.permute.xlu0 %2797
        %2799 = vrot.lane.b32.xlu0 %v2177, 80
        %v2800 = vpop.permute.xlu0 %2799
        %2801 = vrot.lane.b32.xlu0 %v2182, 80
        %v2802 = vpop.permute.xlu0 %2801
        %2803 = vrot.lane.b32.xlu0 %v2185, 80
        %v2804 = vpop.permute.xlu0 %2803
        %2837 = vst.msk [vmem:[#allocation5] sm:$0xff] %vm418, %v2742
        %2838 = vst.msk [vmem:[#allocation5 + $0x8] sm:$0xff] %vm418, %v2744
        %2839 = vst.msk [vmem:[#allocation5 + $0x10] sm:$0xff] %vm418, %v2746
        %2840 = vst.msk [vmem:[#allocation5 + $0x18] sm:$0xff] %vm418, %v2748
        %2841 = vst.msk [vmem:[#allocation5 + $0x20] sm:$0xff] %vm418, %v2750
        %2842 = vst.msk [vmem:[#allocation5 + $0x28] sm:$0xff] %vm418, %v2752
        %2843 = vst.msk [vmem:[#allocation5 + $0x30] sm:$0xff] %vm418, %v2754
        %2844 = vst.msk [vmem:[#allocation5 + $0x38] sm:$0xff] %vm418, %v2756
        %2845 = vst.msk [vmem:[#allocation5 + $0x40] sm:$0xff] %vm418, %v2758
        %2846 = vst.msk [vmem:[#allocation5 + $0x48] sm:$0xff] %vm418, %v2760
        %2847 = vst.msk [vmem:[#allocation5 + $0x50] sm:$0xff] %vm418, %v2762
        %2848 = vst.msk [vmem:[#allocation5 + $0x58] sm:$0xff] %vm418, %v2764
        %2849 = vst.msk [vmem:[#allocation5 + $0x60] sm:$0xff] %vm418, %v2766
        %2850 = vst.msk [vmem:[#allocation5 + $0x68] sm:$0xff] %vm418, %v2768
        %2851 = vst.msk [vmem:[#allocation5 + $0x70] sm:$0xff] %vm418, %v2770
        %2852 = vst.msk [vmem:[#allocation5 + $0x78] sm:$0xff] %vm418, %v2772
        %2853 = vst.msk [vmem:[#allocation5 + $0x80] sm:$0xff] %vm418, %v2774
        %2854 = vst.msk [vmem:[#allocation5 + $0x88] sm:$0xff] %vm418, %v2776
        %2855 = vst.msk [vmem:[#allocation5 + $0x90] sm:$0xff] %vm418, %v2778
        %2856 = vst.msk [vmem:[#allocation5 + $0x98] sm:$0xff] %vm418, %v2780
        %2857 = vst.msk [vmem:[#allocation5 + $0xa0] sm:$0xff] %vm418, %v2782
        %2858 = vst.msk [vmem:[#allocation5 + $0xa8] sm:$0xff] %vm418, %v2784
        %2859 = vst.msk [vmem:[#allocation5 + $0xb0] sm:$0xff] %vm418, %v2786
        %2860 = vst.msk [vmem:[#allocation5 + $0xb8] sm:$0xff] %vm418, %v2788
        %2861 = vst.msk [vmem:[#allocation5 + $0xc0] sm:$0xff] %vm418, %v2790
        %2862 = vst.msk [vmem:[#allocation5 + $0xc8] sm:$0xff] %vm418, %v2792
        %2863 = vst.msk [vmem:[#allocation5 + $0xd0] sm:$0xff] %vm418, %v2794
        %2864 = vst.msk [vmem:[#allocation5 + $0xd8] sm:$0xff] %vm418, %v2796
        %2865 = vst.msk [vmem:[#allocation5 + $0xe0] sm:$0xff] %vm418, %v2798
        %2866 = vst.msk [vmem:[#allocation5 + $0xe8] sm:$0xff] %vm418, %v2800
        %2867 = vst.msk [vmem:[#allocation5 + $0xf0] sm:$0xff] %vm418, %v2802
        %2868 = vst.msk [vmem:[#allocation5 + $0xf8] sm:$0xff] %vm418, %v2804
        loop: start=0, step=1, limit=32
        $region65: #{tpu_custom_call.1} parent=63 // loop_pre_header
          _
        $region66: #{tpu_custom_call.1} parent=63 // loop_header
          %s2870 = sphi 0, %s2874
          %p2871 = scmp.ge.s32.totalorder %s2870, 32
          %v2875 = vphi 0.0, %v3653
          %v2876 = vphi 0.0, %v3654
        $region67: #{tpu_custom_call.1} parent=63 // loop_header_branch
          %2873 = sbr.rel (%p2871) target = $region71
        $region68: #{tpu_custom_call.1} parent=63 // loop_body
          %s2877 = smul.u32 %s2870, 8
          %s2878 = scalar_lea.vmem [#allocation2], %s2877
          %v2879 = vld [vmem:[%s2878] sm:$0xff]
          %s2880 = scalar_lea.vmem [#allocation3], %s2877
          %v2881 = vld [vmem:[%s2880] sm:$0xff]
          %s2882 = scalar_lea.vmem [#allocation4], %s2877
          %v2883 = vld [vmem:[%s2882] sm:$0xff]
          %s2884 = scalar_lea.vmem [#allocation5], %s2877
          %v2885 = vld [vmem:[%s2884] sm:$0xff]
          %2886 = vxpose.xlu0.b32.start [1/16] %v2883, 128
          %2887 = vxpose.xlu0.b32.cont [2/16] 0.0, 128
          %2888 = vxpose.xlu0.b32.cont [3/16] 0.0, 128
          %2889 = vxpose.xlu0.b32.cont [4/16] 0.0, 128
          %2890 = vxpose.xlu0.b32.cont [5/16] 0.0, 128
          %2891 = vxpose.xlu0.b32.cont [6/16] 0.0, 128
          %2892 = vxpose.xlu0.b32.cont [7/16] 0.0, 128
          %2893 = vxpose.xlu0.b32.cont [8/16] 0.0, 128
          %2894 = vxpose.xlu0.b32.cont [9/16] 0.0, 128
          %2895 = vxpose.xlu0.b32.cont [10/16] 0.0, 128
          %2896 = vxpose.xlu0.b32.cont [11/16] 0.0, 128
          %2897 = vxpose.xlu0.b32.cont [12/16] 0.0, 128
          %2898 = vxpose.xlu0.b32.cont [13/16] 0.0, 128
          %2899 = vxpose.xlu0.b32.cont [14/16] 0.0, 128
          %2900 = vxpose.xlu0.b32.cont [15/16] 0.0, 128
          %2901 = vxpose.xlu0.b32.end [16/16] 0.0, 128
          %v2902 = vpop.trf.xlu0
          %v2903 = vpop.trf.xlu0
          %v2904 = vpop.trf.xlu0
          %v2905 = vpop.trf.xlu0
          %v2906 = vpop.trf.xlu0
          %v2907 = vpop.trf.xlu0
          %v2908 = vpop.trf.xlu0
          %v2909 = vpop.trf.xlu0
          %v2910 = vpop.trf.xlu0
          %v2911 = vpop.trf.xlu0
          %v2912 = vpop.trf.xlu0
          %v2913 = vpop.trf.xlu0
          %v2914 = vpop.trf.xlu0
          %v2915 = vpop.trf.xlu0
          %v2916 = vpop.trf.xlu0
          %v2917 = vpop.trf.xlu0
          %v2918 = vlaneseq
          %v2919 = vshrl.u32 %v2918, 7
          %v2920 = vsub.s32 0, %v2919
          %v2921 = vrot.slane %v2879, %v2920
          %v2922 = vmul.f32 %v2921, %v2483
          %v2923 = vmul.f32 %v2921, %v2484
          %v2924 = vmul.f32 %v2922, 1.442695
          %v2925 = vpow.pop %v2924
          %v2926 = vmul.f32 %v2923, 1.442695
          %v2927 = vpow.pop %v2926
          %v2928 = vlaneseq
          %v2929 = vshrl.u32 %v2928, 7
          %v2930 = vsub.s32 1, %v2929
          %v2931 = vrot.slane %v2879, %v2930
          %v2932 = vmul.f32 %v2931, %v2483
          %v2933 = vmul.f32 %v2931, %v2484
          %v2934 = vmul.f32 %v2932, 1.442695
          %v2935 = vpow.pop %v2934
          %v2936 = vmul.f32 %v2933, 1.442695
          %v2937 = vpow.pop %v2936
          %v2938 = vlaneseq
          %v2939 = vshrl.u32 %v2938, 7
          %v2940 = vsub.s32 2, %v2939
          %v2941 = vrot.slane %v2879, %v2940
          %v2942 = vmul.f32 %v2941, %v2483
          %v2943 = vmul.f32 %v2941, %v2484
          %v2944 = vmul.f32 %v2942, 1.442695
          %v2945 = vpow.pop %v2944
          %v2946 = vmul.f32 %v2943, 1.442695
          %v2947 = vpow.pop %v2946
          %v2948 = vlaneseq
          %v2949 = vshrl.u32 %v2948, 7
          %v2950 = vsub.s32 3, %v2949
          %v2951 = vrot.slane %v2879, %v2950
          %v2952 = vmul.f32 %v2951, %v2483
          %v2953 = vmul.f32 %v2951, %v2484
          %v2954 = vmul.f32 %v2952, 1.442695
          %v2955 = vpow.pop %v2954
          %v2956 = vmul.f32 %v2953, 1.442695
          %v2957 = vpow.pop %v2956
          %v2958 = vlaneseq
          %v2959 = vshrl.u32 %v2958, 7
          %v2960 = vsub.s32 4, %v2959
          %v2961 = vrot.slane %v2879, %v2960
          %v2962 = vmul.f32 %v2961, %v2483
          %v2963 = vmul.f32 %v2961, %v2484
          %v2964 = vmul.f32 %v2962, 1.442695
          %v2965 = vpow.pop %v2964
          %v2966 = vmul.f32 %v2963, 1.442695
          %v2967 = vpow.pop %v2966
          %v2968 = vlaneseq
          %v2969 = vshrl.u32 %v2968, 7
          %v2970 = vsub.s32 5, %v2969
          %v2971 = vrot.slane %v2879, %v2970
          %v2972 = vmul.f32 %v2971, %v2483
          %v2973 = vmul.f32 %v2971, %v2484
          %v2974 = vmul.f32 %v2972, 1.442695
          %v2975 = vpow.pop %v2974
          %v2976 = vmul.f32 %v2973, 1.442695
          %v2977 = vpow.pop %v2976
          %v2978 = vlaneseq
          %v2979 = vshrl.u32 %v2978, 7
          %v2980 = vsub.s32 6, %v2979
          %v2981 = vrot.slane %v2879, %v2980
          %v2982 = vmul.f32 %v2981, %v2483
          %v2983 = vmul.f32 %v2981, %v2484
          %v2984 = vmul.f32 %v2982, 1.442695
          %v2985 = vpow.pop %v2984
          %v2986 = vmul.f32 %v2983, 1.442695
          %v2987 = vpow.pop %v2986
          %v2988 = vlaneseq
          %v2989 = vshrl.u32 %v2988, 7
          %v2990 = vsub.s32 7, %v2989
          %v2991 = vrot.slane %v2879, %v2990
          %v2992 = vmul.f32 %v2991, %v2483
          %v2993 = vmul.f32 %v2991, %v2484
          %v2994 = vmul.f32 %v2992, 1.442695
          %v2995 = vpow.pop %v2994
          %v2996 = vmul.f32 %v2993, 1.442695
          %v2997 = vpow.pop %v2996
          %2999 = vset.pattern.permute.xlu0 0
          %3000 = vperm.xlu0 %2999, %v2902
          %v3001 = vpop.permute.xlu0 %3000
          %3004 = vset.pattern.permute.xlu0 0
          %3005 = vperm.xlu0 %3004, %v2903
          %v3006 = vpop.permute.xlu0 %3005
          %v3008 = vlaneseq
          %v3009 = vshrl.u32 %v3008, 7
          %v3010 = vsub.s32 0, %v3009
          %v3011 = vrot.slane %v2881, %v3010
          %v3012 = vmul.f32 %v3001, %v3011
          %v3013 = vmul.f32 %v3006, %v3011
          %3014 = vset.pattern.permute.xlu0 1
          %3015 = vperm.xlu0 %3014, %v2902
          %v3016 = vpop.permute.xlu0 %3015
          %3018 = vset.pattern.permute.xlu0 1
          %3019 = vperm.xlu0 %3018, %v2903
          %v3020 = vpop.permute.xlu0 %3019
          %v3022 = vlaneseq
          %v3023 = vshrl.u32 %v3022, 7
          %v3024 = vsub.s32 1, %v3023
          %v3025 = vrot.slane %v2881, %v3024
          %v3026 = vmul.f32 %v3016, %v3025
          %v3027 = vmul.f32 %v3020, %v3025
          %3028 = vset.pattern.permute.xlu0 2
          %3029 = vperm.xlu0 %3028, %v2902
          %v3030 = vpop.permute.xlu0 %3029
          %3032 = vset.pattern.permute.xlu0 2
          %3033 = vperm.xlu0 %3032, %v2903
          %v3034 = vpop.permute.xlu0 %3033
          %v3036 = vlaneseq
          %v3037 = vshrl.u32 %v3036, 7
          %v3038 = vsub.s32 2, %v3037
          %v3039 = vrot.slane %v2881, %v3038
          %v3040 = vmul.f32 %v3030, %v3039
          %v3041 = vmul.f32 %v3034, %v3039
          %3042 = vset.pattern.permute.xlu0 3
          %3043 = vperm.xlu0 %3042, %v2902
          %v3044 = vpop.permute.xlu0 %3043
          %3046 = vset.pattern.permute.xlu0 3
          %3047 = vperm.xlu0 %3046, %v2903
          %v3048 = vpop.permute.xlu0 %3047
          %v3050 = vlaneseq
          %v3051 = vshrl.u32 %v3050, 7
          %v3052 = vsub.s32 3, %v3051
          %v3053 = vrot.slane %v2881, %v3052
          %v3054 = vmul.f32 %v3044, %v3053
          %v3055 = vmul.f32 %v3048, %v3053
          %3056 = vset.pattern.permute.xlu0 4
          %3057 = vperm.xlu0 %3056, %v2902
          %v3058 = vpop.permute.xlu0 %3057
          %3060 = vset.pattern.permute.xlu0 4
          %3061 = vperm.xlu0 %3060, %v2903
          %v3062 = vpop.permute.xlu0 %3061
          %v3064 = vlaneseq
          %v3065 = vshrl.u32 %v3064, 7
          %v3066 = vsub.s32 4, %v3065
          %v3067 = vrot.slane %v2881, %v3066
          %v3068 = vmul.f32 %v3058, %v3067
          %v3069 = vmul.f32 %v3062, %v3067
          %3070 = vset.pattern.permute.xlu0 5
          %3071 = vperm.xlu0 %3070, %v2902
          %v3072 = vpop.permute.xlu0 %3071
          %3074 = vset.pattern.permute.xlu0 5
          %3075 = vperm.xlu0 %3074, %v2903
          %v3076 = vpop.permute.xlu0 %3075
          %v3078 = vlaneseq
          %v3079 = vshrl.u32 %v3078, 7
          %v3080 = vsub.s32 5, %v3079
          %v3081 = vrot.slane %v2881, %v3080
          %v3082 = vmul.f32 %v3072, %v3081
          %v3083 = vmul.f32 %v3076, %v3081
          %3084 = vset.pattern.permute.xlu0 6
          %3085 = vperm.xlu0 %3084, %v2902
          %v3086 = vpop.permute.xlu0 %3085
          %3088 = vset.pattern.permute.xlu0 6
          %3089 = vperm.xlu0 %3088, %v2903
          %v3090 = vpop.permute.xlu0 %3089
          %v3092 = vlaneseq
          %v3093 = vshrl.u32 %v3092, 7
          %v3094 = vsub.s32 6, %v3093
          %v3095 = vrot.slane %v2881, %v3094
          %v3096 = vmul.f32 %v3086, %v3095
          %v3097 = vmul.f32 %v3090, %v3095
          %3098 = vset.pattern.permute.xlu0 7
          %3099 = vperm.xlu0 %3098, %v2902
          %v3100 = vpop.permute.xlu0 %3099
          %3102 = vset.pattern.permute.xlu0 7
          %3103 = vperm.xlu0 %3102, %v2903
          %v3104 = vpop.permute.xlu0 %3103
          %v3106 = vlaneseq
          %v3107 = vshrl.u32 %v3106, 7
          %v3108 = vsub.s32 7, %v3107
          %v3109 = vrot.slane %v2881, %v3108
          %v3110 = vmul.f32 %v3100, %v3109
          %v3111 = vmul.f32 %v3104, %v3109
          %v3112 = vmul.f32 %v2925, %v2875
          %v3113 = vmul.f32 %v2927, %v2876
          %v3114 = vadd.f32 %v3112, %v3012
          %v3115 = vadd.f32 %v3113, %v3013
          %v3117 = vsel %vm418, %v2885, 0
          %3119 = vmatprep.subr.mxu0 0.0
          %3120 = vmatpush1.msra.mxu0 0.0
          %3121 = vmatprep.subr.mxu0 0.0
          %3122 = vmatpush1.msra.mxu0 0.0
          %3123 = vmatprep.subr.mxu0 0.0
          %3124 = vmatpush1.msra.mxu0 0.0
          %3125 = vmatprep.subr.mxu0 0.0
          %3126 = vmatpush1.msra.mxu0 0.0
          %3127 = vmatprep.subr.mxu0 0.0
          %3128 = vmatpush1.msra.mxu0 0.0
          %3129 = vmatprep.subr.mxu0 0.0
          %3130 = vmatpush1.msra.mxu0 0.0
          %3131 = vmatprep.subr.mxu0 0.0
          %3132 = vmatpush1.msra.mxu0 0.0
          %3133 = vmatprep.subr.mxu0 0.0
          %3134 = vmatpush1.msra.mxu0 0.0
          %3135 = vmatprep.subr.mxu0 0.0
          %3136 = vmatpush1.msra.mxu0 0.0
          %3137 = vmatprep.subr.mxu0 0.0
          %3138 = vmatpush1.msra.mxu0 0.0
          %3139 = vmatprep.subr.mxu0 0.0
          %3140 = vmatpush1.msra.mxu0 0.0
          %3141 = vmatprep.subr.mxu0 0.0
          %3142 = vmatpush1.msra.mxu0 0.0
          %3143 = vmatprep.subr.mxu0 0.0
          %3144 = vmatpush1.msra.mxu0 0.0
          %3145 = vmatprep.subr.mxu0 0.0
          %3146 = vmatpush1.msra.mxu0 0.0
          %3147 = vmatprep.subr.mxu0 0.0
          %3148 = vmatpush1.msra.mxu0 %v3115
          %3149 = vmatprep.subr.mxu0 0.0
          %3150 = vmatpush1.msra.mxu0 %v3114
          %3151 = vmatprep.subr.mxu0 0.0
          %3152 = vmatpush2.msra.mxu0 0.0
          %3153 = vmatprep.subr.mxu0 0.0
          %3154 = vmatpush2.msra.mxu0 0.0
          %3155 = vmatprep.subr.mxu0 0.0
          %3156 = vmatpush2.msra.mxu0 0.0
          %3157 = vmatprep.subr.mxu0 0.0
          %3158 = vmatpush2.msra.mxu0 0.0
          %3159 = vmatprep.subr.mxu0 0.0
          %3160 = vmatpush2.msra.mxu0 0.0
          %3161 = vmatprep.subr.mxu0 0.0
          %3162 = vmatpush2.msra.mxu0 0.0
          %3163 = vmatprep.subr.mxu0 0.0
          %3164 = vmatpush2.msra.mxu0 0.0
          %3165 = vmatprep.subr.mxu0 0.0
          %3166 = vmatpush2.msra.mxu0 0.0
          %3167 = vmatprep.subr.mxu0 0.0
          %3168 = vmatpush2.msra.mxu0 0.0
          %3169 = vmatprep.subr.mxu0 0.0
          %3170 = vmatpush2.msra.mxu0 0.0
          %3171 = vmatprep.subr.mxu0 0.0
          %3172 = vmatpush2.msra.mxu0 0.0
          %3173 = vmatprep.subr.mxu0 0.0
          %3174 = vmatpush2.msra.mxu0 0.0
          %3175 = vmatprep.subr.mxu0 0.0
          %3176 = vmatpush2.msra.mxu0 0.0
          %3177 = vmatprep.subr.mxu0 0.0
          %3178 = vmatpush2.msra.mxu0 0.0
          %3179 = vmatprep.subr.mxu0 0.0
          %3180 = vmatpush2.msra.mxu0 0.0
          %3181 = vmatprep.subr.mxu0 0.0
          %3182 = vmatpush2.msra.mxu0 0.0
          %3183 = vmatprep.mubr.f32.mxu0 0.0
          %3184 = vmatmul.mubr.f32.gmra.mxu0 %v3117
          %v3185 = vpop.f32.mrf.mxu0
          %v3186 = vadd.f32 0.0, %v3185
          %v3187 = vpop.f32.mrf.mxu0
          %3188 = vdwg.mxu0
          %v3189 = vmul.f32 %v2935, %v3114
          %v3190 = vmul.f32 %v2937, %v3115
          %v3191 = vadd.f32 %v3189, %v3026
          %v3192 = vadd.f32 %v3190, %v3027
          %v3193 = vrot.slane %v2885, 1
          %v3194 = vsel %vm418, %v3193, 0
          %3196 = vmatprep.subr.mxu0 0.0
          %3197 = vmatpush1.msra.mxu0 0.0
          %3198 = vmatprep.subr.mxu0 0.0
          %3199 = vmatpush1.msra.mxu0 0.0
          %3200 = vmatprep.subr.mxu0 0.0
          %3201 = vmatpush1.msra.mxu0 0.0
          %3202 = vmatprep.subr.mxu0 0.0
          %3203 = vmatpush1.msra.mxu0 0.0
          %3204 = vmatprep.subr.mxu0 0.0
          %3205 = vmatpush1.msra.mxu0 0.0
          %3206 = vmatprep.subr.mxu0 0.0
          %3207 = vmatpush1.msra.mxu0 0.0
          %3208 = vmatprep.subr.mxu0 0.0
          %3209 = vmatpush1.msra.mxu0 0.0
          %3210 = vmatprep.subr.mxu0 0.0
          %3211 = vmatpush1.msra.mxu0 0.0
          %3212 = vmatprep.subr.mxu0 0.0
          %3213 = vmatpush1.msra.mxu0 0.0
          %3214 = vmatprep.subr.mxu0 0.0
          %3215 = vmatpush1.msra.mxu0 0.0
          %3216 = vmatprep.subr.mxu0 0.0
          %3217 = vmatpush1.msra.mxu0 0.0
          %3218 = vmatprep.subr.mxu0 0.0
          %3219 = vmatpush1.msra.mxu0 0.0
          %3220 = vmatprep.subr.mxu0 0.0
          %3221 = vmatpush1.msra.mxu0 0.0
          %3222 = vmatprep.subr.mxu0 0.0
          %3223 = vmatpush1.msra.mxu0 0.0
          %3224 = vmatprep.subr.mxu0 0.0
          %3225 = vmatpush1.msra.mxu0 %v3192
          %3226 = vmatprep.subr.mxu0 0.0
          %3227 = vmatpush1.msra.mxu0 %v3191
          %3228 = vmatprep.subr.mxu0 0.0
          %3229 = vmatpush2.msra.mxu0 0.0
          %3230 = vmatprep.subr.mxu0 0.0
          %3231 = vmatpush2.msra.mxu0 0.0
          %3232 = vmatprep.subr.mxu0 0.0
          %3233 = vmatpush2.msra.mxu0 0.0
          %3234 = vmatprep.subr.mxu0 0.0
          %3235 = vmatpush2.msra.mxu0 0.0
          %3236 = vmatprep.subr.mxu0 0.0
          %3237 = vmatpush2.msra.mxu0 0.0
          %3238 = vmatprep.subr.mxu0 0.0
          %3239 = vmatpush2.msra.mxu0 0.0
          %3240 = vmatprep.subr.mxu0 0.0
          %3241 = vmatpush2.msra.mxu0 0.0
          %3242 = vmatprep.subr.mxu0 0.0
          %3243 = vmatpush2.msra.mxu0 0.0
          %3244 = vmatprep.subr.mxu0 0.0
          %3245 = vmatpush2.msra.mxu0 0.0
          %3246 = vmatprep.subr.mxu0 0.0
          %3247 = vmatpush2.msra.mxu0 0.0
          %3248 = vmatprep.subr.mxu0 0.0
          %3249 = vmatpush2.msra.mxu0 0.0
          %3250 = vmatprep.subr.mxu0 0.0
          %3251 = vmatpush2.msra.mxu0 0.0
          %3252 = vmatprep.subr.mxu0 0.0
          %3253 = vmatpush2.msra.mxu0 0.0
          %3254 = vmatprep.subr.mxu0 0.0
          %3255 = vmatpush2.msra.mxu0 0.0
          %3256 = vmatprep.subr.mxu0 0.0
          %3257 = vmatpush2.msra.mxu0 0.0
          %3258 = vmatprep.subr.mxu0 0.0
          %3259 = vmatpush2.msra.mxu0 0.0
          %3260 = vmatprep.mubr.f32.mxu0 0.0
          %3261 = vmatmul.mubr.f32.gmra.mxu0 %v3194
          %v3262 = vpop.f32.mrf.mxu0
          %v3263 = vadd.f32 0.0, %v3262
          %v3264 = vpop.f32.mrf.mxu0
          %3265 = vdwg.mxu0
          %v3266 = vmul.f32 %v2945, %v3191
          %v3267 = vmul.f32 %v2947, %v3192
          %v3268 = vadd.f32 %v3266, %v3040
          %v3269 = vadd.f32 %v3267, %v3041
          %v3270 = vrot.slane %v2885, 2
          %v3271 = vsel %vm418, %v3270, 0
          %3273 = vmatprep.subr.mxu0 0.0
          %3274 = vmatpush1.msra.mxu0 0.0
          %3275 = vmatprep.subr.mxu0 0.0
          %3276 = vmatpush1.msra.mxu0 0.0
          %3277 = vmatprep.subr.mxu0 0.0
          %3278 = vmatpush1.msra.mxu0 0.0
          %3279 = vmatprep.subr.mxu0 0.0
          %3280 = vmatpush1.msra.mxu0 0.0
          %3281 = vmatprep.subr.mxu0 0.0
          %3282 = vmatpush1.msra.mxu0 0.0
          %3283 = vmatprep.subr.mxu0 0.0
          %3284 = vmatpush1.msra.mxu0 0.0
          %3285 = vmatprep.subr.mxu0 0.0
          %3286 = vmatpush1.msra.mxu0 0.0
          %3287 = vmatprep.subr.mxu0 0.0
          %3288 = vmatpush1.msra.mxu0 0.0
          %3289 = vmatprep.subr.mxu0 0.0
          %3290 = vmatpush1.msra.mxu0 0.0
          %3291 = vmatprep.subr.mxu0 0.0
          %3292 = vmatpush1.msra.mxu0 0.0
          %3293 = vmatprep.subr.mxu0 0.0
          %3294 = vmatpush1.msra.mxu0 0.0
          %3295 = vmatprep.subr.mxu0 0.0
          %3296 = vmatpush1.msra.mxu0 0.0
          %3297 = vmatprep.subr.mxu0 0.0
          %3298 = vmatpush1.msra.mxu0 0.0
          %3299 = vmatprep.subr.mxu0 0.0
          %3300 = vmatpush1.msra.mxu0 0.0
          %3301 = vmatprep.subr.mxu0 0.0
          %3302 = vmatpush1.msra.mxu0 %v3269
          %3303 = vmatprep.subr.mxu0 0.0
          %3304 = vmatpush1.msra.mxu0 %v3268
          %3305 = vmatprep.subr.mxu0 0.0
          %3306 = vmatpush2.msra.mxu0 0.0
          %3307 = vmatprep.subr.mxu0 0.0
          %3308 = vmatpush2.msra.mxu0 0.0
          %3309 = vmatprep.subr.mxu0 0.0
          %3310 = vmatpush2.msra.mxu0 0.0
          %3311 = vmatprep.subr.mxu0 0.0
          %3312 = vmatpush2.msra.mxu0 0.0
          %3313 = vmatprep.subr.mxu0 0.0
          %3314 = vmatpush2.msra.mxu0 0.0
          %3315 = vmatprep.subr.mxu0 0.0
          %3316 = vmatpush2.msra.mxu0 0.0
          %3317 = vmatprep.subr.mxu0 0.0
          %3318 = vmatpush2.msra.mxu0 0.0
          %3319 = vmatprep.subr.mxu0 0.0
          %3320 = vmatpush2.msra.mxu0 0.0
          %3321 = vmatprep.subr.mxu0 0.0
          %3322 = vmatpush2.msra.mxu0 0.0
          %3323 = vmatprep.subr.mxu0 0.0
          %3324 = vmatpush2.msra.mxu0 0.0
          %3325 = vmatprep.subr.mxu0 0.0
          %3326 = vmatpush2.msra.mxu0 0.0
          %3327 = vmatprep.subr.mxu0 0.0
          %3328 = vmatpush2.msra.mxu0 0.0
          %3329 = vmatprep.subr.mxu0 0.0
          %3330 = vmatpush2.msra.mxu0 0.0
          %3331 = vmatprep.subr.mxu0 0.0
          %3332 = vmatpush2.msra.mxu0 0.0
          %3333 = vmatprep.subr.mxu0 0.0
          %3334 = vmatpush2.msra.mxu0 0.0
          %3335 = vmatprep.subr.mxu0 0.0
          %3336 = vmatpush2.msra.mxu0 0.0
          %3337 = vmatprep.mubr.f32.mxu0 0.0
          %3338 = vmatmul.mubr.f32.gmra.mxu0 %v3271
          %v3339 = vpop.f32.mrf.mxu0
          %v3340 = vadd.f32 0.0, %v3339
          %v3341 = vpop.f32.mrf.mxu0
          %3342 = vdwg.mxu0
          %v3343 = vmul.f32 %v2955, %v3268
          %v3344 = vmul.f32 %v2957, %v3269
          %v3345 = vadd.f32 %v3343, %v3054
          %v3346 = vadd.f32 %v3344, %v3055
          %v3347 = vrot.slane %v2885, 3
          %v3348 = vsel %vm418, %v3347, 0
          %3350 = vmatprep.subr.mxu0 0.0
          %3351 = vmatpush1.msra.mxu0 0.0
          %3352 = vmatprep.subr.mxu0 0.0
          %3353 = vmatpush1.msra.mxu0 0.0
          %3354 = vmatprep.subr.mxu0 0.0
          %3355 = vmatpush1.msra.mxu0 0.0
          %3356 = vmatprep.subr.mxu0 0.0
          %3357 = vmatpush1.msra.mxu0 0.0
          %3358 = vmatprep.subr.mxu0 0.0
          %3359 = vmatpush1.msra.mxu0 0.0
          %3360 = vmatprep.subr.mxu0 0.0
          %3361 = vmatpush1.msra.mxu0 0.0
          %3362 = vmatprep.subr.mxu0 0.0
          %3363 = vmatpush1.msra.mxu0 0.0
          %3364 = vmatprep.subr.mxu0 0.0
          %3365 = vmatpush1.msra.mxu0 0.0
          %3366 = vmatprep.subr.mxu0 0.0
          %3367 = vmatpush1.msra.mxu0 0.0
          %3368 = vmatprep.subr.mxu0 0.0
          %3369 = vmatpush1.msra.mxu0 0.0
          %3370 = vmatprep.subr.mxu0 0.0
          %3371 = vmatpush1.msra.mxu0 0.0
          %3372 = vmatprep.subr.mxu0 0.0
          %3373 = vmatpush1.msra.mxu0 0.0
          %3374 = vmatprep.subr.mxu0 0.0
          %3375 = vmatpush1.msra.mxu0 0.0
          %3376 = vmatprep.subr.mxu0 0.0
          %3377 = vmatpush1.msra.mxu0 0.0
          %3378 = vmatprep.subr.mxu0 0.0
          %3379 = vmatpush1.msra.mxu0 %v3346
          %3380 = vmatprep.subr.mxu0 0.0
          %3381 = vmatpush1.msra.mxu0 %v3345
          %3382 = vmatprep.subr.mxu0 0.0
          %3383 = vmatpush2.msra.mxu0 0.0
          %3384 = vmatprep.subr.mxu0 0.0
          %3385 = vmatpush2.msra.mxu0 0.0
          %3386 = vmatprep.subr.mxu0 0.0
          %3387 = vmatpush2.msra.mxu0 0.0
          %3388 = vmatprep.subr.mxu0 0.0
          %3389 = vmatpush2.msra.mxu0 0.0
          %3390 = vmatprep.subr.mxu0 0.0
          %3391 = vmatpush2.msra.mxu0 0.0
          %3392 = vmatprep.subr.mxu0 0.0
          %3393 = vmatpush2.msra.mxu0 0.0
          %3394 = vmatprep.subr.mxu0 0.0
          %3395 = vmatpush2.msra.mxu0 0.0
          %3396 = vmatprep.subr.mxu0 0.0
          %3397 = vmatpush2.msra.mxu0 0.0
          %3398 = vmatprep.subr.mxu0 0.0
          %3399 = vmatpush2.msra.mxu0 0.0
          %3400 = vmatprep.subr.mxu0 0.0
          %3401 = vmatpush2.msra.mxu0 0.0
          %3402 = vmatprep.subr.mxu0 0.0
          %3403 = vmatpush2.msra.mxu0 0.0
          %3404 = vmatprep.subr.mxu0 0.0
          %3405 = vmatpush2.msra.mxu0 0.0
          %3406 = vmatprep.subr.mxu0 0.0
          %3407 = vmatpush2.msra.mxu0 0.0
          %3408 = vmatprep.subr.mxu0 0.0
          %3409 = vmatpush2.msra.mxu0 0.0
          %3410 = vmatprep.subr.mxu0 0.0
          %3411 = vmatpush2.msra.mxu0 0.0
          %3412 = vmatprep.subr.mxu0 0.0
          %3413 = vmatpush2.msra.mxu0 0.0
          %3414 = vmatprep.mubr.f32.mxu0 0.0
          %3415 = vmatmul.mubr.f32.gmra.mxu0 %v3348
          %v3416 = vpop.f32.mrf.mxu0
          %v3417 = vadd.f32 0.0, %v3416
          %v3418 = vpop.f32.mrf.mxu0
          %3419 = vdwg.mxu0
          %v3420 = vmul.f32 %v2965, %v3345
          %v3421 = vmul.f32 %v2967, %v3346
          %v3422 = vadd.f32 %v3420, %v3068
          %v3423 = vadd.f32 %v3421, %v3069
          %v3424 = vrot.slane %v2885, 4
          %v3425 = vsel %vm418, %v3424, 0
          %3427 = vmatprep.subr.mxu0 0.0
          %3428 = vmatpush1.msra.mxu0 0.0
          %3429 = vmatprep.subr.mxu0 0.0
          %3430 = vmatpush1.msra.mxu0 0.0
          %3431 = vmatprep.subr.mxu0 0.0
          %3432 = vmatpush1.msra.mxu0 0.0
          %3433 = vmatprep.subr.mxu0 0.0
          %3434 = vmatpush1.msra.mxu0 0.0
          %3435 = vmatprep.subr.mxu0 0.0
          %3436 = vmatpush1.msra.mxu0 0.0
          %3437 = vmatprep.subr.mxu0 0.0
          %3438 = vmatpush1.msra.mxu0 0.0
          %3439 = vmatprep.subr.mxu0 0.0
          %3440 = vmatpush1.msra.mxu0 0.0
          %3441 = vmatprep.subr.mxu0 0.0
          %3442 = vmatpush1.msra.mxu0 0.0
          %3443 = vmatprep.subr.mxu0 0.0
          %3444 = vmatpush1.msra.mxu0 0.0
          %3445 = vmatprep.subr.mxu0 0.0
          %3446 = vmatpush1.msra.mxu0 0.0
          %3447 = vmatprep.subr.mxu0 0.0
          %3448 = vmatpush1.msra.mxu0 0.0
          %3449 = vmatprep.subr.mxu0 0.0
          %3450 = vmatpush1.msra.mxu0 0.0
          %3451 = vmatprep.subr.mxu0 0.0
          %3452 = vmatpush1.msra.mxu0 0.0
          %3453 = vmatprep.subr.mxu0 0.0
          %3454 = vmatpush1.msra.mxu0 0.0
          %3455 = vmatprep.subr.mxu0 0.0
          %3456 = vmatpush1.msra.mxu0 %v3423
          %3457 = vmatprep.subr.mxu0 0.0
          %3458 = vmatpush1.msra.mxu0 %v3422
          %3459 = vmatprep.subr.mxu0 0.0
          %3460 = vmatpush2.msra.mxu0 0.0
          %3461 = vmatprep.subr.mxu0 0.0
          %3462 = vmatpush2.msra.mxu0 0.0
          %3463 = vmatprep.subr.mxu0 0.0
          %3464 = vmatpush2.msra.mxu0 0.0
          %3465 = vmatprep.subr.mxu0 0.0
          %3466 = vmatpush2.msra.mxu0 0.0
          %3467 = vmatprep.subr.mxu0 0.0
          %3468 = vmatpush2.msra.mxu0 0.0
          %3469 = vmatprep.subr.mxu0 0.0
          %3470 = vmatpush2.msra.mxu0 0.0
          %3471 = vmatprep.subr.mxu0 0.0
          %3472 = vmatpush2.msra.mxu0 0.0
          %3473 = vmatprep.subr.mxu0 0.0
          %3474 = vmatpush2.msra.mxu0 0.0
          %3475 = vmatprep.subr.mxu0 0.0
          %3476 = vmatpush2.msra.mxu0 0.0
          %3477 = vmatprep.subr.mxu0 0.0
          %3478 = vmatpush2.msra.mxu0 0.0
          %3479 = vmatprep.subr.mxu0 0.0
          %3480 = vmatpush2.msra.mxu0 0.0
          %3481 = vmatprep.subr.mxu0 0.0
          %3482 = vmatpush2.msra.mxu0 0.0
          %3483 = vmatprep.subr.mxu0 0.0
          %3484 = vmatpush2.msra.mxu0 0.0
          %3485 = vmatprep.subr.mxu0 0.0
          %3486 = vmatpush2.msra.mxu0 0.0
          %3487 = vmatprep.subr.mxu0 0.0
          %3488 = vmatpush2.msra.mxu0 0.0
          %3489 = vmatprep.subr.mxu0 0.0
          %3490 = vmatpush2.msra.mxu0 0.0
          %3491 = vmatprep.mubr.f32.mxu0 0.0
          %3492 = vmatmul.mubr.f32.gmra.mxu0 %v3425
          %v3493 = vpop.f32.mrf.mxu0
          %v3494 = vadd.f32 0.0, %v3493
          %v3495 = vpop.f32.mrf.mxu0
          %3496 = vdwg.mxu0
          %v3497 = vmul.f32 %v2975, %v3422
          %v3498 = vmul.f32 %v2977, %v3423
          %v3499 = vadd.f32 %v3497, %v3082
          %v3500 = vadd.f32 %v3498, %v3083
          %v3501 = vrot.slane %v2885, 5
          %v3502 = vsel %vm418, %v3501, 0
          %3504 = vmatprep.subr.mxu0 0.0
          %3505 = vmatpush1.msra.mxu0 0.0
          %3506 = vmatprep.subr.mxu0 0.0
          %3507 = vmatpush1.msra.mxu0 0.0
          %3508 = vmatprep.subr.mxu0 0.0
          %3509 = vmatpush1.msra.mxu0 0.0
          %3510 = vmatprep.subr.mxu0 0.0
          %3511 = vmatpush1.msra.mxu0 0.0
          %3512 = vmatprep.subr.mxu0 0.0
          %3513 = vmatpush1.msra.mxu0 0.0
          %3514 = vmatprep.subr.mxu0 0.0
          %3515 = vmatpush1.msra.mxu0 0.0
          %3516 = vmatprep.subr.mxu0 0.0
          %3517 = vmatpush1.msra.mxu0 0.0
          %3518 = vmatprep.subr.mxu0 0.0
          %3519 = vmatpush1.msra.mxu0 0.0
          %3520 = vmatprep.subr.mxu0 0.0
          %3521 = vmatpush1.msra.mxu0 0.0
          %3522 = vmatprep.subr.mxu0 0.0
          %3523 = vmatpush1.msra.mxu0 0.0
          %3524 = vmatprep.subr.mxu0 0.0
          %3525 = vmatpush1.msra.mxu0 0.0
          %3526 = vmatprep.subr.mxu0 0.0
          %3527 = vmatpush1.msra.mxu0 0.0
          %3528 = vmatprep.subr.mxu0 0.0
          %3529 = vmatpush1.msra.mxu0 0.0
          %3530 = vmatprep.subr.mxu0 0.0
          %3531 = vmatpush1.msra.mxu0 0.0
          %3532 = vmatprep.subr.mxu0 0.0
          %3533 = vmatpush1.msra.mxu0 %v3500
          %3534 = vmatprep.subr.mxu0 0.0
          %3535 = vmatpush1.msra.mxu0 %v3499
          %3536 = vmatprep.subr.mxu0 0.0
          %3537 = vmatpush2.msra.mxu0 0.0
          %3538 = vmatprep.subr.mxu0 0.0
          %3539 = vmatpush2.msra.mxu0 0.0
          %3540 = vmatprep.subr.mxu0 0.0
          %3541 = vmatpush2.msra.mxu0 0.0
          %3542 = vmatprep.subr.mxu0 0.0
          %3543 = vmatpush2.msra.mxu0 0.0
          %3544 = vmatprep.subr.mxu0 0.0
          %3545 = vmatpush2.msra.mxu0 0.0
          %3546 = vmatprep.subr.mxu0 0.0
          %3547 = vmatpush2.msra.mxu0 0.0
          %3548 = vmatprep.subr.mxu0 0.0
          %3549 = vmatpush2.msra.mxu0 0.0
          %3550 = vmatprep.subr.mxu0 0.0
          %3551 = vmatpush2.msra.mxu0 0.0
          %3552 = vmatprep.subr.mxu0 0.0
          %3553 = vmatpush2.msra.mxu0 0.0
          %3554 = vmatprep.subr.mxu0 0.0
          %3555 = vmatpush2.msra.mxu0 0.0
          %3556 = vmatprep.subr.mxu0 0.0
          %3557 = vmatpush2.msra.mxu0 0.0
          %3558 = vmatprep.subr.mxu0 0.0
          %3559 = vmatpush2.msra.mxu0 0.0
          %3560 = vmatprep.subr.mxu0 0.0
          %3561 = vmatpush2.msra.mxu0 0.0
          %3562 = vmatprep.subr.mxu0 0.0
          %3563 = vmatpush2.msra.mxu0 0.0
          %3564 = vmatprep.subr.mxu0 0.0
          %3565 = vmatpush2.msra.mxu0 0.0
          %3566 = vmatprep.subr.mxu0 0.0
          %3567 = vmatpush2.msra.mxu0 0.0
          %3568 = vmatprep.mubr.f32.mxu0 0.0
          %3569 = vmatmul.mubr.f32.gmra.mxu0 %v3502
          %v3570 = vpop.f32.mrf.mxu0
          %v3571 = vadd.f32 0.0, %v3570
          %v3572 = vpop.f32.mrf.mxu0
          %3573 = vdwg.mxu0
          %v3574 = vmul.f32 %v2985, %v3499
          %v3575 = vmul.f32 %v2987, %v3500
          %v3576 = vadd.f32 %v3574, %v3096
          %v3577 = vadd.f32 %v3575, %v3097
          %v3578 = vrot.slane %v2885, 6
          %v3579 = vsel %vm418, %v3578, 0
          %3581 = vmatprep.subr.mxu0 0.0
          %3582 = vmatpush1.msra.mxu0 0.0
          %3583 = vmatprep.subr.mxu0 0.0
          %3584 = vmatpush1.msra.mxu0 0.0
          %3585 = vmatprep.subr.mxu0 0.0
          %3586 = vmatpush1.msra.mxu0 0.0
          %3587 = vmatprep.subr.mxu0 0.0
          %3588 = vmatpush1.msra.mxu0 0.0
          %3589 = vmatprep.subr.mxu0 0.0
          %3590 = vmatpush1.msra.mxu0 0.0
          %3591 = vmatprep.subr.mxu0 0.0
          %3592 = vmatpush1.msra.mxu0 0.0
          %3593 = vmatprep.subr.mxu0 0.0
          %3594 = vmatpush1.msra.mxu0 0.0
          %3595 = vmatprep.subr.mxu0 0.0
          %3596 = vmatpush1.msra.mxu0 0.0
          %3597 = vmatprep.subr.mxu0 0.0
          %3598 = vmatpush1.msra.mxu0 0.0
          %3599 = vmatprep.subr.mxu0 0.0
          %3600 = vmatpush1.msra.mxu0 0.0
          %3601 = vmatprep.subr.mxu0 0.0
          %3602 = vmatpush1.msra.mxu0 0.0
          %3603 = vmatprep.subr.mxu0 0.0
          %3604 = vmatpush1.msra.mxu0 0.0
          %3605 = vmatprep.subr.mxu0 0.0
          %3606 = vmatpush1.msra.mxu0 0.0
          %3607 = vmatprep.subr.mxu0 0.0
          %3608 = vmatpush1.msra.mxu0 0.0
          %3609 = vmatprep.subr.mxu0 0.0
          %3610 = vmatpush1.msra.mxu0 %v3577
          %3611 = vmatprep.subr.mxu0 0.0
          %3612 = vmatpush1.msra.mxu0 %v3576
          %3613 = vmatprep.subr.mxu0 0.0
          %3614 = vmatpush2.msra.mxu0 0.0
          %3615 = vmatprep.subr.mxu0 0.0
          %3616 = vmatpush2.msra.mxu0 0.0
          %3617 = vmatprep.subr.mxu0 0.0
          %3618 = vmatpush2.msra.mxu0 0.0
          %3619 = vmatprep.subr.mxu0 0.0
          %3620 = vmatpush2.msra.mxu0 0.0
          %3621 = vmatprep.subr.mxu0 0.0
          %3622 = vmatpush2.msra.mxu0 0.0
          %3623 = vmatprep.subr.mxu0 0.0
          %3624 = vmatpush2.msra.mxu0 0.0
          %3625 = vmatprep.subr.mxu0 0.0
          %3626 = vmatpush2.msra.mxu0 0.0
          %3627 = vmatprep.subr.mxu0 0.0
          %3628 = vmatpush2.msra.mxu0 0.0
          %3629 = vmatprep.subr.mxu0 0.0
          %3630 = vmatpush2.msra.mxu0 0.0
          %3631 = vmatprep.subr.mxu0 0.0
          %3632 = vmatpush2.msra.mxu0 0.0
          %3633 = vmatprep.subr.mxu0 0.0
          %3634 = vmatpush2.msra.mxu0 0.0
          %3635 = vmatprep.subr.mxu0 0.0
          %3636 = vmatpush2.msra.mxu0 0.0
          %3637 = vmatprep.subr.mxu0 0.0
          %3638 = vmatpush2.msra.mxu0 0.0
          %3639 = vmatprep.subr.mxu0 0.0
          %3640 = vmatpush2.msra.mxu0 0.0
          %3641 = vmatprep.subr.mxu0 0.0
          %3642 = vmatpush2.msra.mxu0 0.0
          %3643 = vmatprep.subr.mxu0 0.0
          %3644 = vmatpush2.msra.mxu0 0.0
          %3645 = vmatprep.mubr.f32.mxu0 0.0
          %3646 = vmatmul.mubr.f32.gmra.mxu0 %v3579
          %v3647 = vpop.f32.mrf.mxu0
          %v3648 = vadd.f32 0.0, %v3647
          %v3649 = vpop.f32.mrf.mxu0
          %3650 = vdwg.mxu0
          %v3651 = vmul.f32 %v2995, %v3576
          %v3652 = vmul.f32 %v2997, %v3577
          %v3653 = vadd.f32 %v3651, %v3110
          %v3654 = vadd.f32 %v3652, %v3111
          %v3655 = vrot.slane %v2885, 7
          %v3656 = vsel %vm418, %v3655, 0
          %3658 = vmatprep.subr.mxu0 0.0
          %3659 = vmatpush1.msra.mxu0 0.0
          %3660 = vmatprep.subr.mxu0 0.0
          %3661 = vmatpush1.msra.mxu0 0.0
          %3662 = vmatprep.subr.mxu0 0.0
          %3663 = vmatpush1.msra.mxu0 0.0
          %3664 = vmatprep.subr.mxu0 0.0
          %3665 = vmatpush1.msra.mxu0 0.0
          %3666 = vmatprep.subr.mxu0 0.0
          %3667 = vmatpush1.msra.mxu0 0.0
          %3668 = vmatprep.subr.mxu0 0.0
          %3669 = vmatpush1.msra.mxu0 0.0
          %3670 = vmatprep.subr.mxu0 0.0
          %3671 = vmatpush1.msra.mxu0 0.0
          %3672 = vmatprep.subr.mxu0 0.0
          %3673 = vmatpush1.msra.mxu0 0.0
          %3674 = vmatprep.subr.mxu0 0.0
          %3675 = vmatpush1.msra.mxu0 0.0
          %3676 = vmatprep.subr.mxu0 0.0
          %3677 = vmatpush1.msra.mxu0 0.0
          %3678 = vmatprep.subr.mxu0 0.0
          %3679 = vmatpush1.msra.mxu0 0.0
          %3680 = vmatprep.subr.mxu0 0.0
          %3681 = vmatpush1.msra.mxu0 0.0
          %3682 = vmatprep.subr.mxu0 0.0
          %3683 = vmatpush1.msra.mxu0 0.0
          %3684 = vmatprep.subr.mxu0 0.0
          %3685 = vmatpush1.msra.mxu0 0.0
          %3686 = vmatprep.subr.mxu0 0.0
          %3687 = vmatpush1.msra.mxu0 %v3654
          %3688 = vmatprep.subr.mxu0 0.0
          %3689 = vmatpush1.msra.mxu0 %v3653
          %3690 = vmatprep.subr.mxu0 0.0
          %3691 = vmatpush2.msra.mxu0 0.0
          %3692 = vmatprep.subr.mxu0 0.0
          %3693 = vmatpush2.msra.mxu0 0.0
          %3694 = vmatprep.subr.mxu0 0.0
          %3695 = vmatpush2.msra.mxu0 0.0
          %3696 = vmatprep.subr.mxu0 0.0
          %3697 = vmatpush2.msra.mxu0 0.0
          %3698 = vmatprep.subr.mxu0 0.0
          %3699 = vmatpush2.msra.mxu0 0.0
          %3700 = vmatprep.subr.mxu0 0.0
          %3701 = vmatpush2.msra.mxu0 0.0
          %3702 = vmatprep.subr.mxu0 0.0
          %3703 = vmatpush2.msra.mxu0 0.0
          %3704 = vmatprep.subr.mxu0 0.0
          %3705 = vmatpush2.msra.mxu0 0.0
          %3706 = vmatprep.subr.mxu0 0.0
          %3707 = vmatpush2.msra.mxu0 0.0
          %3708 = vmatprep.subr.mxu0 0.0
          %3709 = vmatpush2.msra.mxu0 0.0
          %3710 = vmatprep.subr.mxu0 0.0
          %3711 = vmatpush2.msra.mxu0 0.0
          %3712 = vmatprep.subr.mxu0 0.0
          %3713 = vmatpush2.msra.mxu0 0.0
          %3714 = vmatprep.subr.mxu0 0.0
          %3715 = vmatpush2.msra.mxu0 0.0
          %3716 = vmatprep.subr.mxu0 0.0
          %3717 = vmatpush2.msra.mxu0 0.0
          %3718 = vmatprep.subr.mxu0 0.0
          %3719 = vmatpush2.msra.mxu0 0.0
          %3720 = vmatprep.subr.mxu0 0.0
          %3721 = vmatpush2.msra.mxu0 0.0
          %3722 = vmatprep.mubr.f32.mxu0 0.0
          %3723 = vmatmul.mubr.f32.gmra.mxu0 %v3656
          %v3724 = vpop.f32.mrf.mxu0
          %v3725 = vadd.f32 0.0, %v3724
          %v3726 = vpop.f32.mrf.mxu0
          %3727 = vdwg.mxu0
          %v3729 = vrot.slane %v3263, 7
          %v3732 = vrot.slane %v3340, 6
          %v3735 = vrot.slane %v3417, 5
          %v3738 = vrot.slane %v3494, 4
          %v3741 = vrot.slane %v3571, 3
          %v3744 = vrot.slane %v3648, 2
          %v3747 = vrot.slane %v3725, 1
          %v3749 = vsel %vm1519, %v3186, %v3729
          %v3750 = vsel %vm1353, %v3749, %v3732
          %v3751 = vsel %vm1187, %v3750, %v3735
          %vm3752 = vcmask 1043456
          %v3753 = vsel %vm3752, %v3751, %v3738
          %vm3754 = vcmask 1044480
          %v3755 = vsel %vm3754, %v3753, %v3741
          %vm3756 = vcmask 1045504
          %v3757 = vsel %vm3756, %v3755, %v3744
          %vm3758 = vcmask 1046528
          %v3759 = vsel %vm3758, %v3757, %v3747
          %s3760 = scalar_lea.vmem [#allocation6], %s2877
          %3761 = vst.msk [vmem:[%s3760] sm:$0xff] %vm1978, %v3759
        $region69: #{tpu_custom_call.1} parent=63 // loop_footer
          %s2874 = sadd.s32 1, %s2870
        $region70: #{tpu_custom_call.1} parent=63 // loop_footer_branch
          %2869 = sbr.rel target = $region66
        $region71: #{tpu_custom_call.1} parent=63 // loop_exit
          _
        %v3762 = vld [vmem:[#allocation6] sm:$0xff]
        %v3763 = vld [vmem:[#allocation6 + $0x8] sm:$0xff]
        %v3764 = vld [vmem:[#allocation6 + $0x10] sm:$0xff]
        %v3765 = vld [vmem:[#allocation6 + $0x18] sm:$0xff]
        %v3766 = vld [vmem:[#allocation6 + $0x20] sm:$0xff]
        %v3767 = vld [vmem:[#allocation6 + $0x28] sm:$0xff]
        %v3768 = vld [vmem:[#allocation6 + $0x30] sm:$0xff]
        %v3769 = vld [vmem:[#allocation6 + $0x38] sm:$0xff]
        %v3770 = vld [vmem:[#allocation6 + $0x40] sm:$0xff]
        %v3771 = vld [vmem:[#allocation6 + $0x48] sm:$0xff]
        %v3772 = vld [vmem:[#allocation6 + $0x50] sm:$0xff]
        %v3773 = vld [vmem:[#allocation6 + $0x58] sm:$0xff]
        %v3774 = vld [vmem:[#allocation6 + $0x60] sm:$0xff]
        %v3775 = vld [vmem:[#allocation6 + $0x68] sm:$0xff]
        %v3776 = vld [vmem:[#allocation6 + $0x70] sm:$0xff]
        %v3777 = vld [vmem:[#allocation6 + $0x78] sm:$0xff]
        %v3778 = vld [vmem:[#allocation6 + $0x80] sm:$0xff]
        %v3779 = vld [vmem:[#allocation6 + $0x88] sm:$0xff]
        %v3780 = vld [vmem:[#allocation6 + $0x90] sm:$0xff]
        %v3781 = vld [vmem:[#allocation6 + $0x98] sm:$0xff]
        %v3782 = vld [vmem:[#allocation6 + $0xa0] sm:$0xff]
        %v3783 = vld [vmem:[#allocation6 + $0xa8] sm:$0xff]
        %v3784 = vld [vmem:[#allocation6 + $0xb0] sm:$0xff]
        %v3785 = vld [vmem:[#allocation6 + $0xb8] sm:$0xff]
        %v3786 = vld [vmem:[#allocation6 + $0xc0] sm:$0xff]
        %v3787 = vld [vmem:[#allocation6 + $0xc8] sm:$0xff]
        %v3788 = vld [vmem:[#allocation6 + $0xd0] sm:$0xff]
        %v3789 = vld [vmem:[#allocation6 + $0xd8] sm:$0xff]
        %v3790 = vld [vmem:[#allocation6 + $0xe0] sm:$0xff]
        %v3791 = vld [vmem:[#allocation6 + $0xe8] sm:$0xff]
        %v3792 = vld [vmem:[#allocation6 + $0xf0] sm:$0xff]
        %v3793 = vld [vmem:[#allocation6 + $0xf8] sm:$0xff]
        %v3794 = vld [vmem:[%s9] sm:$0x1]
        %v3796 = vlaneseq
        %v3797 = vshrl.u32 %v3796, 7
        %v3798 = vsub.s32 0, %v3797
        %v3799 = vrot.slane %v3794, %v3798
        %v3801 = vmul.f32 %v3799, %v1914
        %v3802 = vmul.f32 %v3799, %v1915
        %v3803 = vmul.f32 %v3799, %v1916
        %v3804 = vmul.f32 %v3799, %v1917
        %v3805 = vmul.f32 %v3799, %v1918
        %v3806 = vmul.f32 %v3799, %v1919
        %v3807 = vmul.f32 %v3799, %v1920
        %v3808 = vmul.f32 %v3799, %v1921
        %v3809 = vmul.f32 %v3799, %v1922
        %v3810 = vmul.f32 %v3799, %v1923
        %v3811 = vmul.f32 %v3799, %v1924
        %v3812 = vmul.f32 %v3799, %v1925
        %v3813 = vmul.f32 %v3799, %v1926
        %v3814 = vmul.f32 %v3799, %v1927
        %v3815 = vmul.f32 %v3799, %v1928
        %v3816 = vmul.f32 %v3799, %v1929
        %v3817 = vmul.f32 %v3799, %v1930
        %v3818 = vmul.f32 %v3799, %v1931
        %v3819 = vmul.f32 %v3799, %v1932
        %v3820 = vmul.f32 %v3799, %v1933
        %v3821 = vmul.f32 %v3799, %v1934
        %v3822 = vmul.f32 %v3799, %v1935
        %v3823 = vmul.f32 %v3799, %v1936
        %v3824 = vmul.f32 %v3799, %v1937
        %v3825 = vmul.f32 %v3799, %v1938
        %v3826 = vmul.f32 %v3799, %v1939
        %v3827 = vmul.f32 %v3799, %v1940
        %v3828 = vmul.f32 %v3799, %v1941
        %v3829 = vmul.f32 %v3799, %v1942
        %v3830 = vmul.f32 %v3799, %v1943
        %v3831 = vmul.f32 %v3799, %v1944
        %v3832 = vmul.f32 %v3799, %v1945
        %v3833 = vadd.f32 %v3762, %v3801
        %v3834 = vadd.f32 %v3763, %v3802
        %v3835 = vadd.f32 %v3764, %v3803
        %v3836 = vadd.f32 %v3765, %v3804
        %v3837 = vadd.f32 %v3766, %v3805
        %v3838 = vadd.f32 %v3767, %v3806
        %v3839 = vadd.f32 %v3768, %v3807
        %v3840 = vadd.f32 %v3769, %v3808
        %v3841 = vadd.f32 %v3770, %v3809
        %v3842 = vadd.f32 %v3771, %v3810
        %v3843 = vadd.f32 %v3772, %v3811
        %v3844 = vadd.f32 %v3773, %v3812
        %v3845 = vadd.f32 %v3774, %v3813
        %v3846 = vadd.f32 %v3775, %v3814
        %v3847 = vadd.f32 %v3776, %v3815
        %v3848 = vadd.f32 %v3777, %v3816
        %v3849 = vadd.f32 %v3778, %v3817
        %v3850 = vadd.f32 %v3779, %v3818
        %v3851 = vadd.f32 %v3780, %v3819
        %v3852 = vadd.f32 %v3781, %v3820
        %v3853 = vadd.f32 %v3782, %v3821
        %v3854 = vadd.f32 %v3783, %v3822
        %v3855 = vadd.f32 %v3784, %v3823
        %v3856 = vadd.f32 %v3785, %v3824
        %v3857 = vadd.f32 %v3786, %v3825
        %v3858 = vadd.f32 %v3787, %v3826
        %v3859 = vadd.f32 %v3788, %v3827
        %v3860 = vadd.f32 %v3789, %v3828
        %v3861 = vadd.f32 %v3790, %v3829
        %v3862 = vadd.f32 %v3791, %v3830
        %v3863 = vadd.f32 %v3792, %v3831
        %v3864 = vadd.f32 %v3793, %v3832
        %v3865 = vsub.f32 0.0, %v1021
        %v3866 = vsub.f32 0.0, %v1024
        %v3867 = vsub.f32 0.0, %v1029
        %v3868 = vsub.f32 0.0, %v1032
        %v3869 = vsub.f32 0.0, %v1037
        %v3870 = vsub.f32 0.0, %v1040
        %v3871 = vsub.f32 0.0, %v1045
        %v3872 = vsub.f32 0.0, %v1048
        %v3873 = vsub.f32 0.0, %v1053
        %v3874 = vsub.f32 0.0, %v1056
        %v3875 = vsub.f32 0.0, %v1061
        %v3876 = vsub.f32 0.0, %v1064
        %v3877 = vsub.f32 0.0, %v1069
        %v3878 = vsub.f32 0.0, %v1072
        %v3879 = vsub.f32 0.0, %v1077
        %v3880 = vsub.f32 0.0, %v1080
        %v3881 = vsub.f32 0.0, %v1085
        %v3882 = vsub.f32 0.0, %v1088
        %v3883 = vsub.f32 0.0, %v1093
        %v3884 = vsub.f32 0.0, %v1096
        %v3885 = vsub.f32 0.0, %v1101
        %v3886 = vsub.f32 0.0, %v1104
        %v3887 = vsub.f32 0.0, %v1109
        %v3888 = vsub.f32 0.0, %v1112
        %v3889 = vsub.f32 0.0, %v1117
        %v3890 = vsub.f32 0.0, %v1120
        %v3891 = vsub.f32 0.0, %v1125
        %v3892 = vsub.f32 0.0, %v1128
        %v3893 = vsub.f32 0.0, %v1133
        %v3894 = vsub.f32 0.0, %v1136
        %v3895 = vsub.f32 0.0, %v1141
        %v3896 = vsub.f32 0.0, %v1144
        %v3897 = vmul.f32 %v3865, 1.442695
        %v3898 = vpow.pop %v3897
        %v3899 = vmul.f32 %v3866, 1.442695
        %v3900 = vpow.pop %v3899
        %v3901 = vmul.f32 %v3867, 1.442695
        %v3902 = vpow.pop %v3901
        %v3903 = vmul.f32 %v3868, 1.442695
        %v3904 = vpow.pop %v3903
        %v3905 = vmul.f32 %v3869, 1.442695
        %v3906 = vpow.pop %v3905
        %v3907 = vmul.f32 %v3870, 1.442695
        %v3908 = vpow.pop %v3907
        %v3909 = vmul.f32 %v3871, 1.442695
        %v3910 = vpow.pop %v3909
        %v3911 = vmul.f32 %v3872, 1.442695
        %v3912 = vpow.pop %v3911
        %v3913 = vmul.f32 %v3873, 1.442695
        %v3914 = vpow.pop %v3913
        %v3915 = vmul.f32 %v3874, 1.442695
        %v3916 = vpow.pop %v3915
        %v3917 = vmul.f32 %v3875, 1.442695
        %v3918 = vpow.pop %v3917
        %v3919 = vmul.f32 %v3876, 1.442695
        %v3920 = vpow.pop %v3919
        %v3921 = vmul.f32 %v3877, 1.442695
        %v3922 = vpow.pop %v3921
        %v3923 = vmul.f32 %v3878, 1.442695
        %v3924 = vpow.pop %v3923
        %v3925 = vmul.f32 %v3879, 1.442695
        %v3926 = vpow.pop %v3925
        %v3927 = vmul.f32 %v3880, 1.442695
        %v3928 = vpow.pop %v3927
        %v3929 = vmul.f32 %v3881, 1.442695
        %v3930 = vpow.pop %v3929
        %v3931 = vmul.f32 %v3882, 1.442695
        %v3932 = vpow.pop %v3931
        %v3933 = vmul.f32 %v3883, 1.442695
        %v3934 = vpow.pop %v3933
        %v3935 = vmul.f32 %v3884, 1.442695
        %v3936 = vpow.pop %v3935
        %v3937 = vmul.f32 %v3885, 1.442695
        %v3938 = vpow.pop %v3937
        %v3939 = vmul.f32 %v3886, 1.442695
        %v3940 = vpow.pop %v3939
        %v3941 = vmul.f32 %v3887, 1.442695
        %v3942 = vpow.pop %v3941
        %v3943 = vmul.f32 %v3888, 1.442695
        %v3944 = vpow.pop %v3943
        %v3945 = vmul.f32 %v3889, 1.442695
        %v3946 = vpow.pop %v3945
        %v3947 = vmul.f32 %v3890, 1.442695
        %v3948 = vpow.pop %v3947
        %v3949 = vmul.f32 %v3891, 1.442695
        %v3950 = vpow.pop %v3949
        %v3951 = vmul.f32 %v3892, 1.442695
        %v3952 = vpow.pop %v3951
        %v3953 = vmul.f32 %v3893, 1.442695
        %v3954 = vpow.pop %v3953
        %v3955 = vmul.f32 %v3894, 1.442695
        %v3956 = vpow.pop %v3955
        %v3957 = vmul.f32 %v3895, 1.442695
        %v3958 = vpow.pop %v3957
        %v3959 = vmul.f32 %v3896, 1.442695
        %v3960 = vpow.pop %v3959
        %v3961 = vadd.f32 %v3898, 1.0
        %v3962 = vadd.f32 %v3900, 1.0
        %v3963 = vadd.f32 %v3902, 1.0
        %v3964 = vadd.f32 %v3904, 1.0
        %v3965 = vadd.f32 %v3906, 1.0
        %v3966 = vadd.f32 %v3908, 1.0
        %v3967 = vadd.f32 %v3910, 1.0
        %v3968 = vadd.f32 %v3912, 1.0
        %v3969 = vadd.f32 %v3914, 1.0
        %v3970 = vadd.f32 %v3916, 1.0
        %v3971 = vadd.f32 %v3918, 1.0
        %v3972 = vadd.f32 %v3920, 1.0
        %v3973 = vadd.f32 %v3922, 1.0
        %v3974 = vadd.f32 %v3924, 1.0
        %v3975 = vadd.f32 %v3926, 1.0
        %v3976 = vadd.f32 %v3928, 1.0
        %v3977 = vadd.f32 %v3930, 1.0
        %v3978 = vadd.f32 %v3932, 1.0
        %v3979 = vadd.f32 %v3934, 1.0
        %v3980 = vadd.f32 %v3936, 1.0
        %v3981 = vadd.f32 %v3938, 1.0
        %v3982 = vadd.f32 %v3940, 1.0
        %v3983 = vadd.f32 %v3942, 1.0
        %v3984 = vadd.f32 %v3944, 1.0
        %v3985 = vadd.f32 %v3946, 1.0
        %v3986 = vadd.f32 %v3948, 1.0
        %v3987 = vadd.f32 %v3950, 1.0
        %v3988 = vadd.f32 %v3952, 1.0
        %v3989 = vadd.f32 %v3954, 1.0
        %v3990 = vadd.f32 %v3956, 1.0
        %v3991 = vadd.f32 %v3958, 1.0
        %v3992 = vadd.f32 %v3960, 1.0
        %v3993 = vrcp.pop %v3961
        %v3994 = vrcp.pop %v3962
        %v3995 = vrcp.pop %v3963
        %v3996 = vrcp.pop %v3964
        %v3997 = vrcp.pop %v3965
        %v3998 = vrcp.pop %v3966
        %v3999 = vrcp.pop %v3967
        %v4000 = vrcp.pop %v3968
        %v4001 = vrcp.pop %v3969
        %v4002 = vrcp.pop %v3970
        %v4003 = vrcp.pop %v3971
        %v4004 = vrcp.pop %v3972
        %v4005 = vrcp.pop %v3973
        %v4006 = vrcp.pop %v3974
        %v4007 = vrcp.pop %v3975
        %v4008 = vrcp.pop %v3976
        %v4009 = vrcp.pop %v3977
        %v4010 = vrcp.pop %v3978
        %v4011 = vrcp.pop %v3979
        %v4012 = vrcp.pop %v3980
        %v4013 = vrcp.pop %v3981
        %v4014 = vrcp.pop %v3982
        %v4015 = vrcp.pop %v3983
        %v4016 = vrcp.pop %v3984
        %v4017 = vrcp.pop %v3985
        %v4018 = vrcp.pop %v3986
        %v4019 = vrcp.pop %v3987
        %v4020 = vrcp.pop %v3988
        %v4021 = vrcp.pop %v3989
        %v4022 = vrcp.pop %v3990
        %v4023 = vrcp.pop %v3991
        %v4024 = vrcp.pop %v3992
        %v4025 = vmul.f32 %v1021, %v3993
        %v4026 = vmul.f32 %v1024, %v3994
        %v4027 = vmul.f32 %v1029, %v3995
        %v4028 = vmul.f32 %v1032, %v3996
        %v4029 = vmul.f32 %v1037, %v3997
        %v4030 = vmul.f32 %v1040, %v3998
        %v4031 = vmul.f32 %v1045, %v3999
        %v4032 = vmul.f32 %v1048, %v4000
        %v4033 = vmul.f32 %v1053, %v4001
        %v4034 = vmul.f32 %v1056, %v4002
        %v4035 = vmul.f32 %v1061, %v4003
        %v4036 = vmul.f32 %v1064, %v4004
        %v4037 = vmul.f32 %v1069, %v4005
        %v4038 = vmul.f32 %v1072, %v4006
        %v4039 = vmul.f32 %v1077, %v4007
        %v4040 = vmul.f32 %v1080, %v4008
        %v4041 = vmul.f32 %v1085, %v4009
        %v4042 = vmul.f32 %v1088, %v4010
        %v4043 = vmul.f32 %v1093, %v4011
        %v4044 = vmul.f32 %v1096, %v4012
        %v4045 = vmul.f32 %v1101, %v4013
        %v4046 = vmul.f32 %v1104, %v4014
        %v4047 = vmul.f32 %v1109, %v4015
        %v4048 = vmul.f32 %v1112, %v4016
        %v4049 = vmul.f32 %v1117, %v4017
        %v4050 = vmul.f32 %v1120, %v4018
        %v4051 = vmul.f32 %v1125, %v4019
        %v4052 = vmul.f32 %v1128, %v4020
        %v4053 = vmul.f32 %v1133, %v4021
        %v4054 = vmul.f32 %v1136, %v4022
        %v4055 = vmul.f32 %v1141, %v4023
        %v4056 = vmul.f32 %v1144, %v4024
        %4089 = vrot.lane.b32.xlu0 %v4025, 96
        %v4090 = vpop.permute.xlu0 %4089
        %4091 = vrot.lane.b32.xlu0 %v4026, 96
        %v4092 = vpop.permute.xlu0 %4091
        %4093 = vrot.lane.b32.xlu0 %v4027, 96
        %v4094 = vpop.permute.xlu0 %4093
        %4095 = vrot.lane.b32.xlu0 %v4028, 96
        %v4096 = vpop.permute.xlu0 %4095
        %4097 = vrot.lane.b32.xlu0 %v4029, 96
        %v4098 = vpop.permute.xlu0 %4097
        %4099 = vrot.lane.b32.xlu0 %v4030, 96
        %v4100 = vpop.permute.xlu0 %4099
        %4101 = vrot.lane.b32.xlu0 %v4031, 96
        %v4102 = vpop.permute.xlu0 %4101
        %4103 = vrot.lane.b32.xlu0 %v4032, 96
        %v4104 = vpop.permute.xlu0 %4103
        %4105 = vrot.lane.b32.xlu0 %v4033, 96
        %v4106 = vpop.permute.xlu0 %4105
        %4107 = vrot.lane.b32.xlu0 %v4034, 96
        %v4108 = vpop.permute.xlu0 %4107
        %4109 = vrot.lane.b32.xlu0 %v4035, 96
        %v4110 = vpop.permute.xlu0 %4109
        %4111 = vrot.lane.b32.xlu0 %v4036, 96
        %v4112 = vpop.permute.xlu0 %4111
        %4113 = vrot.lane.b32.xlu0 %v4037, 96
        %v4114 = vpop.permute.xlu0 %4113
        %4115 = vrot.lane.b32.xlu0 %v4038, 96
        %v4116 = vpop.permute.xlu0 %4115
        %4117 = vrot.lane.b32.xlu0 %v4039, 96
        %v4118 = vpop.permute.xlu0 %4117
        %4119 = vrot.lane.b32.xlu0 %v4040, 96
        %v4120 = vpop.permute.xlu0 %4119
        %4121 = vrot.lane.b32.xlu0 %v4041, 96
        %v4122 = vpop.permute.xlu0 %4121
        %4123 = vrot.lane.b32.xlu0 %v4042, 96
        %v4124 = vpop.permute.xlu0 %4123
        %4125 = vrot.lane.b32.xlu0 %v4043, 96
        %v4126 = vpop.permute.xlu0 %4125
        %4127 = vrot.lane.b32.xlu0 %v4044, 96
        %v4128 = vpop.permute.xlu0 %4127
        %4129 = vrot.lane.b32.xlu0 %v4045, 96
        %v4130 = vpop.permute.xlu0 %4129
        %4131 = vrot.lane.b32.xlu0 %v4046, 96
        %v4132 = vpop.permute.xlu0 %4131
        %4133 = vrot.lane.b32.xlu0 %v4047, 96
        %v4134 = vpop.permute.xlu0 %4133
        %4135 = vrot.lane.b32.xlu0 %v4048, 96
        %v4136 = vpop.permute.xlu0 %4135
        %4137 = vrot.lane.b32.xlu0 %v4049, 96
        %v4138 = vpop.permute.xlu0 %4137
        %4139 = vrot.lane.b32.xlu0 %v4050, 96
        %v4140 = vpop.permute.xlu0 %4139
        %4141 = vrot.lane.b32.xlu0 %v4051, 96
        %v4142 = vpop.permute.xlu0 %4141
        %4143 = vrot.lane.b32.xlu0 %v4052, 96
        %v4144 = vpop.permute.xlu0 %4143
        %4145 = vrot.lane.b32.xlu0 %v4053, 96
        %v4146 = vpop.permute.xlu0 %4145
        %4147 = vrot.lane.b32.xlu0 %v4054, 96
        %v4148 = vpop.permute.xlu0 %4147
        %4149 = vrot.lane.b32.xlu0 %v4055, 96
        %v4150 = vpop.permute.xlu0 %4149
        %4151 = vrot.lane.b32.xlu0 %v4056, 96
        %v4152 = vpop.permute.xlu0 %4151
        %v4185 = vmul.f32 %v3833, %v4090
        %v4186 = vmul.f32 %v3834, %v4092
        %v4187 = vmul.f32 %v3835, %v4094
        %v4188 = vmul.f32 %v3836, %v4096
        %v4189 = vmul.f32 %v3837, %v4098
        %v4190 = vmul.f32 %v3838, %v4100
        %v4191 = vmul.f32 %v3839, %v4102
        %v4192 = vmul.f32 %v3840, %v4104
        %v4193 = vmul.f32 %v3841, %v4106
        %v4194 = vmul.f32 %v3842, %v4108
        %v4195 = vmul.f32 %v3843, %v4110
        %v4196 = vmul.f32 %v3844, %v4112
        %v4197 = vmul.f32 %v3845, %v4114
        %v4198 = vmul.f32 %v3846, %v4116
        %v4199 = vmul.f32 %v3847, %v4118
        %v4200 = vmul.f32 %v3848, %v4120
        %v4201 = vmul.f32 %v3849, %v4122
        %v4202 = vmul.f32 %v3850, %v4124
        %v4203 = vmul.f32 %v3851, %v4126
        %v4204 = vmul.f32 %v3852, %v4128
        %v4205 = vmul.f32 %v3853, %v4130
        %v4206 = vmul.f32 %v3854, %v4132
        %v4207 = vmul.f32 %v3855, %v4134
        %v4208 = vmul.f32 %v3856, %v4136
        %v4209 = vmul.f32 %v3857, %v4138
        %v4210 = vmul.f32 %v3858, %v4140
        %v4211 = vmul.f32 %v3859, %v4142
        %v4212 = vmul.f32 %v3860, %v4144
        %v4213 = vmul.f32 %v3861, %v4146
        %v4214 = vmul.f32 %v3862, %v4148
        %v4215 = vmul.f32 %v3863, %v4150
        %v4216 = vmul.f32 %v3864, %v4152
        %v4217 = vld [vmem:[%s10] sm:$0xf]
        %v4218 = vld [vmem:[%s10 + $0x4] sm:$0xf]
        %v4219 = vpack.c.bf16 %v4186, %v4185
        %v4220 = vpack.c.bf16 %v4188, %v4187
        %v4221 = vpack.c.bf16 %v4190, %v4189
        %v4222 = vpack.c.bf16 %v4192, %v4191
        %v4223 = vpack.c.bf16 %v4194, %v4193
        %v4224 = vpack.c.bf16 %v4196, %v4195
        %v4225 = vpack.c.bf16 %v4198, %v4197
        %v4226 = vpack.c.bf16 %v4200, %v4199
        %v4227 = vpack.c.bf16 %v4202, %v4201
        %v4228 = vpack.c.bf16 %v4204, %v4203
        %v4229 = vpack.c.bf16 %v4206, %v4205
        %v4230 = vpack.c.bf16 %v4208, %v4207
        %v4231 = vpack.c.bf16 %v4210, %v4209
        %v4232 = vpack.c.bf16 %v4212, %v4211
        %v4233 = vpack.c.bf16 %v4214, %v4213
        %v4234 = vpack.c.bf16 %v4216, %v4215
        %v4237 = vunpack.c.l.b16 %v4217
        %v4238 = vunpack.c.l.b16 %v4218
        %v4239 = vpack.c.b16 %v4238, %v4237
        %v4241 = vsel %vm1978, %v4239, 0
        %v4244 = vsel %vm1978, %v4219, 0
        %v4247 = vsel %vm1978, %v4220, 0
        %v4250 = vsel %vm1978, %v4221, 0
        %v4253 = vsel %vm1978, %v4222, 0
        %v4256 = vsel %vm1978, %v4223, 0
        %v4259 = vsel %vm1978, %v4224, 0
        %v4262 = vsel %vm1978, %v4225, 0
        %v4265 = vsel %vm1978, %v4226, 0
        %v4268 = vsel %vm1978, %v4227, 0
        %v4271 = vsel %vm1978, %v4228, 0
        %v4274 = vsel %vm1978, %v4229, 0
        %v4277 = vsel %vm1978, %v4230, 0
        %v4280 = vsel %vm1978, %v4231, 0
        %v4283 = vsel %vm1978, %v4232, 0
        %v4286 = vsel %vm1978, %v4233, 0
        %v4289 = vsel %vm1978, %v4234, 0
        %4291 = vmatprep.subr.bf16.mxu0 0
        %4292 = vmatpush1.bf16.xpose.msra.mxu0 %v4265
        %4293 = vmatprep.subr.bf16.mxu0 0
        %4294 = vmatpush1.bf16.xpose.msra.mxu0 %v4262
        %4295 = vmatprep.subr.bf16.mxu0 0
        %4296 = vmatpush1.bf16.xpose.msra.mxu0 %v4259
        %4297 = vmatprep.subr.bf16.mxu0 0
        %4298 = vmatpush1.bf16.xpose.msra.mxu0 %v4256
        %4299 = vmatprep.subr.bf16.mxu0 0
        %4300 = vmatpush1.bf16.xpose.msra.mxu0 %v4253
        %4301 = vmatprep.subr.bf16.mxu0 0
        %4302 = vmatpush1.bf16.xpose.msra.mxu0 %v4250
        %4303 = vmatprep.subr.bf16.mxu0 0
        %4304 = vmatpush1.bf16.xpose.msra.mxu0 %v4247
        %4305 = vmatprep.subr.bf16.mxu0 0
        %4306 = vmatpush1.bf16.xpose.msra.mxu0 %v4244
        %4307 = vmatprep.subr.bf16.mxu0 0
        %4308 = vmatpush2.bf16.xpose.msra.mxu0 %v4289
        %4309 = vmatprep.subr.bf16.mxu0 0
        %4310 = vmatpush2.bf16.xpose.msra.mxu0 %v4286
        %4311 = vmatprep.subr.bf16.mxu0 0
        %4312 = vmatpush2.bf16.xpose.msra.mxu0 %v4283
        %4313 = vmatprep.subr.bf16.mxu0 0
        %4314 = vmatpush2.bf16.xpose.msra.mxu0 %v4280
        %4315 = vmatprep.subr.bf16.mxu0 0
        %4316 = vmatpush2.bf16.xpose.msra.mxu0 %v4277
        %4317 = vmatprep.subr.bf16.mxu0 0
        %4318 = vmatpush2.bf16.xpose.msra.mxu0 %v4274
        %4319 = vmatprep.subr.bf16.mxu0 0
        %4320 = vmatpush2.bf16.xpose.msra.mxu0 %v4271
        %4321 = vmatprep.subr.bf16.mxu0 0
        %4322 = vmatpush2.bf16.xpose.msra.mxu0 %v4268
        %4323 = vmatprep.mubr.bf16.mxu0 0
        %4324 = vmatmul.mubr.bf16.gmra.mxu0 %v4241
        %v4325 = vpop.f32.mrf.mxu0
        %v4326 = vadd.f32 0.0, %v4325
        %v4327 = vpop.f32.mrf.mxu0
        %v4328 = vadd.f32 0.0, %v4327
        %v4329 = vpop.f32.mrf.mxu0
        %v4330 = vadd.f32 0.0, %v4329
        %v4331 = vpop.f32.mrf.mxu0
        %v4332 = vadd.f32 0.0, %v4331
        %4333 = vdwg.mxu0
        %4334 = vst [vmem:[%s379] sm:$0xff] %v4326
        %4335 = vst [vmem:[%s379 + $0x8] sm:$0xff] %v4328
        %4336 = vst [vmem:[%s379 + $0x10] sm:$0xff] %v4330
        %4337 = vst [vmem:[%s379 + $0x18] sm:$0xff] %v4332
        %s4338 = sand.u32 %s269, 1
        %s4339 = scalar_lea.sflag [#allocation8], %s4338
        %s4340 = sand.u32 %s269, 1
        %s4341 = smul.addr %s4340, 32
        %s4342 = scalar_lea.vmem [#allocation7], %s4341
        // Predicated region
        $region72: #{tpu_custom_call.1} parent=63 // pred_check
          %p4343 = pneg %p279
        $region73: #{tpu_custom_call.1} parent=63 // pred_check_branch
          %4345 = sbr.rel (%p4343) target = $region75
        $region74: #{tpu_custom_call.1} parent=63 // pred_region
          %s4347 = ssub.s32 512, 512
          %4348 = vsyncadd %s4339, %s4347
          %s4349 = smul.addr %s25, 4
          %s4350 = smul.addr %s4349, 128
          %s4351 = scalar_lea.hbm %s11, %s4350
          %s4352 = sshll.u32 %s4342, 4
          %s4353 = int_to_ptr.vmem [resolvable:$true] %s4352
          %4358 = dma.vmem_to_hbm [thread:$0]  %s4353, 512, %s4351, %s4339, 256, 256, 16
        $region75: #{tpu_custom_call.1} parent=63 // pred_fallthru
          _
      $region64: #{tpu_custom_call.1} parent=5 // pred_fallthru
        _
      %p4359 = scmp.le.s32.totalorder 2, %s20
      // Predicated region
      $region76: #{tpu_custom_call.1} parent=5 // pred_check
        %p4360 = pneg %p4359
      $region77: #{tpu_custom_call.1} parent=5 // pred_check_branch
        %4362 = sbr.rel (%p4360) target = $region79
      $region78: #{tpu_custom_call.1} parent=5 // pred_region
        %s4363 = ssub.s32 %s20, 2
        // Predicated region
        $region80: #{tpu_custom_call.1} parent=78 // pred_check
          %p4364 = pneg %p285
        $region81: #{tpu_custom_call.1} parent=78 // pred_check_branch
          %4366 = sbr.rel (%p4364) target = $region83
        $region82: #{tpu_custom_call.1} parent=78 // pred_region
          %s4367 = sand.u32 %s270, 1
          %s4368 = scalar_lea.sflag [#allocation8], %s4367
          %s4369 = sand.u32 %s270, 1
          %s4370 = smul.addr %s4369, 32
          %s4371 = scalar_lea.vmem [#allocation7], %s4370
          %4372 = dma.done %s4368, 512
        $region83: #{tpu_custom_call.1} parent=78 // pred_fallthru
          _
      $region79: #{tpu_custom_call.1} parent=5 // pred_fallthru
        _
    $region6: #{tpu_custom_call.1} parent=1 // loop_footer
      %s24 = sadd.s32 1, %s20
    $region7: #{tpu_custom_call.1} parent=1 // loop_footer_branch
      %19 = sbr.rel target = $region3
    $region8: #{tpu_custom_call.1} parent=1 // loop_exit
      _
    %4373 = vsyncpa [#allocation8], 1
    %s4374 = scalar_lea.sflag [#allocation8], 1
    %4375 = vsyncpa %s4374, 1

</llo_original>
